<compile_context>
chip_gen: v7x
topology: tpu7x:2x2x1
jax: 0.10.0
libtpu: 0.0.40
codegen_flags: <defaults>
</compile_context>

<pallas_src>
import jax
import jax.numpy as jnp
from jax.experimental import pallas as pl
from jax.experimental.pallas import tpu as pltpu


def formula_encoder_kernel(tok_ref, tabf_ref, hbt_ref, whf_ref, bhn_ref,
                           w2p_ref, b2p_ref, out_ref):
    BB, T = tok_ref.shape                       # (block_b, seq_len) int32 tokens
    Vp = tabf_ref.shape[0]                      # padded vocab size
    H = bhn_ref.shape[1]                        # hidden size
    mdt = tabf_ref.dtype                        # MXU operand dtype (bf16 or f32)

    def dot(a, b):                              # MXU matmul, always f32 accumulation
        return jnp.dot(a, b, preferred_element_type=jnp.float32)

    tok = tok_ref[...]                                                  # (BB, T)
    iota_v = jax.lax.broadcasted_iota(jnp.int32, (BB, Vp), 1)

    def onehot(t):                              # exact row-selector for timestep t
        return (tok[:, t:t + 1] == iota_v).astype(mdt)                  # (BB, Vp)

    tabf = tabf_ref[...]                                                # (Vp, 3H)
    whf = whf_ref[...]                                                  # (H, 3H)
    bhn = jnp.broadcast_to(bhn_ref[...], (BB, H))                       # hoisted once

    # Reverse direction == one GRU cell step from a zero state == table lookup.
    h_bwd = dot(onehot(T - 1), hbt_ref[...])                            # (BB, H) f32

    # t = 0: h == 0, so the recurrent matmul vanishes (gh_r = gh_z = 0, gh_n = b_hh_n).
    gx = dot(onehot(0), tabf)                                           # (BB, 3H) f32
    sig = jax.nn.sigmoid(gx[:, :2 * H])                                 # fused r|z
    n = jnp.tanh(gx[:, 2 * H:] + sig[:, :H] * bhn)
    h = (1.0 - sig[:, H:]) * n

    # t = 1 .. T-1: only h @ Wh (fused gates r|z|n) is serial; gate math stays f32.
    for t in range(1, T):                       # small static T -> full unroll
        gx = dot(onehot(t), tabf)               # gather; independent of h (off the chain)
        gh = dot(h.astype(mdt), whf)                                    # (BB, 3H) f32
        sig = jax.nn.sigmoid(gx[:, :2 * H] + gh[:, :2 * H])
        r = sig[:, :H]
        z = sig[:, H:]
        n = jnp.tanh(gx[:, 2 * H:] + r * (gh[:, 2 * H:] + bhn))
        h = (1.0 - z) * n + z * h

    # Fused, lane-dense head: (BB, H) @ (H, OUTP>=128); mu/logvar sliced outside.
    out_ref[...] = (dot((h + h_bwd).astype(mdt), w2p_ref[...])
                    + b2p_ref[...]).astype(out_ref.dtype)


def _round_up(x, m):
    return ((x + m - 1) // m) * m


def _fold_forward(embed, w_ih, w_hh, b_ih, b_hh, v_pad):
    """gi table (V,3H) with r/z biases fully folded + n-gate b_ih; fused Wh; b_hh_n."""
    V, H = embed.shape
    gi = embed @ w_ih.T                                                 # (V, 3H)
    bias = jnp.concatenate([b_ih[:2 * H] + b_hh[:2 * H], b_ih[2 * H:]])
    tab = jnp.pad(gi + bias[None, :], ((0, v_pad - V), (0, 0)))
    wh = w_hh.T                                                         # (H, 3H)
    bhn = b_hh[2 * H:].reshape(1, H)
    return tab, wh, bhn


def _fold_reverse_table(embed, w_ih, w_hh, b_ih, b_hh, v_pad):
    """Full reverse-direction contribution: GRU cell on each token value from h=0."""
    V, H = embed.shape
    gi = embed @ w_ih.T + b_ih[None, :]
    gh = jnp.broadcast_to(b_hh[None, :], gi.shape)                      # h=0 -> bias only
    r = jax.nn.sigmoid(gi[:, :H] + gh[:, :H])
    z = jax.nn.sigmoid(gi[:, H:2 * H] + gh[:, H:2 * H])
    n = jnp.tanh(gi[:, 2 * H:] + r * gh[:, 2 * H:])
    return jnp.pad((1.0 - z) * n, ((0, v_pad - V), (0, 0)))             # (Vp, H)


def init_params(key, n_latents, n_characters, n_hiddens):
    """Deterministic parameters with the same shapes nn.Module.__init__ creates."""
    H = n_hiddens
    keys = jax.random.split(key, 11)
    bound = 1.0 / float(jnp.sqrt(jnp.float32(H)))

    def u(k, shape):
        return jax.random.uniform(k, shape, jnp.float32, -bound, bound)

    return {
        "embed": jax.random.normal(keys[0], (n_characters, H), jnp.float32),
        "w_ih_f": u(keys[1], (3 * H, H)), "w_hh_f": u(keys[2], (3 * H, H)),
        "b_ih_f": u(keys[3], (3 * H,)),   "b_hh_f": u(keys[4], (3 * H,)),
        "w_ih_r": u(keys[5], (3 * H, H)), "w_hh_r": u(keys[6], (3 * H, H)),
        "b_ih_r": u(keys[7], (3 * H,)),   "b_hh_r": u(keys[8], (3 * H,)),
        "h2p_w": u(keys[9], (2 * n_latents, H)),   # nn.Linear weight (out, in)
        "h2p_b": u(keys[10], (2 * n_latents,)),
    }


def formula_encoder_forward(tokens, params, n_latents, *, block_b=128,
                            mxu_dtype=jnp.bfloat16):
    """tokens: (B, T) int32 character ids; returns (mu, logvar), each (B, n_latents)."""
    embed = params["embed"].astype(jnp.float32)
    V, H = embed.shape
    L = n_latents
    B, T = tokens.shape

    # Pad batch up to block_b (128-256 amortizes grid overhead / fills the MXU M dim).
    Bp = _round_up(B, block_b)
    tokens_p = jnp.pad(tokens.astype(jnp.int32), ((0, Bp - B), (0, 0)))   # (Bp, T)

    Vp = _round_up(V, 8)                                       # sublane-friendly tables
    tabf, whf, bhn = _fold_forward(embed, params["w_ih_f"], params["w_hh_f"],
                                   params["b_ih_f"], params["b_hh_f"], Vp)
    hbt = _fold_reverse_table(embed, params["w_ih_r"], params["w_hh_r"],
                              params["b_ih_r"], params["b_hh_r"], Vp)

    # Lane-dense head: zero-pad output columns to a multiple of 128 (sliced off below).
    OUTP = _round_up(2 * L, 128)
    w2p = jnp.pad(params["h2p_w"].T, ((0, 0), (0, OUTP - 2 * L)))        # (H, OUTP)
    b2p = jnp.pad(params["h2p_b"], (0, OUTP - 2 * L)).reshape(1, OUTP)

    tabf = tabf.astype(mxu_dtype)
    hbt = hbt.astype(mxu_dtype)
    whf = whf.astype(mxu_dtype)
    w2p = w2p.astype(mxu_dtype)
    bhn = bhn.astype(jnp.float32)
    b2p = b2p.astype(jnp.float32)

    grid = (Bp // block_b,)

    def rep(a):   # whole (tiny) parameter array, replicated across the batch grid
        nd = a.ndim
        return pl.BlockSpec(a.shape, lambda b, _nd=nd: (0,) * _nd)

    out = pl.pallas_call(
        formula_encoder_kernel,
        out_shape=jax.ShapeDtypeStruct((Bp, OUTP), jnp.float32),
        grid=grid,
        in_specs=[
            pl.BlockSpec((block_b, T), lambda b: (b, 0)),      # tokens: batch-tiled,
            rep(tabf), rep(hbt), rep(whf), rep(bhn),           # contiguous per-block DMA
            rep(w2p), rep(b2p),
        ],
        out_specs=pl.BlockSpec((block_b, OUTP), lambda b: (b, 0)),
        compiler_params=pltpu.CompilerParams(
            dimension_semantics=("parallel",),
            vmem_limit_bytes=32 * 1024 * 1024,                 # explicit; safe on v7x
        ),
    )(tokens_p, tabf, hbt, whf, bhn, w2p, b2p)

    out = out[:B, :2 * L]
    return out[:, :L], out[:, L:]


def reference_forward(tokens, params, n_latents):
    """Pure-JAX f32 replica of the PyTorch forward (full reverse scan) for checking."""
    H = params["embed"].shape[1]
    x = jnp.take(params["embed"], tokens, axis=0)
    x = jnp.transpose(x, (1, 0, 2))                                      # (T, B, H)
    T, B, _ = x.shape

    def cell(x_t, h, w_ih, w_hh, b_ih, b_hh):
        gi = x_t @ w_ih.T + b_ih
        gh = h @ w_hh.T + b_hh
        r = jax.nn.sigmoid(gi[:, :H] + gh[:, :H])
        z = jax.nn.sigmoid(gi[:, H:2 * H] + gh[:, H:2 * H])
        n = jnp.tanh(gi[:, 2 * H:] + r * gh[:, 2 * H:])
        return (1.0 - z) * n + z * h

    h = jnp.zeros((B, H), jnp.float32)
    for t in range(T):
        h = cell(x[t], h, params["w_ih_f"], params["w_hh_f"],
                 params["b_ih_f"], params["b_hh_f"])
    h_fwd_last = h

    hb = jnp.zeros((B, H), jnp.float32)
    outs_b = [None] * T
    for t in range(T - 1, -1, -1):
        hb = cell(x[t], hb, params["w_ih_r"], params["w_hh_r"],
                  params["b_ih_r"], params["b_hh_r"])
        outs_b[t] = hb
    h_bwd_last = outs_b[T - 1]

    s = h_fwd_last + h_bwd_last
    out = s @ params["h2p_w"].T + params["h2p_b"]
    return out[:, :n_latents], out[:, n_latents:]


if __name__ == "__main__":
    n_latents, n_characters, n_hiddens = 16, 10, 32
    B, T = 2, 8

    key = jax.random.PRNGKey(0)
    pkey, tkey = jax.random.split(key)
    params = init_params(pkey, n_latents, n_characters, n_hiddens)
    tokens = jax.random.randint(tkey, (B, T), 0, n_characters, dtype=jnp.int32)

    mu_ref, lv_ref = reference_forward(tokens, params, n_latents)

    # Default path: bf16 MXU operands, f32 accumulation / gate math -> loose tolerance.
    mu, logvar = formula_encoder_forward(tokens, params, n_latents)
    jax.block_until_ready((mu, logvar))
    assert mu.shape == (B, n_latents) and logvar.shape == (B, n_latents)
    assert jnp.allclose(mu, mu_ref, atol=5e-2, rtol=5e-2)
    assert jnp.allclose(logvar, lv_ref, atol=5e-2, rtol=5e-2)

    # Exact path: f32 MXU operands -> tight tolerance against the f32 reference.
    mu32, lv32 = formula_encoder_forward(tokens, params, n_latents,
                                         mxu_dtype=jnp.float32)
    jax.block_until_ready((mu32, lv32))
    assert jnp.allclose(mu32, mu_ref, atol=1e-3, rtol=1e-3)
    assert jnp.allclose(lv32, lv_ref, atol=1e-3, rtol=1e-3)

    print("KERNEL_OK")
</pallas_src>

<mosaic_0001>
module attributes {stable_mosaic.version = 11 : i64} {
  func.func @formula_encoder_kernel(%arg0: i32, %arg1: memref<128x8xi32, #tpu.memory_space<vmem>>, %arg2: memref<16x96xbf16, #tpu.memory_space<vmem>>, %arg3: memref<16x32xbf16, #tpu.memory_space<vmem>>, %arg4: memref<32x96xbf16, #tpu.memory_space<vmem>>, %arg5: memref<1x32xf32, #tpu.memory_space<vmem>>, %arg6: memref<32x128xbf16, #tpu.memory_space<vmem>>, %arg7: memref<1x128xf32, #tpu.memory_space<vmem>>, %arg8: memref<128x128xf32, #tpu.memory_space<vmem>>) attributes {dimension_semantics = [#tpu.dimension_semantics<parallel>], iteration_bounds = array<i64: 1>, scalar_prefetch = 0 : i64, scratch_operands = 0 : i64, tpu.core_type = #tpu.core_type<tc>, window_params = [{transform_indices = @transform_0, window_bounds = array<i64: 128, 8>}, {pipeline_mode = #tpu.pipeline_mode<synchronous>, transform_indices = @transform_1, window_bounds = array<i64: 16, 96>}, {pipeline_mode = #tpu.pipeline_mode<synchronous>, transform_indices = @transform_2, window_bounds = array<i64: 16, 32>}, {pipeline_mode = #tpu.pipeline_mode<synchronous>, transform_indices = @transform_3, window_bounds = array<i64: 32, 96>}, {pipeline_mode = #tpu.pipeline_mode<synchronous>, transform_indices = @transform_4, window_bounds = array<i64: 1, 32>}, {pipeline_mode = #tpu.pipeline_mode<synchronous>, transform_indices = @transform_5, window_bounds = array<i64: 32, 128>}, {pipeline_mode = #tpu.pipeline_mode<synchronous>, transform_indices = @transform_6, window_bounds = array<i64: 1, 128>}, {transform_indices = @transform_7, window_bounds = array<i64: 128, 128>}]} {
    %c0 = arith.constant 0 : index
    %c0_0 = arith.constant 0 : index
    %0 = vector.load %arg1[%c0, %c0_0] : memref<128x8xi32, #tpu.memory_space<vmem>>, vector<128x8xi32>
    %1 = tpu.iota {dimensions = array<i32: 1>} : vector<128x16xi32>
    %c0_1 = arith.constant 0 : index
    %c0_2 = arith.constant 0 : index
    %2 = vector.load %arg2[%c0_1, %c0_2] : memref<16x96xbf16, #tpu.memory_space<vmem>>, vector<16x96xbf16>
    %c0_3 = arith.constant 0 : index
    %c0_4 = arith.constant 0 : index
    %3 = vector.load %arg4[%c0_3, %c0_4] : memref<32x96xbf16, #tpu.memory_space<vmem>>, vector<32x96xbf16>
    %c0_5 = arith.constant 0 : index
    %c0_6 = arith.constant 0 : index
    %4 = vector.load %arg5[%c0_5, %c0_6] : memref<1x32xf32, #tpu.memory_space<vmem>>, vector<1x32xf32>
    %5 = vector.shape_cast %4 : vector<1x32xf32> to vector<1x32xf32>
    %6 = vector.broadcast %5 : vector<1x32xf32> to vector<128x32xf32>
    %7 = vector.extract_strided_slice %0 {offsets = [0, 7], sizes = [128, 1], strides = [1, 1]} : vector<128x8xi32> to vector<128x1xi32>
    %8 = vector.broadcast %7 : vector<128x1xi32> to vector<128x16xi32>
    %9 = arith.cmpi eq, %8, %1 : vector<128x16xi32>
    %10 = arith.extui %9 : vector<128x16xi1> to vector<128x16xi32>
    %11 = arith.sitofp %10 : vector<128x16xi32> to vector<128x16xf32>
    %12 = arith.truncf %11 : vector<128x16xf32> to vector<128x16xbf16>
    %c0_7 = arith.constant 0 : index
    %c0_8 = arith.constant 0 : index
    %13 = vector.load %arg3[%c0_7, %c0_8] : memref<16x32xbf16, #tpu.memory_space<vmem>>, vector<16x32xbf16>
    %cst = arith.constant dense<0.000000e+00> : vector<128x32xf32>
    %14 = tpu.matmul %12, %13, %cst {dimension_numbers = #tpu.dot_dimension_numbers<[1], [0], [0], [1], [0, 0, 1, 1], [], []>} : vector<128x16xbf16>, vector<16x32xbf16>, vector<128x32xf32> -> vector<128x32xf32>
    %15 = vector.extract_strided_slice %0 {offsets = [0, 0], sizes = [128, 1], strides = [1, 1]} : vector<128x8xi32> to vector<128x1xi32>
    %16 = vector.broadcast %15 : vector<128x1xi32> to vector<128x16xi32>
    %17 = arith.cmpi eq, %16, %1 : vector<128x16xi32>
    %18 = arith.extui %17 : vector<128x16xi1> to vector<128x16xi32>
    %19 = arith.sitofp %18 : vector<128x16xi32> to vector<128x16xf32>
    %20 = arith.truncf %19 : vector<128x16xf32> to vector<128x16xbf16>
    %cst_9 = arith.constant dense<0.000000e+00> : vector<128x96xf32>
    %21 = tpu.matmul %20, %2, %cst_9 {dimension_numbers = #tpu.dot_dimension_numbers<[1], [0], [0], [1], [0, 0, 1, 1], [], []>} : vector<128x16xbf16>, vector<16x96xbf16>, vector<128x96xf32> -> vector<128x96xf32>
    %22 = vector.extract_strided_slice %21 {offsets = [0, 0], sizes = [128, 64], strides = [1, 1]} : vector<128x96xf32> to vector<128x64xf32>
    %23 = arith.negf %22 : vector<128x64xf32>
    %24 = math.exp %23 : vector<128x64xf32>
    %cst_10 = arith.constant 1.000000e+00 : f32
    %25 = vector.broadcast %cst_10 : f32 to vector<128x64xf32>
    %26 = arith.addf %25, %24 : vector<128x64xf32>
    %27 = arith.divf %25, %26 : vector<128x64xf32>
    %28 = vector.extract_strided_slice %21 {offsets = [0, 64], sizes = [128, 32], strides = [1, 1]} : vector<128x96xf32> to vector<128x32xf32>
    %29 = vector.extract_strided_slice %27 {offsets = [0, 0], sizes = [128, 32], strides = [1, 1]} : vector<128x64xf32> to vector<128x32xf32>
    %30 = arith.mulf %29, %6 : vector<128x32xf32>
    %31 = arith.addf %28, %30 : vector<128x32xf32>
    %32 = math.tanh %31 : vector<128x32xf32>
    %33 = vector.extract_strided_slice %27 {offsets = [0, 32], sizes = [128, 32], strides = [1, 1]} : vector<128x64xf32> to vector<128x32xf32>
    %cst_11 = arith.constant 1.000000e+00 : f32
    %34 = vector.broadcast %cst_11 : f32 to vector<128x32xf32>
    %35 = arith.subf %34, %33 : vector<128x32xf32>
    %36 = arith.mulf %35, %32 : vector<128x32xf32>
    %37 = vector.extract_strided_slice %0 {offsets = [0, 1], sizes = [128, 1], strides = [1, 1]} : vector<128x8xi32> to vector<128x1xi32>
    %38 = vector.broadcast %37 : vector<128x1xi32> to vector<128x16xi32>
    %39 = arith.cmpi eq, %38, %1 : vector<128x16xi32>
    %40 = arith.extui %39 : vector<128x16xi1> to vector<128x16xi32>
    %41 = arith.sitofp %40 : vector<128x16xi32> to vector<128x16xf32>
    %42 = arith.truncf %41 : vector<128x16xf32> to vector<128x16xbf16>
    %cst_12 = arith.constant dense<0.000000e+00> : vector<128x96xf32>
    %43 = tpu.matmul %42, %2, %cst_12 {dimension_numbers = #tpu.dot_dimension_numbers<[1], [0], [0], [1], [0, 0, 1, 1], [], []>} : vector<128x16xbf16>, vector<16x96xbf16>, vector<128x96xf32> -> vector<128x96xf32>
    %44 = arith.truncf %36 : vector<128x32xf32> to vector<128x32xbf16>
    %cst_13 = arith.constant dense<0.000000e+00> : vector<128x96xf32>
    %45 = tpu.matmul %44, %3, %cst_13 {dimension_numbers = #tpu.dot_dimension_numbers<[1], [0], [0], [1], [0, 0, 1, 1], [], []>} : vector<128x32xbf16>, vector<32x96xbf16>, vector<128x96xf32> -> vector<128x96xf32>
    %46 = vector.extract_strided_slice %43 {offsets = [0, 0], sizes = [128, 64], strides = [1, 1]} : vector<128x96xf32> to vector<128x64xf32>
    %47 = vector.extract_strided_slice %45 {offsets = [0, 0], sizes = [128, 64], strides = [1, 1]} : vector<128x96xf32> to vector<128x64xf32>
    %48 = arith.addf %46, %47 : vector<128x64xf32>
    %49 = arith.negf %48 : vector<128x64xf32>
    %50 = math.exp %49 : vector<128x64xf32>
    %cst_14 = arith.constant 1.000000e+00 : f32
    %51 = vector.broadcast %cst_14 : f32 to vector<128x64xf32>
    %52 = arith.addf %51, %50 : vector<128x64xf32>
    %53 = arith.divf %51, %52 : vector<128x64xf32>
    %54 = vector.extract_strided_slice %53 {offsets = [0, 0], sizes = [128, 32], strides = [1, 1]} : vector<128x64xf32> to vector<128x32xf32>
    %55 = vector.extract_strided_slice %53 {offsets = [0, 32], sizes = [128, 32], strides = [1, 1]} : vector<128x64xf32> to vector<128x32xf32>
    %56 = vector.extract_strided_slice %43 {offsets = [0, 64], sizes = [128, 32], strides = [1, 1]} : vector<128x96xf32> to vector<128x32xf32>
    %57 = vector.extract_strided_slice %45 {offsets = [0, 64], sizes = [128, 32], strides = [1, 1]} : vector<128x96xf32> to vector<128x32xf32>
    %58 = arith.addf %57, %6 : vector<128x32xf32>
    %59 = arith.mulf %54, %58 : vector<128x32xf32>
    %60 = arith.addf %56, %59 : vector<128x32xf32>
    %61 = math.tanh %60 : vector<128x32xf32>
    %cst_15 = arith.constant 1.000000e+00 : f32
    %62 = vector.broadcast %cst_15 : f32 to vector<128x32xf32>
    %63 = arith.subf %62, %55 : vector<128x32xf32>
    %64 = arith.mulf %63, %61 : vector<128x32xf32>
    %65 = arith.mulf %55, %36 : vector<128x32xf32>
    %66 = arith.addf %64, %65 : vector<128x32xf32>
    %67 = vector.extract_strided_slice %0 {offsets = [0, 2], sizes = [128, 1], strides = [1, 1]} : vector<128x8xi32> to vector<128x1xi32>
    %68 = vector.broadcast %67 : vector<128x1xi32> to vector<128x16xi32>
    %69 = arith.cmpi eq, %68, %1 : vector<128x16xi32>
    %70 = arith.extui %69 : vector<128x16xi1> to vector<128x16xi32>
    %71 = arith.sitofp %70 : vector<128x16xi32> to vector<128x16xf32>
    %72 = arith.truncf %71 : vector<128x16xf32> to vector<128x16xbf16>
    %cst_16 = arith.constant dense<0.000000e+00> : vector<128x96xf32>
    %73 = tpu.matmul %72, %2, %cst_16 {dimension_numbers = #tpu.dot_dimension_numbers<[1], [0], [0], [1], [0, 0, 1, 1], [], []>} : vector<128x16xbf16>, vector<16x96xbf16>, vector<128x96xf32> -> vector<128x96xf32>
    %74 = arith.truncf %66 : vector<128x32xf32> to vector<128x32xbf16>
    %cst_17 = arith.constant dense<0.000000e+00> : vector<128x96xf32>
    %75 = tpu.matmul %74, %3, %cst_17 {dimension_numbers = #tpu.dot_dimension_numbers<[1], [0], [0], [1], [0, 0, 1, 1], [], []>} : vector<128x32xbf16>, vector<32x96xbf16>, vector<128x96xf32> -> vector<128x96xf32>
    %76 = vector.extract_strided_slice %73 {offsets = [0, 0], sizes = [128, 64], strides = [1, 1]} : vector<128x96xf32> to vector<128x64xf32>
    %77 = vector.extract_strided_slice %75 {offsets = [0, 0], sizes = [128, 64], strides = [1, 1]} : vector<128x96xf32> to vector<128x64xf32>
    %78 = arith.addf %76, %77 : vector<128x64xf32>
    %79 = arith.negf %78 : vector<128x64xf32>
    %80 = math.exp %79 : vector<128x64xf32>
    %cst_18 = arith.constant 1.000000e+00 : f32
    %81 = vector.broadcast %cst_18 : f32 to vector<128x64xf32>
    %82 = arith.addf %81, %80 : vector<128x64xf32>
    %83 = arith.divf %81, %82 : vector<128x64xf32>
    %84 = vector.extract_strided_slice %83 {offsets = [0, 0], sizes = [128, 32], strides = [1, 1]} : vector<128x64xf32> to vector<128x32xf32>
    %85 = vector.extract_strided_slice %83 {offsets = [0, 32], sizes = [128, 32], strides = [1, 1]} : vector<128x64xf32> to vector<128x32xf32>
    %86 = vector.extract_strided_slice %73 {offsets = [0, 64], sizes = [128, 32], strides = [1, 1]} : vector<128x96xf32> to vector<128x32xf32>
    %87 = vector.extract_strided_slice %75 {offsets = [0, 64], sizes = [128, 32], strides = [1, 1]} : vector<128x96xf32> to vector<128x32xf32>
    %88 = arith.addf %87, %6 : vector<128x32xf32>
    %89 = arith.mulf %84, %88 : vector<128x32xf32>
    %90 = arith.addf %86, %89 : vector<128x32xf32>
    %91 = math.tanh %90 : vector<128x32xf32>
    %cst_19 = arith.constant 1.000000e+00 : f32
    %92 = vector.broadcast %cst_19 : f32 to vector<128x32xf32>
    %93 = arith.subf %92, %85 : vector<128x32xf32>
    %94 = arith.mulf %93, %91 : vector<128x32xf32>
    %95 = arith.mulf %85, %66 : vector<128x32xf32>
    %96 = arith.addf %94, %95 : vector<128x32xf32>
    %97 = vector.extract_strided_slice %0 {offsets = [0, 3], sizes = [128, 1], strides = [1, 1]} : vector<128x8xi32> to vector<128x1xi32>
    %98 = vector.broadcast %97 : vector<128x1xi32> to vector<128x16xi32>
    %99 = arith.cmpi eq, %98, %1 : vector<128x16xi32>
    %100 = arith.extui %99 : vector<128x16xi1> to vector<128x16xi32>
    %101 = arith.sitofp %100 : vector<128x16xi32> to vector<128x16xf32>
    %102 = arith.truncf %101 : vector<128x16xf32> to vector<128x16xbf16>
    %cst_20 = arith.constant dense<0.000000e+00> : vector<128x96xf32>
    %103 = tpu.matmul %102, %2, %cst_20 {dimension_numbers = #tpu.dot_dimension_numbers<[1], [0], [0], [1], [0, 0, 1, 1], [], []>} : vector<128x16xbf16>, vector<16x96xbf16>, vector<128x96xf32> -> vector<128x96xf32>
    %104 = arith.truncf %96 : vector<128x32xf32> to vector<128x32xbf16>
    %cst_21 = arith.constant dense<0.000000e+00> : vector<128x96xf32>
    %105 = tpu.matmul %104, %3, %cst_21 {dimension_numbers = #tpu.dot_dimension_numbers<[1], [0], [0], [1], [0, 0, 1, 1], [], []>} : vector<128x32xbf16>, vector<32x96xbf16>, vector<128x96xf32> -> vector<128x96xf32>
    %106 = vector.extract_strided_slice %103 {offsets = [0, 0], sizes = [128, 64], strides = [1, 1]} : vector<128x96xf32> to vector<128x64xf32>
    %107 = vector.extract_strided_slice %105 {offsets = [0, 0], sizes = [128, 64], strides = [1, 1]} : vector<128x96xf32> to vector<128x64xf32>
    %108 = arith.addf %106, %107 : vector<128x64xf32>
    %109 = arith.negf %108 : vector<128x64xf32>
    %110 = math.exp %109 : vector<128x64xf32>
    %cst_22 = arith.constant 1.000000e+00 : f32
    %111 = vector.broadcast %cst_22 : f32 to vector<128x64xf32>
    %112 = arith.addf %111, %110 : vector<128x64xf32>
    %113 = arith.divf %111, %112 : vector<128x64xf32>
    %114 = vector.extract_strided_slice %113 {offsets = [0, 0], sizes = [128, 32], strides = [1, 1]} : vector<128x64xf32> to vector<128x32xf32>
    %115 = vector.extract_strided_slice %113 {offsets = [0, 32], sizes = [128, 32], strides = [1, 1]} : vector<128x64xf32> to vector<128x32xf32>
    %116 = vector.extract_strided_slice %103 {offsets = [0, 64], sizes = [128, 32], strides = [1, 1]} : vector<128x96xf32> to vector<128x32xf32>
    %117 = vector.extract_strided_slice %105 {offsets = [0, 64], sizes = [128, 32], strides = [1, 1]} : vector<128x96xf32> to vector<128x32xf32>
    %118 = arith.addf %117, %6 : vector<128x32xf32>
    %119 = arith.mulf %114, %118 : vector<128x32xf32>
    %120 = arith.addf %116, %119 : vector<128x32xf32>
    %121 = math.tanh %120 : vector<128x32xf32>
    %cst_23 = arith.constant 1.000000e+00 : f32
    %122 = vector.broadcast %cst_23 : f32 to vector<128x32xf32>
    %123 = arith.subf %122, %115 : vector<128x32xf32>
    %124 = arith.mulf %123, %121 : vector<128x32xf32>
    %125 = arith.mulf %115, %96 : vector<128x32xf32>
    %126 = arith.addf %124, %125 : vector<128x32xf32>
    %127 = vector.extract_strided_slice %0 {offsets = [0, 4], sizes = [128, 1], strides = [1, 1]} : vector<128x8xi32> to vector<128x1xi32>
    %128 = vector.broadcast %127 : vector<128x1xi32> to vector<128x16xi32>
    %129 = arith.cmpi eq, %128, %1 : vector<128x16xi32>
    %130 = arith.extui %129 : vector<128x16xi1> to vector<128x16xi32>
    %131 = arith.sitofp %130 : vector<128x16xi32> to vector<128x16xf32>
    %132 = arith.truncf %131 : vector<128x16xf32> to vector<128x16xbf16>
    %cst_24 = arith.constant dense<0.000000e+00> : vector<128x96xf32>
    %133 = tpu.matmul %132, %2, %cst_24 {dimension_numbers = #tpu.dot_dimension_numbers<[1], [0], [0], [1], [0, 0, 1, 1], [], []>} : vector<128x16xbf16>, vector<16x96xbf16>, vector<128x96xf32> -> vector<128x96xf32>
    %134 = arith.truncf %126 : vector<128x32xf32> to vector<128x32xbf16>
    %cst_25 = arith.constant dense<0.000000e+00> : vector<128x96xf32>
    %135 = tpu.matmul %134, %3, %cst_25 {dimension_numbers = #tpu.dot_dimension_numbers<[1], [0], [0], [1], [0, 0, 1, 1], [], []>} : vector<128x32xbf16>, vector<32x96xbf16>, vector<128x96xf32> -> vector<128x96xf32>
    %136 = vector.extract_strided_slice %133 {offsets = [0, 0], sizes = [128, 64], strides = [1, 1]} : vector<128x96xf32> to vector<128x64xf32>
    %137 = vector.extract_strided_slice %135 {offsets = [0, 0], sizes = [128, 64], strides = [1, 1]} : vector<128x96xf32> to vector<128x64xf32>
    %138 = arith.addf %136, %137 : vector<128x64xf32>
    %139 = arith.negf %138 : vector<128x64xf32>
    %140 = math.exp %139 : vector<128x64xf32>
    %cst_26 = arith.constant 1.000000e+00 : f32
    %141 = vector.broadcast %cst_26 : f32 to vector<128x64xf32>
    %142 = arith.addf %141, %140 : vector<128x64xf32>
    %143 = arith.divf %141, %142 : vector<128x64xf32>
    %144 = vector.extract_strided_slice %143 {offsets = [0, 0], sizes = [128, 32], strides = [1, 1]} : vector<128x64xf32> to vector<128x32xf32>
    %145 = vector.extract_strided_slice %143 {offsets = [0, 32], sizes = [128, 32], strides = [1, 1]} : vector<128x64xf32> to vector<128x32xf32>
    %146 = vector.extract_strided_slice %133 {offsets = [0, 64], sizes = [128, 32], strides = [1, 1]} : vector<128x96xf32> to vector<128x32xf32>
    %147 = vector.extract_strided_slice %135 {offsets = [0, 64], sizes = [128, 32], strides = [1, 1]} : vector<128x96xf32> to vector<128x32xf32>
    %148 = arith.addf %147, %6 : vector<128x32xf32>
    %149 = arith.mulf %144, %148 : vector<128x32xf32>
    %150 = arith.addf %146, %149 : vector<128x32xf32>
    %151 = math.tanh %150 : vector<128x32xf32>
    %cst_27 = arith.constant 1.000000e+00 : f32
    %152 = vector.broadcast %cst_27 : f32 to vector<128x32xf32>
    %153 = arith.subf %152, %145 : vector<128x32xf32>
    %154 = arith.mulf %153, %151 : vector<128x32xf32>
    %155 = arith.mulf %145, %126 : vector<128x32xf32>
    %156 = arith.addf %154, %155 : vector<128x32xf32>
    %157 = vector.extract_strided_slice %0 {offsets = [0, 5], sizes = [128, 1], strides = [1, 1]} : vector<128x8xi32> to vector<128x1xi32>
    %158 = vector.broadcast %157 : vector<128x1xi32> to vector<128x16xi32>
    %159 = arith.cmpi eq, %158, %1 : vector<128x16xi32>
    %160 = arith.extui %159 : vector<128x16xi1> to vector<128x16xi32>
    %161 = arith.sitofp %160 : vector<128x16xi32> to vector<128x16xf32>
    %162 = arith.truncf %161 : vector<128x16xf32> to vector<128x16xbf16>
    %cst_28 = arith.constant dense<0.000000e+00> : vector<128x96xf32>
    %163 = tpu.matmul %162, %2, %cst_28 {dimension_numbers = #tpu.dot_dimension_numbers<[1], [0], [0], [1], [0, 0, 1, 1], [], []>} : vector<128x16xbf16>, vector<16x96xbf16>, vector<128x96xf32> -> vector<128x96xf32>
    %164 = arith.truncf %156 : vector<128x32xf32> to vector<128x32xbf16>
    %cst_29 = arith.constant dense<0.000000e+00> : vector<128x96xf32>
    %165 = tpu.matmul %164, %3, %cst_29 {dimension_numbers = #tpu.dot_dimension_numbers<[1], [0], [0], [1], [0, 0, 1, 1], [], []>} : vector<128x32xbf16>, vector<32x96xbf16>, vector<128x96xf32> -> vector<128x96xf32>
    %166 = vector.extract_strided_slice %163 {offsets = [0, 0], sizes = [128, 64], strides = [1, 1]} : vector<128x96xf32> to vector<128x64xf32>
    %167 = vector.extract_strided_slice %165 {offsets = [0, 0], sizes = [128, 64], strides = [1, 1]} : vector<128x96xf32> to vector<128x64xf32>
    %168 = arith.addf %166, %167 : vector<128x64xf32>
    %169 = arith.negf %168 : vector<128x64xf32>
    %170 = math.exp %169 : vector<128x64xf32>
    %cst_30 = arith.constant 1.000000e+00 : f32
    %171 = vector.broadcast %cst_30 : f32 to vector<128x64xf32>
    %172 = arith.addf %171, %170 : vector<128x64xf32>
    %173 = arith.divf %171, %172 : vector<128x64xf32>
    %174 = vector.extract_strided_slice %173 {offsets = [0, 0], sizes = [128, 32], strides = [1, 1]} : vector<128x64xf32> to vector<128x32xf32>
    %175 = vector.extract_strided_slice %173 {offsets = [0, 32], sizes = [128, 32], strides = [1, 1]} : vector<128x64xf32> to vector<128x32xf32>
    %176 = vector.extract_strided_slice %163 {offsets = [0, 64], sizes = [128, 32], strides = [1, 1]} : vector<128x96xf32> to vector<128x32xf32>
    %177 = vector.extract_strided_slice %165 {offsets = [0, 64], sizes = [128, 32], strides = [1, 1]} : vector<128x96xf32> to vector<128x32xf32>
    %178 = arith.addf %177, %6 : vector<128x32xf32>
    %179 = arith.mulf %174, %178 : vector<128x32xf32>
    %180 = arith.addf %176, %179 : vector<128x32xf32>
    %181 = math.tanh %180 : vector<128x32xf32>
    %cst_31 = arith.constant 1.000000e+00 : f32
    %182 = vector.broadcast %cst_31 : f32 to vector<128x32xf32>
    %183 = arith.subf %182, %175 : vector<128x32xf32>
    %184 = arith.mulf %183, %181 : vector<128x32xf32>
    %185 = arith.mulf %175, %156 : vector<128x32xf32>
    %186 = arith.addf %184, %185 : vector<128x32xf32>
    %187 = vector.extract_strided_slice %0 {offsets = [0, 6], sizes = [128, 1], strides = [1, 1]} : vector<128x8xi32> to vector<128x1xi32>
    %188 = vector.broadcast %187 : vector<128x1xi32> to vector<128x16xi32>
    %189 = arith.cmpi eq, %188, %1 : vector<128x16xi32>
    %190 = arith.extui %189 : vector<128x16xi1> to vector<128x16xi32>
    %191 = arith.sitofp %190 : vector<128x16xi32> to vector<128x16xf32>
    %192 = arith.truncf %191 : vector<128x16xf32> to vector<128x16xbf16>
    %cst_32 = arith.constant dense<0.000000e+00> : vector<128x96xf32>
    %193 = tpu.matmul %192, %2, %cst_32 {dimension_numbers = #tpu.dot_dimension_numbers<[1], [0], [0], [1], [0, 0, 1, 1], [], []>} : vector<128x16xbf16>, vector<16x96xbf16>, vector<128x96xf32> -> vector<128x96xf32>
    %194 = arith.truncf %186 : vector<128x32xf32> to vector<128x32xbf16>
    %cst_33 = arith.constant dense<0.000000e+00> : vector<128x96xf32>
    %195 = tpu.matmul %194, %3, %cst_33 {dimension_numbers = #tpu.dot_dimension_numbers<[1], [0], [0], [1], [0, 0, 1, 1], [], []>} : vector<128x32xbf16>, vector<32x96xbf16>, vector<128x96xf32> -> vector<128x96xf32>
    %196 = vector.extract_strided_slice %193 {offsets = [0, 0], sizes = [128, 64], strides = [1, 1]} : vector<128x96xf32> to vector<128x64xf32>
    %197 = vector.extract_strided_slice %195 {offsets = [0, 0], sizes = [128, 64], strides = [1, 1]} : vector<128x96xf32> to vector<128x64xf32>
    %198 = arith.addf %196, %197 : vector<128x64xf32>
    %199 = arith.negf %198 : vector<128x64xf32>
    %200 = math.exp %199 : vector<128x64xf32>
    %cst_34 = arith.constant 1.000000e+00 : f32
    %201 = vector.broadcast %cst_34 : f32 to vector<128x64xf32>
    %202 = arith.addf %201, %200 : vector<128x64xf32>
    %203 = arith.divf %201, %202 : vector<128x64xf32>
    %204 = vector.extract_strided_slice %203 {offsets = [0, 0], sizes = [128, 32], strides = [1, 1]} : vector<128x64xf32> to vector<128x32xf32>
    %205 = vector.extract_strided_slice %203 {offsets = [0, 32], sizes = [128, 32], strides = [1, 1]} : vector<128x64xf32> to vector<128x32xf32>
    %206 = vector.extract_strided_slice %193 {offsets = [0, 64], sizes = [128, 32], strides = [1, 1]} : vector<128x96xf32> to vector<128x32xf32>
    %207 = vector.extract_strided_slice %195 {offsets = [0, 64], sizes = [128, 32], strides = [1, 1]} : vector<128x96xf32> to vector<128x32xf32>
    %208 = arith.addf %207, %6 : vector<128x32xf32>
    %209 = arith.mulf %204, %208 : vector<128x32xf32>
    %210 = arith.addf %206, %209 : vector<128x32xf32>
    %211 = math.tanh %210 : vector<128x32xf32>
    %cst_35 = arith.constant 1.000000e+00 : f32
    %212 = vector.broadcast %cst_35 : f32 to vector<128x32xf32>
    %213 = arith.subf %212, %205 : vector<128x32xf32>
    %214 = arith.mulf %213, %211 : vector<128x32xf32>
    %215 = arith.mulf %205, %186 : vector<128x32xf32>
    %216 = arith.addf %214, %215 : vector<128x32xf32>
    %217 = vector.extract_strided_slice %0 {offsets = [0, 7], sizes = [128, 1], strides = [1, 1]} : vector<128x8xi32> to vector<128x1xi32>
    %218 = vector.broadcast %217 : vector<128x1xi32> to vector<128x16xi32>
    %219 = arith.cmpi eq, %218, %1 : vector<128x16xi32>
    %220 = arith.extui %219 : vector<128x16xi1> to vector<128x16xi32>
    %221 = arith.sitofp %220 : vector<128x16xi32> to vector<128x16xf32>
    %222 = arith.truncf %221 : vector<128x16xf32> to vector<128x16xbf16>
    %cst_36 = arith.constant dense<0.000000e+00> : vector<128x96xf32>
    %223 = tpu.matmul %222, %2, %cst_36 {dimension_numbers = #tpu.dot_dimension_numbers<[1], [0], [0], [1], [0, 0, 1, 1], [], []>} : vector<128x16xbf16>, vector<16x96xbf16>, vector<128x96xf32> -> vector<128x96xf32>
    %224 = arith.truncf %216 : vector<128x32xf32> to vector<128x32xbf16>
    %cst_37 = arith.constant dense<0.000000e+00> : vector<128x96xf32>
    %225 = tpu.matmul %224, %3, %cst_37 {dimension_numbers = #tpu.dot_dimension_numbers<[1], [0], [0], [1], [0, 0, 1, 1], [], []>} : vector<128x32xbf16>, vector<32x96xbf16>, vector<128x96xf32> -> vector<128x96xf32>
    %226 = vector.extract_strided_slice %223 {offsets = [0, 0], sizes = [128, 64], strides = [1, 1]} : vector<128x96xf32> to vector<128x64xf32>
    %227 = vector.extract_strided_slice %225 {offsets = [0, 0], sizes = [128, 64], strides = [1, 1]} : vector<128x96xf32> to vector<128x64xf32>
    %228 = arith.addf %226, %227 : vector<128x64xf32>
    %229 = arith.negf %228 : vector<128x64xf32>
    %230 = math.exp %229 : vector<128x64xf32>
    %cst_38 = arith.constant 1.000000e+00 : f32
    %231 = vector.broadcast %cst_38 : f32 to vector<128x64xf32>
    %232 = arith.addf %231, %230 : vector<128x64xf32>
    %233 = arith.divf %231, %232 : vector<128x64xf32>
    %234 = vector.extract_strided_slice %233 {offsets = [0, 0], sizes = [128, 32], strides = [1, 1]} : vector<128x64xf32> to vector<128x32xf32>
    %235 = vector.extract_strided_slice %233 {offsets = [0, 32], sizes = [128, 32], strides = [1, 1]} : vector<128x64xf32> to vector<128x32xf32>
    %236 = vector.extract_strided_slice %223 {offsets = [0, 64], sizes = [128, 32], strides = [1, 1]} : vector<128x96xf32> to vector<128x32xf32>
    %237 = vector.extract_strided_slice %225 {offsets = [0, 64], sizes = [128, 32], strides = [1, 1]} : vector<128x96xf32> to vector<128x32xf32>
    %238 = arith.addf %237, %6 : vector<128x32xf32>
    %239 = arith.mulf %234, %238 : vector<128x32xf32>
    %240 = arith.addf %236, %239 : vector<128x32xf32>
    %241 = math.tanh %240 : vector<128x32xf32>
    %cst_39 = arith.constant 1.000000e+00 : f32
    %242 = vector.broadcast %cst_39 : f32 to vector<128x32xf32>
    %243 = arith.subf %242, %235 : vector<128x32xf32>
    %244 = arith.mulf %243, %241 : vector<128x32xf32>
    %245 = arith.mulf %235, %216 : vector<128x32xf32>
    %246 = arith.addf %244, %245 : vector<128x32xf32>
    %247 = arith.addf %246, %14 : vector<128x32xf32>
    %248 = arith.truncf %247 : vector<128x32xf32> to vector<128x32xbf16>
    %c0_40 = arith.constant 0 : index
    %c0_41 = arith.constant 0 : index
    %249 = vector.load %arg6[%c0_40, %c0_41] : memref<32x128xbf16, #tpu.memory_space<vmem>>, vector<32x128xbf16>
    %cst_42 = arith.constant dense<0.000000e+00> : vector<128x128xf32>
    %250 = tpu.matmul %248, %249, %cst_42 {dimension_numbers = #tpu.dot_dimension_numbers<[1], [0], [0], [1], [0, 0, 1, 1], [], []>} : vector<128x32xbf16>, vector<32x128xbf16>, vector<128x128xf32> -> vector<128x128xf32>
    %c0_43 = arith.constant 0 : index
    %c0_44 = arith.constant 0 : index
    %251 = vector.load %arg7[%c0_43, %c0_44] : memref<1x128xf32, #tpu.memory_space<vmem>>, vector<1x128xf32>
    %252 = vector.broadcast %251 : vector<1x128xf32> to vector<128x128xf32>
    %253 = arith.addf %250, %252 : vector<128x128xf32>
    %c0_45 = arith.constant 0 : index
    %c0_46 = arith.constant 0 : index
    %254 = vector.load %arg8[%c0_45, %c0_46] : memref<128x128xf32, #tpu.memory_space<vmem>>, vector<128x128xf32>
    tpu.vector_store %arg8[%c0_45, %c0_46], %253 {strides = array<i32>} : memref<128x128xf32, #tpu.memory_space<vmem>>, vector<128x128xf32>,
    return
  }
  func.func @transform_0(%arg0: i32) -> (i32, i32) {
    %c0_i32 = arith.constant 0 : i32
    %c0_i32_0 = arith.constant 0 : i32
    return %arg0, %c0_i32 : i32, i32
  }
  func.func @transform_1(%arg0: i32) -> (i32, i32) {
    %c0_i32 = arith.constant 0 : i32
    %c0_i32_0 = arith.constant 0 : i32
    %c0_i32_1 = arith.constant 0 : i32
    return %c0_i32, %c0_i32_0 : i32, i32
  }
  func.func @transform_2(%arg0: i32) -> (i32, i32) {
    %c0_i32 = arith.constant 0 : i32
    %c0_i32_0 = arith.constant 0 : i32
    %c0_i32_1 = arith.constant 0 : i32
    return %c0_i32, %c0_i32_0 : i32, i32
  }
  func.func @transform_3(%arg0: i32) -> (i32, i32) {
    %c0_i32 = arith.constant 0 : i32
    %c0_i32_0 = arith.constant 0 : i32
    %c0_i32_1 = arith.constant 0 : i32
    return %c0_i32, %c0_i32_0 : i32, i32
  }
  func.func @transform_4(%arg0: i32) -> (i32, i32) {
    %c0_i32 = arith.constant 0 : i32
    %c0_i32_0 = arith.constant 0 : i32
    %c0_i32_1 = arith.constant 0 : i32
    return %c0_i32, %c0_i32_0 : i32, i32
  }
  func.func @transform_5(%arg0: i32) -> (i32, i32) {
    %c0_i32 = arith.constant 0 : i32
    %c0_i32_0 = arith.constant 0 : i32
    %c0_i32_1 = arith.constant 0 : i32
    return %c0_i32, %c0_i32_0 : i32, i32
  }
  func.func @transform_6(%arg0: i32) -> (i32, i32) {
    %c0_i32 = arith.constant 0 : i32
    %c0_i32_0 = arith.constant 0 : i32
    %c0_i32_1 = arith.constant 0 : i32
    return %c0_i32, %c0_i32_0 : i32, i32
  }
  func.func @transform_7(%arg0: i32) -> (i32, i32) {
    %c0_i32 = arith.constant 0 : i32
    %c0_i32_0 = arith.constant 0 : i32
    return %arg0, %c0_i32 : i32, i32
  }
}

</mosaic_0001>

<llo_original>
// kernel: tpu_custom_call.1
$region0: #{tpu_custom_call.1}
  #allocation0 [shape = 'u32[]', space=smem, size = 0x4, offset = 0x4, fixed_abs, tag = 'smem constant byte address 0x4 - core index']
  #allocation1 [shape = 'u32[144,128]{1,0:T(1,128)}', space=vmem, size = 0x12000, scoped, tag = 'internal scratch']
  %s0 = inlined_call_operand.vmem [shape: s32[128,8], index: 0, kind: input, shape index: {}]
  %s1 = inlined_call_operand.vmem [shape: bf16[16,96], index: 1, kind: input, shape index: {}]
  %s2 = inlined_call_operand.vmem [shape: bf16[16,32], index: 2, kind: input, shape index: {}]
  %s3 = inlined_call_operand.vmem [shape: bf16[32,96], index: 3, kind: input, shape index: {}]
  %s4 = inlined_call_operand.vmem [shape: f32[1,32], index: 4, kind: input, shape index: {}]
  %s5 = inlined_call_operand.vmem [shape: bf16[32,128], index: 5, kind: input, shape index: {}]
  %s6 = inlined_call_operand.vmem [shape: f32[1,128], index: 6, kind: input, shape index: {}]
  %s7 = inlined_call_operand.hbm [shape: f32[128,128], index: 7, kind: output, shape index: {}]
  %s8 = sld [smem:[#allocation0]]
  $region38: #{tpu_custom_call.1} parent=0
    _
  %s10 = ssub.s32 1, %s8
  %s11 = scalar_select 0, %s10, %s8
  $region1: #{tpu_custom_call.1} parent=0
    #allocation2 [shape = 'u8[65536]{0}', space=vmem, size = 0x10000, scoped, tag = 'output window, operand 0, single buffered']
    #allocation3 [shape = 's32[1]{0}', space=sflag, size = 0x4, scoped, tag = 'scoped memory for tpu_custom_call.1']
    %12 = vsyncpa [#allocation3], 0
    // Predicated region
    $region2: #{tpu_custom_call.1} parent=1 // pred_check
      _
    $region3: #{tpu_custom_call.1} parent=1 // pred_check_branch
      %14 = sbr.rel (0) target = $region5
    $region4: #{tpu_custom_call.1} parent=1 // pred_region
      _
    $region5: #{tpu_custom_call.1} parent=1 // pred_fallthru
      _
    // Predicated region
    $region6: #{tpu_custom_call.1} parent=1 // pred_check
      _
    $region7: #{tpu_custom_call.1} parent=1 // pred_check_branch
      %16 = sbr.rel (0) target = $region9
    $region8: #{tpu_custom_call.1} parent=1 // pred_region
      _
    $region9: #{tpu_custom_call.1} parent=1 // pred_fallthru
      _
    // Predicated region
    $region10: #{tpu_custom_call.1} parent=1 // pred_check
      _
    $region11: #{tpu_custom_call.1} parent=1 // pred_check_branch
      %18 = sbr.rel (0) target = $region13
    $region12: #{tpu_custom_call.1} parent=1 // pred_region
      _
    $region13: #{tpu_custom_call.1} parent=1 // pred_fallthru
      _
    // Predicated region
    $region14: #{tpu_custom_call.1} parent=1 // pred_check
      _
    $region15: #{tpu_custom_call.1} parent=1 // pred_check_branch
      %20 = sbr.rel (0) target = $region17
    $region16: #{tpu_custom_call.1} parent=1 // pred_region
      _
    $region17: #{tpu_custom_call.1} parent=1 // pred_fallthru
      _
    // Predicated region
    $region18: #{tpu_custom_call.1} parent=1 // pred_check
      _
    $region19: #{tpu_custom_call.1} parent=1 // pred_check_branch
      %22 = sbr.rel (0) target = $region21
    $region20: #{tpu_custom_call.1} parent=1 // pred_region
      _
    $region21: #{tpu_custom_call.1} parent=1 // pred_fallthru
      _
    // Predicated region
    $region22: #{tpu_custom_call.1} parent=1 // pred_check
      _
    $region23: #{tpu_custom_call.1} parent=1 // pred_check_branch
      %24 = sbr.rel (0) target = $region25
    $region24: #{tpu_custom_call.1} parent=1 // pred_region
      _
    $region25: #{tpu_custom_call.1} parent=1 // pred_fallthru
      _
    // Predicated region
    $region26: #{tpu_custom_call.1} parent=1 // pred_check
      _
    $region27: #{tpu_custom_call.1} parent=1 // pred_check_branch
      %26 = sbr.rel (0) target = $region29
    $region28: #{tpu_custom_call.1} parent=1 // pred_region
      _
    $region29: #{tpu_custom_call.1} parent=1 // pred_fallthru
      _
    %v28 = vld [vmem:[%s0] sm:$0xff]
    %v29 = vld [vmem:[%s0 + $0x8] sm:$0xff]
    %v30 = vld [vmem:[%s0 + $0x10] sm:$0xff]
    %v31 = vld [vmem:[%s0 + $0x18] sm:$0xff]
    %v32 = vld [vmem:[%s0 + $0x20] sm:$0xff]
    %v33 = vld [vmem:[%s0 + $0x28] sm:$0xff]
    %v34 = vld [vmem:[%s0 + $0x30] sm:$0xff]
    %v35 = vld [vmem:[%s0 + $0x38] sm:$0xff]
    %v36 = vld [vmem:[%s0 + $0x40] sm:$0xff]
    %v37 = vld [vmem:[%s0 + $0x48] sm:$0xff]
    %v38 = vld [vmem:[%s0 + $0x50] sm:$0xff]
    %v39 = vld [vmem:[%s0 + $0x58] sm:$0xff]
    %v40 = vld [vmem:[%s0 + $0x60] sm:$0xff]
    %v41 = vld [vmem:[%s0 + $0x68] sm:$0xff]
    %v42 = vld [vmem:[%s0 + $0x70] sm:$0xff]
    %v43 = vld [vmem:[%s0 + $0x78] sm:$0xff]
    %v44 = vlaneseq
    %v45 = vand.u32 %v44, 127
    %v46 = vld [vmem:[%s1] sm:$0xf]
    %v47 = vld [vmem:[%s1 + $0x4] sm:$0xf]
    %v48 = vld [vmem:[%s3] sm:$0xf]
    %v49 = vld [vmem:[%s3 + $0x4] sm:$0xf]
    %v50 = vld [vmem:[%s3 + $0x8] sm:$0xf]
    %v51 = vld [vmem:[%s3 + $0xc] sm:$0xf]
    %v52 = vld [vmem:[%s4] sm:$0x1]
    %v54 = vlaneseq
    %v55 = vshrl.u32 %v54, 7
    %v56 = vsub.s32 0, %v55
    %v57 = vrot.slane %v52, %v56
    %59 = vset.pattern.permute.xlu0 7
    %60 = vperm.xlu0 %59, %v28
    %v61 = vpop.permute.xlu0 %60
    %62 = vset.pattern.permute.xlu0 7
    %63 = vperm.xlu0 %62, %v29
    %v64 = vpop.permute.xlu0 %63
    %65 = vset.pattern.permute.xlu0 7
    %66 = vperm.xlu0 %65, %v30
    %v67 = vpop.permute.xlu0 %66
    %68 = vset.pattern.permute.xlu0 7
    %69 = vperm.xlu0 %68, %v31
    %v70 = vpop.permute.xlu0 %69
    %71 = vset.pattern.permute.xlu0 7
    %72 = vperm.xlu0 %71, %v32
    %v73 = vpop.permute.xlu0 %72
    %74 = vset.pattern.permute.xlu0 7
    %75 = vperm.xlu0 %74, %v33
    %v76 = vpop.permute.xlu0 %75
    %77 = vset.pattern.permute.xlu0 7
    %78 = vperm.xlu0 %77, %v34
    %v79 = vpop.permute.xlu0 %78
    %80 = vset.pattern.permute.xlu0 7
    %81 = vperm.xlu0 %80, %v35
    %v82 = vpop.permute.xlu0 %81
    %83 = vset.pattern.permute.xlu0 7
    %84 = vperm.xlu0 %83, %v36
    %v85 = vpop.permute.xlu0 %84
    %86 = vset.pattern.permute.xlu0 7
    %87 = vperm.xlu0 %86, %v37
    %v88 = vpop.permute.xlu0 %87
    %89 = vset.pattern.permute.xlu0 7
    %90 = vperm.xlu0 %89, %v38
    %v91 = vpop.permute.xlu0 %90
    %92 = vset.pattern.permute.xlu0 7
    %93 = vperm.xlu0 %92, %v39
    %v94 = vpop.permute.xlu0 %93
    %95 = vset.pattern.permute.xlu0 7
    %96 = vperm.xlu0 %95, %v40
    %v97 = vpop.permute.xlu0 %96
    %98 = vset.pattern.permute.xlu0 7
    %99 = vperm.xlu0 %98, %v41
    %v100 = vpop.permute.xlu0 %99
    %101 = vset.pattern.permute.xlu0 7
    %102 = vperm.xlu0 %101, %v42
    %v103 = vpop.permute.xlu0 %102
    %104 = vset.pattern.permute.xlu0 7
    %105 = vperm.xlu0 %104, %v43
    %v106 = vpop.permute.xlu0 %105
    %vm107 = vcmp.eq.s32.totalorder %v61, %v45
    %vm108 = vcmp.eq.s32.totalorder %v64, %v45
    %vm109 = vcmp.eq.s32.totalorder %v67, %v45
    %vm110 = vcmp.eq.s32.totalorder %v70, %v45
    %vm111 = vcmp.eq.s32.totalorder %v73, %v45
    %vm112 = vcmp.eq.s32.totalorder %v76, %v45
    %vm113 = vcmp.eq.s32.totalorder %v79, %v45
    %vm114 = vcmp.eq.s32.totalorder %v82, %v45
    %vm115 = vcmp.eq.s32.totalorder %v85, %v45
    %vm116 = vcmp.eq.s32.totalorder %v88, %v45
    %vm117 = vcmp.eq.s32.totalorder %v91, %v45
    %vm118 = vcmp.eq.s32.totalorder %v94, %v45
    %vm119 = vcmp.eq.s32.totalorder %v97, %v45
    %vm120 = vcmp.eq.s32.totalorder %v100, %v45
    %vm121 = vcmp.eq.s32.totalorder %v103, %v45
    %vm122 = vcmp.eq.s32.totalorder %v106, %v45
    %v123 = vsel %vm107, 1, 0
    %v124 = vsel %vm108, 1, 0
    %v125 = vsel %vm109, 1, 0
    %v126 = vsel %vm110, 1, 0
    %v127 = vsel %vm111, 1, 0
    %v128 = vsel %vm112, 1, 0
    %v129 = vsel %vm113, 1, 0
    %v130 = vsel %vm114, 1, 0
    %v131 = vsel %vm115, 1, 0
    %v132 = vsel %vm116, 1, 0
    %v133 = vsel %vm117, 1, 0
    %v134 = vsel %vm118, 1, 0
    %v135 = vsel %vm119, 1, 0
    %v136 = vsel %vm120, 1, 0
    %v137 = vsel %vm121, 1, 0
    %v138 = vsel %vm122, 1, 0
    %v139 = vcvt.s32.f32 %v123
    %v140 = vcvt.s32.f32 %v124
    %v141 = vcvt.s32.f32 %v125
    %v142 = vcvt.s32.f32 %v126
    %v143 = vcvt.s32.f32 %v127
    %v144 = vcvt.s32.f32 %v128
    %v145 = vcvt.s32.f32 %v129
    %v146 = vcvt.s32.f32 %v130
    %v147 = vcvt.s32.f32 %v131
    %v148 = vcvt.s32.f32 %v132
    %v149 = vcvt.s32.f32 %v133
    %v150 = vcvt.s32.f32 %v134
    %v151 = vcvt.s32.f32 %v135
    %v152 = vcvt.s32.f32 %v136
    %v153 = vcvt.s32.f32 %v137
    %v154 = vcvt.s32.f32 %v138
    %v155 = vpack.c.bf16 %v140, %v139
    %v156 = vpack.c.bf16 %v142, %v141
    %v157 = vpack.c.bf16 %v144, %v143
    %v158 = vpack.c.bf16 %v146, %v145
    %v159 = vpack.c.bf16 %v148, %v147
    %v160 = vpack.c.bf16 %v150, %v149
    %v161 = vpack.c.bf16 %v152, %v151
    %v162 = vpack.c.bf16 %v154, %v153
    %v163 = vld [vmem:[%s2] sm:$0xf]
    %v164 = vld [vmem:[%s2 + $0x4] sm:$0xf]
    %v167 = vunpack.c.l.b16 %v163
    %v168 = vunpack.c.l.b16 %v164
    %v169 = vpack.c.b16 %v168, %v167
    %vm171 = vcmask 130048
    %v173 = vsel %vm171, %v155, 0
    %v176 = vsel %vm171, %v156, 0
    %v179 = vsel %vm171, %v157, 0
    %v182 = vsel %vm171, %v158, 0
    %v185 = vsel %vm171, %v159, 0
    %v188 = vsel %vm171, %v160, 0
    %v191 = vsel %vm171, %v161, 0
    %v194 = vsel %vm171, %v162, 0
    %196 = vmatprep.subr.bf16.mxu0 0
    %197 = vmatpush1.bf16.msra.mxu0 %v169
    %198 = vmatprep.subr.bf16.mxu0 0
    %199 = vmatpush1.bf16.msra.mxu0 0
    %200 = vmatprep.subr.bf16.mxu0 0
    %201 = vmatpush1.bf16.msra.mxu0 0
    %202 = vmatprep.subr.bf16.mxu0 0
    %203 = vmatpush1.bf16.msra.mxu0 0
    %204 = vmatprep.subr.bf16.mxu0 0
    %205 = vmatpush1.bf16.msra.mxu0 0
    %206 = vmatprep.subr.bf16.mxu0 0
    %207 = vmatpush1.bf16.msra.mxu0 0
    %208 = vmatprep.subr.bf16.mxu0 0
    %209 = vmatpush1.bf16.msra.mxu0 0
    %210 = vmatprep.subr.bf16.mxu0 0
    %211 = vmatpush1.bf16.msra.mxu0 0
    %212 = vmatprep.subr.bf16.mxu0 0
    %213 = vmatpush1.bf16.msra.mxu0 0
    %214 = vmatprep.subr.bf16.mxu0 0
    %215 = vmatpush1.bf16.msra.mxu0 0
    %216 = vmatprep.subr.bf16.mxu0 0
    %217 = vmatpush1.bf16.msra.mxu0 0
    %218 = vmatprep.subr.bf16.mxu0 0
    %219 = vmatpush1.bf16.msra.mxu0 0
    %220 = vmatprep.subr.bf16.mxu0 0
    %221 = vmatpush1.bf16.msra.mxu0 0
    %222 = vmatprep.subr.bf16.mxu0 0
    %223 = vmatpush1.bf16.msra.mxu0 0
    %224 = vmatprep.subr.bf16.mxu0 0
    %225 = vmatpush1.bf16.msra.mxu0 0
    %226 = vmatprep.subr.bf16.mxu0 0
    %227 = vmatpush1.bf16.msra.mxu0 0
    %228 = vmatprep.mubr.bf16.mxu0 0
    %229 = vmatmul.mubr.bf16.gmra.mrb[0].mxu0 %v173
    %v230 = vpop.f32.mrb[0].mxu0
    %v231 = vadd.f32 0.0, %v230
    %v232 = vpop.f32.mrb[0].mxu0
    %v233 = vpop.f32.mrb[0].mxu0
    %v234 = vadd.f32 0.0, %v233
    %v235 = vpop.f32.mrb[0].mxu0
    %236 = vmatprep.mubr.bf16.mxu0 0
    %237 = vmatmul.mubr.bf16.gmra.mrb[0].mxu0 %v176
    %v238 = vpop.f32.mrb[0].mxu0
    %v239 = vadd.f32 0.0, %v238
    %v240 = vpop.f32.mrb[0].mxu0
    %v241 = vpop.f32.mrb[0].mxu0
    %v242 = vadd.f32 0.0, %v241
    %v243 = vpop.f32.mrb[0].mxu0
    %244 = vmatprep.mubr.bf16.mxu0 0
    %245 = vmatmul.mubr.bf16.gmra.mrb[0].mxu0 %v179
    %v246 = vpop.f32.mrb[0].mxu0
    %v247 = vadd.f32 0.0, %v246
    %v248 = vpop.f32.mrb[0].mxu0
    %v249 = vpop.f32.mrb[0].mxu0
    %v250 = vadd.f32 0.0, %v249
    %v251 = vpop.f32.mrb[0].mxu0
    %252 = vmatprep.mubr.bf16.mxu0 0
    %253 = vmatmul.mubr.bf16.gmra.mrb[0].mxu0 %v182
    %v254 = vpop.f32.mrb[0].mxu0
    %v255 = vadd.f32 0.0, %v254
    %v256 = vpop.f32.mrb[0].mxu0
    %v257 = vpop.f32.mrb[0].mxu0
    %v258 = vadd.f32 0.0, %v257
    %v259 = vpop.f32.mrb[0].mxu0
    %260 = vmatprep.mubr.bf16.mxu0 0
    %261 = vmatmul.mubr.bf16.gmra.mrb[0].mxu0 %v185
    %v262 = vpop.f32.mrb[0].mxu0
    %v263 = vadd.f32 0.0, %v262
    %v264 = vpop.f32.mrb[0].mxu0
    %v265 = vpop.f32.mrb[0].mxu0
    %v266 = vadd.f32 0.0, %v265
    %v267 = vpop.f32.mrb[0].mxu0
    %268 = vmatprep.mubr.bf16.mxu0 0
    %269 = vmatmul.mubr.bf16.gmra.mrb[0].mxu0 %v188
    %v270 = vpop.f32.mrb[0].mxu0
    %v271 = vadd.f32 0.0, %v270
    %v272 = vpop.f32.mrb[0].mxu0
    %v273 = vpop.f32.mrb[0].mxu0
    %v274 = vadd.f32 0.0, %v273
    %v275 = vpop.f32.mrb[0].mxu0
    %276 = vmatprep.mubr.bf16.mxu0 0
    %277 = vmatmul.mubr.bf16.gmra.mrb[0].mxu0 %v191
    %v278 = vpop.f32.mrb[0].mxu0
    %v279 = vadd.f32 0.0, %v278
    %v280 = vpop.f32.mrb[0].mxu0
    %v281 = vpop.f32.mrb[0].mxu0
    %v282 = vadd.f32 0.0, %v281
    %v283 = vpop.f32.mrb[0].mxu0
    %284 = vmatprep.mubr.bf16.mxu0 0
    %285 = vmatmul.mubr.bf16.gmra.mrb[0].mxu0 %v194
    %v286 = vpop.f32.mrb[0].mxu0
    %v287 = vadd.f32 0.0, %v286
    %v288 = vpop.f32.mrb[0].mxu0
    %v289 = vpop.f32.mrb[0].mxu0
    %v290 = vadd.f32 0.0, %v289
    %v291 = vpop.f32.mrb[0].mxu0
    %292 = vdwg.mxu0
    %293 = vset.pattern.permute.xlu0 0
    %294 = vperm.xlu0 %293, %v28
    %v295 = vpop.permute.xlu0 %294
    %296 = vset.pattern.permute.xlu0 0
    %297 = vperm.xlu0 %296, %v29
    %v298 = vpop.permute.xlu0 %297
    %299 = vset.pattern.permute.xlu0 0
    %300 = vperm.xlu0 %299, %v30
    %v301 = vpop.permute.xlu0 %300
    %302 = vset.pattern.permute.xlu0 0
    %303 = vperm.xlu0 %302, %v31
    %v304 = vpop.permute.xlu0 %303
    %305 = vset.pattern.permute.xlu0 0
    %306 = vperm.xlu0 %305, %v32
    %v307 = vpop.permute.xlu0 %306
    %308 = vset.pattern.permute.xlu0 0
    %309 = vperm.xlu0 %308, %v33
    %v310 = vpop.permute.xlu0 %309
    %311 = vset.pattern.permute.xlu0 0
    %312 = vperm.xlu0 %311, %v34
    %v313 = vpop.permute.xlu0 %312
    %314 = vset.pattern.permute.xlu0 0
    %315 = vperm.xlu0 %314, %v35
    %v316 = vpop.permute.xlu0 %315
    %317 = vset.pattern.permute.xlu0 0
    %318 = vperm.xlu0 %317, %v36
    %v319 = vpop.permute.xlu0 %318
    %320 = vset.pattern.permute.xlu0 0
    %321 = vperm.xlu0 %320, %v37
    %v322 = vpop.permute.xlu0 %321
    %323 = vset.pattern.permute.xlu0 0
    %324 = vperm.xlu0 %323, %v38
    %v325 = vpop.permute.xlu0 %324
    %326 = vset.pattern.permute.xlu0 0
    %327 = vperm.xlu0 %326, %v39
    %v328 = vpop.permute.xlu0 %327
    %329 = vset.pattern.permute.xlu0 0
    %330 = vperm.xlu0 %329, %v40
    %v331 = vpop.permute.xlu0 %330
    %332 = vset.pattern.permute.xlu0 0
    %333 = vperm.xlu0 %332, %v41
    %v334 = vpop.permute.xlu0 %333
    %335 = vset.pattern.permute.xlu0 0
    %336 = vperm.xlu0 %335, %v42
    %v337 = vpop.permute.xlu0 %336
    %338 = vset.pattern.permute.xlu0 0
    %339 = vperm.xlu0 %338, %v43
    %v340 = vpop.permute.xlu0 %339
    %vm341 = vcmp.eq.s32.totalorder %v295, %v45
    %vm342 = vcmp.eq.s32.totalorder %v298, %v45
    %vm343 = vcmp.eq.s32.totalorder %v301, %v45
    %vm344 = vcmp.eq.s32.totalorder %v304, %v45
    %vm345 = vcmp.eq.s32.totalorder %v307, %v45
    %vm346 = vcmp.eq.s32.totalorder %v310, %v45
    %vm347 = vcmp.eq.s32.totalorder %v313, %v45
    %vm348 = vcmp.eq.s32.totalorder %v316, %v45
    %vm349 = vcmp.eq.s32.totalorder %v319, %v45
    %vm350 = vcmp.eq.s32.totalorder %v322, %v45
    %vm351 = vcmp.eq.s32.totalorder %v325, %v45
    %vm352 = vcmp.eq.s32.totalorder %v328, %v45
    %vm353 = vcmp.eq.s32.totalorder %v331, %v45
    %vm354 = vcmp.eq.s32.totalorder %v334, %v45
    %vm355 = vcmp.eq.s32.totalorder %v337, %v45
    %vm356 = vcmp.eq.s32.totalorder %v340, %v45
    %v357 = vsel %vm341, 1, 0
    %v358 = vsel %vm342, 1, 0
    %v359 = vsel %vm343, 1, 0
    %v360 = vsel %vm344, 1, 0
    %v361 = vsel %vm345, 1, 0
    %v362 = vsel %vm346, 1, 0
    %v363 = vsel %vm347, 1, 0
    %v364 = vsel %vm348, 1, 0
    %v365 = vsel %vm349, 1, 0
    %v366 = vsel %vm350, 1, 0
    %v367 = vsel %vm351, 1, 0
    %v368 = vsel %vm352, 1, 0
    %v369 = vsel %vm353, 1, 0
    %v370 = vsel %vm354, 1, 0
    %v371 = vsel %vm355, 1, 0
    %v372 = vsel %vm356, 1, 0
    %v373 = vcvt.s32.f32 %v357
    %v374 = vcvt.s32.f32 %v358
    %v375 = vcvt.s32.f32 %v359
    %v376 = vcvt.s32.f32 %v360
    %v377 = vcvt.s32.f32 %v361
    %v378 = vcvt.s32.f32 %v362
    %v379 = vcvt.s32.f32 %v363
    %v380 = vcvt.s32.f32 %v364
    %v381 = vcvt.s32.f32 %v365
    %v382 = vcvt.s32.f32 %v366
    %v383 = vcvt.s32.f32 %v367
    %v384 = vcvt.s32.f32 %v368
    %v385 = vcvt.s32.f32 %v369
    %v386 = vcvt.s32.f32 %v370
    %v387 = vcvt.s32.f32 %v371
    %v388 = vcvt.s32.f32 %v372
    %v389 = vpack.c.bf16 %v374, %v373
    %v390 = vpack.c.bf16 %v376, %v375
    %v391 = vpack.c.bf16 %v378, %v377
    %v392 = vpack.c.bf16 %v380, %v379
    %v393 = vpack.c.bf16 %v382, %v381
    %v394 = vpack.c.bf16 %v384, %v383
    %v395 = vpack.c.bf16 %v386, %v385
    %v396 = vpack.c.bf16 %v388, %v387
    %v399 = vunpack.c.l.b16 %v46
    %v400 = vunpack.c.l.b16 %v47
    %v401 = vpack.c.b16 %v400, %v399
    %v404 = vsel %vm171, %v389, 0
    %v407 = vsel %vm171, %v390, 0
    %v410 = vsel %vm171, %v391, 0
    %v413 = vsel %vm171, %v392, 0
    %v416 = vsel %vm171, %v393, 0
    %v419 = vsel %vm171, %v394, 0
    %v422 = vsel %vm171, %v395, 0
    %v425 = vsel %vm171, %v396, 0
    %427 = vmatprep.subr.bf16.mxu0 0
    %428 = vmatpush1.bf16.msra.mxu0 %v401
    %429 = vmatprep.subr.bf16.mxu0 0
    %430 = vmatpush1.bf16.msra.mxu0 0
    %431 = vmatprep.subr.bf16.mxu0 0
    %432 = vmatpush1.bf16.msra.mxu0 0
    %433 = vmatprep.subr.bf16.mxu0 0
    %434 = vmatpush1.bf16.msra.mxu0 0
    %435 = vmatprep.subr.bf16.mxu0 0
    %436 = vmatpush1.bf16.msra.mxu0 0
    %437 = vmatprep.subr.bf16.mxu0 0
    %438 = vmatpush1.bf16.msra.mxu0 0
    %439 = vmatprep.subr.bf16.mxu0 0
    %440 = vmatpush1.bf16.msra.mxu0 0
    %441 = vmatprep.subr.bf16.mxu0 0
    %442 = vmatpush1.bf16.msra.mxu0 0
    %443 = vmatprep.subr.bf16.mxu0 0
    %444 = vmatpush1.bf16.msra.mxu0 0
    %445 = vmatprep.subr.bf16.mxu0 0
    %446 = vmatpush1.bf16.msra.mxu0 0
    %447 = vmatprep.subr.bf16.mxu0 0
    %448 = vmatpush1.bf16.msra.mxu0 0
    %449 = vmatprep.subr.bf16.mxu0 0
    %450 = vmatpush1.bf16.msra.mxu0 0
    %451 = vmatprep.subr.bf16.mxu0 0
    %452 = vmatpush1.bf16.msra.mxu0 0
    %453 = vmatprep.subr.bf16.mxu0 0
    %454 = vmatpush1.bf16.msra.mxu0 0
    %455 = vmatprep.subr.bf16.mxu0 0
    %456 = vmatpush1.bf16.msra.mxu0 0
    %457 = vmatprep.subr.bf16.mxu0 0
    %458 = vmatpush1.bf16.msra.mxu0 0
    %459 = vmatprep.mubr.bf16.mxu0 0
    %460 = vmatmul.mubr.bf16.gmra.mrb[0].mxu0 %v404
    %v461 = vpop.f32.mrb[0].mxu0
    %v462 = vadd.f32 0.0, %v461
    %v463 = vpop.f32.mrb[0].mxu0
    %v464 = vpop.f32.mrb[0].mxu0
    %v465 = vadd.f32 0.0, %v464
    %v466 = vpop.f32.mrb[0].mxu0
    %467 = vmatprep.mubr.bf16.mxu0 0
    %468 = vmatmul.mubr.bf16.gmra.mrb[0].mxu0 %v407
    %v469 = vpop.f32.mrb[0].mxu0
    %v470 = vadd.f32 0.0, %v469
    %v471 = vpop.f32.mrb[0].mxu0
    %v472 = vpop.f32.mrb[0].mxu0
    %v473 = vadd.f32 0.0, %v472
    %v474 = vpop.f32.mrb[0].mxu0
    %475 = vmatprep.mubr.bf16.mxu0 0
    %476 = vmatmul.mubr.bf16.gmra.mrb[0].mxu0 %v410
    %v477 = vpop.f32.mrb[0].mxu0
    %v478 = vadd.f32 0.0, %v477
    %v479 = vpop.f32.mrb[0].mxu0
    %v480 = vpop.f32.mrb[0].mxu0
    %v481 = vadd.f32 0.0, %v480
    %v482 = vpop.f32.mrb[0].mxu0
    %483 = vmatprep.mubr.bf16.mxu0 0
    %484 = vmatmul.mubr.bf16.gmra.mrb[0].mxu0 %v413
    %v485 = vpop.f32.mrb[0].mxu0
    %v486 = vadd.f32 0.0, %v485
    %v487 = vpop.f32.mrb[0].mxu0
    %v488 = vpop.f32.mrb[0].mxu0
    %v489 = vadd.f32 0.0, %v488
    %v490 = vpop.f32.mrb[0].mxu0
    %491 = vmatprep.mubr.bf16.mxu0 0
    %492 = vmatmul.mubr.bf16.gmra.mrb[0].mxu0 %v416
    %v493 = vpop.f32.mrb[0].mxu0
    %v494 = vadd.f32 0.0, %v493
    %v495 = vpop.f32.mrb[0].mxu0
    %v496 = vpop.f32.mrb[0].mxu0
    %v497 = vadd.f32 0.0, %v496
    %v498 = vpop.f32.mrb[0].mxu0
    %499 = vmatprep.mubr.bf16.mxu0 0
    %500 = vmatmul.mubr.bf16.gmra.mrb[0].mxu0 %v419
    %v501 = vpop.f32.mrb[0].mxu0
    %v502 = vadd.f32 0.0, %v501
    %v503 = vpop.f32.mrb[0].mxu0
    %v504 = vpop.f32.mrb[0].mxu0
    %v505 = vadd.f32 0.0, %v504
    %v506 = vpop.f32.mrb[0].mxu0
    %507 = vmatprep.mubr.bf16.mxu0 0
    %508 = vmatmul.mubr.bf16.gmra.mrb[0].mxu0 %v422
    %v509 = vpop.f32.mrb[0].mxu0
    %v510 = vadd.f32 0.0, %v509
    %v511 = vpop.f32.mrb[0].mxu0
    %v512 = vpop.f32.mrb[0].mxu0
    %v513 = vadd.f32 0.0, %v512
    %v514 = vpop.f32.mrb[0].mxu0
    %515 = vmatprep.mubr.bf16.mxu0 0
    %516 = vmatmul.mubr.bf16.gmra.mrb[0].mxu0 %v425
    %v517 = vpop.f32.mrb[0].mxu0
    %v518 = vadd.f32 0.0, %v517
    %v519 = vpop.f32.mrb[0].mxu0
    %v520 = vpop.f32.mrb[0].mxu0
    %v521 = vadd.f32 0.0, %v520
    %v522 = vpop.f32.mrb[0].mxu0
    %523 = vdwg.mxu0
    %v524 = vxor.u32 %v462, 2147483648
    %v525 = vxor.u32 %v465, 2147483648
    %v526 = vxor.u32 %v470, 2147483648
    %v527 = vxor.u32 %v473, 2147483648
    %v528 = vxor.u32 %v478, 2147483648
    %v529 = vxor.u32 %v481, 2147483648
    %v530 = vxor.u32 %v486, 2147483648
    %v531 = vxor.u32 %v489, 2147483648
    %v532 = vxor.u32 %v494, 2147483648
    %v533 = vxor.u32 %v497, 2147483648
    %v534 = vxor.u32 %v502, 2147483648
    %v535 = vxor.u32 %v505, 2147483648
    %v536 = vxor.u32 %v510, 2147483648
    %v537 = vxor.u32 %v513, 2147483648
    %v538 = vxor.u32 %v518, 2147483648
    %v539 = vxor.u32 %v521, 2147483648
    %v540 = vmul.f32 %v524, 1.442695
    %v541 = vpow.pop %v540
    %v542 = vmul.f32 %v525, 1.442695
    %v543 = vpow.pop %v542
    %v544 = vmul.f32 %v526, 1.442695
    %v545 = vpow.pop %v544
    %v546 = vmul.f32 %v527, 1.442695
    %v547 = vpow.pop %v546
    %v548 = vmul.f32 %v528, 1.442695
    %v549 = vpow.pop %v548
    %v550 = vmul.f32 %v529, 1.442695
    %v551 = vpow.pop %v550
    %v552 = vmul.f32 %v530, 1.442695
    %v553 = vpow.pop %v552
    %v554 = vmul.f32 %v531, 1.442695
    %v555 = vpow.pop %v554
    %v556 = vmul.f32 %v532, 1.442695
    %v557 = vpow.pop %v556
    %v558 = vmul.f32 %v533, 1.442695
    %v559 = vpow.pop %v558
    %v560 = vmul.f32 %v534, 1.442695
    %v561 = vpow.pop %v560
    %v562 = vmul.f32 %v535, 1.442695
    %v563 = vpow.pop %v562
    %v564 = vmul.f32 %v536, 1.442695
    %v565 = vpow.pop %v564
    %v566 = vmul.f32 %v537, 1.442695
    %v567 = vpow.pop %v566
    %v568 = vmul.f32 %v538, 1.442695
    %v569 = vpow.pop %v568
    %v570 = vmul.f32 %v539, 1.442695
    %v571 = vpow.pop %v570
    %v572 = vadd.f32 %v541, 1.0
    %v573 = vadd.f32 %v543, 1.0
    %v574 = vadd.f32 %v545, 1.0
    %v575 = vadd.f32 %v547, 1.0
    %v576 = vadd.f32 %v549, 1.0
    %v577 = vadd.f32 %v551, 1.0
    %v578 = vadd.f32 %v553, 1.0
    %v579 = vadd.f32 %v555, 1.0
    %v580 = vadd.f32 %v557, 1.0
    %v581 = vadd.f32 %v559, 1.0
    %v582 = vadd.f32 %v561, 1.0
    %v583 = vadd.f32 %v563, 1.0
    %v584 = vadd.f32 %v565, 1.0
    %v585 = vadd.f32 %v567, 1.0
    %v586 = vadd.f32 %v569, 1.0
    %v587 = vadd.f32 %v571, 1.0
    %v588 = vrcp.pop %v572
    %v589 = vmul.f32 1.0, %v588
    %v590 = vrcp.pop %v573
    %v591 = vmul.f32 1.0, %v590
    %v592 = vrcp.pop %v574
    %v593 = vmul.f32 1.0, %v592
    %v594 = vrcp.pop %v575
    %v595 = vmul.f32 1.0, %v594
    %v596 = vrcp.pop %v576
    %v597 = vmul.f32 1.0, %v596
    %v598 = vrcp.pop %v577
    %v599 = vmul.f32 1.0, %v598
    %v600 = vrcp.pop %v578
    %v601 = vmul.f32 1.0, %v600
    %v602 = vrcp.pop %v579
    %v603 = vmul.f32 1.0, %v602
    %v604 = vrcp.pop %v580
    %v605 = vmul.f32 1.0, %v604
    %v606 = vrcp.pop %v581
    %v607 = vmul.f32 1.0, %v606
    %v608 = vrcp.pop %v582
    %v609 = vmul.f32 1.0, %v608
    %v610 = vrcp.pop %v583
    %v611 = vmul.f32 1.0, %v610
    %v612 = vrcp.pop %v584
    %v613 = vmul.f32 1.0, %v612
    %v614 = vrcp.pop %v585
    %v615 = vmul.f32 1.0, %v614
    %v616 = vrcp.pop %v586
    %v617 = vmul.f32 1.0, %v616
    %v618 = vrcp.pop %v587
    %v619 = vmul.f32 1.0, %v618
    %v620 = vmul.f32 %v589, %v57
    %v621 = vmul.f32 %v591, %v57
    %v622 = vmul.f32 %v593, %v57
    %v623 = vmul.f32 %v595, %v57
    %v624 = vmul.f32 %v597, %v57
    %v625 = vmul.f32 %v599, %v57
    %v626 = vmul.f32 %v601, %v57
    %v627 = vmul.f32 %v603, %v57
    %v628 = vmul.f32 %v605, %v57
    %v629 = vmul.f32 %v607, %v57
    %v630 = vmul.f32 %v609, %v57
    %v631 = vmul.f32 %v611, %v57
    %v632 = vmul.f32 %v613, %v57
    %v633 = vmul.f32 %v615, %v57
    %v634 = vmul.f32 %v617, %v57
    %v635 = vmul.f32 %v619, %v57
    %652 = vrot.lane.b32.xlu0 %v620, 64
    %v653 = vpop.permute.xlu0 %652
    %654 = vrot.lane.b32.xlu0 %v621, 64
    %v655 = vpop.permute.xlu0 %654
    %656 = vrot.lane.b32.xlu0 %v622, 64
    %v657 = vpop.permute.xlu0 %656
    %658 = vrot.lane.b32.xlu0 %v623, 64
    %v659 = vpop.permute.xlu0 %658
    %660 = vrot.lane.b32.xlu0 %v624, 64
    %v661 = vpop.permute.xlu0 %660
    %662 = vrot.lane.b32.xlu0 %v625, 64
    %v663 = vpop.permute.xlu0 %662
    %664 = vrot.lane.b32.xlu0 %v626, 64
    %v665 = vpop.permute.xlu0 %664
    %666 = vrot.lane.b32.xlu0 %v627, 64
    %v667 = vpop.permute.xlu0 %666
    %668 = vrot.lane.b32.xlu0 %v628, 64
    %v669 = vpop.permute.xlu0 %668
    %670 = vrot.lane.b32.xlu0 %v629, 64
    %v671 = vpop.permute.xlu0 %670
    %672 = vrot.lane.b32.xlu0 %v630, 64
    %v673 = vpop.permute.xlu0 %672
    %674 = vrot.lane.b32.xlu0 %v631, 64
    %v675 = vpop.permute.xlu0 %674
    %676 = vrot.lane.b32.xlu0 %v632, 64
    %v677 = vpop.permute.xlu0 %676
    %678 = vrot.lane.b32.xlu0 %v633, 64
    %v679 = vpop.permute.xlu0 %678
    %680 = vrot.lane.b32.xlu0 %v634, 64
    %v681 = vpop.permute.xlu0 %680
    %682 = vrot.lane.b32.xlu0 %v635, 64
    %v683 = vpop.permute.xlu0 %682
    %v700 = vadd.f32 %v462, %v653
    %v701 = vadd.f32 %v465, %v655
    %v702 = vadd.f32 %v470, %v657
    %v703 = vadd.f32 %v473, %v659
    %v704 = vadd.f32 %v478, %v661
    %v705 = vadd.f32 %v481, %v663
    %v706 = vadd.f32 %v486, %v665
    %v707 = vadd.f32 %v489, %v667
    %v708 = vadd.f32 %v494, %v669
    %v709 = vadd.f32 %v497, %v671
    %v710 = vadd.f32 %v502, %v673
    %v711 = vadd.f32 %v505, %v675
    %v712 = vadd.f32 %v510, %v677
    %v713 = vadd.f32 %v513, %v679
    %v714 = vadd.f32 %v518, %v681
    %v715 = vadd.f32 %v521, %v683
    %v716 = vtanh.pop %v700
    %v717 = vtanh.pop %v701
    %v718 = vtanh.pop %v702
    %v719 = vtanh.pop %v703
    %v720 = vtanh.pop %v704
    %v721 = vtanh.pop %v705
    %v722 = vtanh.pop %v706
    %v723 = vtanh.pop %v707
    %v724 = vtanh.pop %v708
    %v725 = vtanh.pop %v709
    %v726 = vtanh.pop %v710
    %v727 = vtanh.pop %v711
    %v728 = vtanh.pop %v712
    %v729 = vtanh.pop %v713
    %v730 = vtanh.pop %v714
    %v731 = vtanh.pop %v715
    %v732 = vsub.f32 1.0, %v589
    %v733 = vsub.f32 1.0, %v591
    %v734 = vsub.f32 1.0, %v593
    %v735 = vsub.f32 1.0, %v595
    %v736 = vsub.f32 1.0, %v597
    %v737 = vsub.f32 1.0, %v599
    %v738 = vsub.f32 1.0, %v601
    %v739 = vsub.f32 1.0, %v603
    %v740 = vsub.f32 1.0, %v605
    %v741 = vsub.f32 1.0, %v607
    %v742 = vsub.f32 1.0, %v609
    %v743 = vsub.f32 1.0, %v611
    %v744 = vsub.f32 1.0, %v613
    %v745 = vsub.f32 1.0, %v615
    %v746 = vsub.f32 1.0, %v617
    %v747 = vsub.f32 1.0, %v619
    %764 = vrot.lane.b32.xlu0 %v716, 96
    %v765 = vpop.permute.xlu0 %764
    %766 = vrot.lane.b32.xlu0 %v717, 96
    %v767 = vpop.permute.xlu0 %766
    %768 = vrot.lane.b32.xlu0 %v718, 96
    %v769 = vpop.permute.xlu0 %768
    %770 = vrot.lane.b32.xlu0 %v719, 96
    %v771 = vpop.permute.xlu0 %770
    %772 = vrot.lane.b32.xlu0 %v720, 96
    %v773 = vpop.permute.xlu0 %772
    %774 = vrot.lane.b32.xlu0 %v721, 96
    %v775 = vpop.permute.xlu0 %774
    %776 = vrot.lane.b32.xlu0 %v722, 96
    %v777 = vpop.permute.xlu0 %776
    %778 = vrot.lane.b32.xlu0 %v723, 96
    %v779 = vpop.permute.xlu0 %778
    %780 = vrot.lane.b32.xlu0 %v724, 96
    %v781 = vpop.permute.xlu0 %780
    %782 = vrot.lane.b32.xlu0 %v725, 96
    %v783 = vpop.permute.xlu0 %782
    %784 = vrot.lane.b32.xlu0 %v726, 96
    %v785 = vpop.permute.xlu0 %784
    %786 = vrot.lane.b32.xlu0 %v727, 96
    %v787 = vpop.permute.xlu0 %786
    %788 = vrot.lane.b32.xlu0 %v728, 96
    %v789 = vpop.permute.xlu0 %788
    %790 = vrot.lane.b32.xlu0 %v729, 96
    %v791 = vpop.permute.xlu0 %790
    %792 = vrot.lane.b32.xlu0 %v730, 96
    %v793 = vpop.permute.xlu0 %792
    %794 = vrot.lane.b32.xlu0 %v731, 96
    %v795 = vpop.permute.xlu0 %794
    %v812 = vmul.f32 %v732, %v765
    %v813 = vmul.f32 %v733, %v767
    %v814 = vmul.f32 %v734, %v769
    %v815 = vmul.f32 %v735, %v771
    %v816 = vmul.f32 %v736, %v773
    %v817 = vmul.f32 %v737, %v775
    %v818 = vmul.f32 %v738, %v777
    %v819 = vmul.f32 %v739, %v779
    %v820 = vmul.f32 %v740, %v781
    %v821 = vmul.f32 %v741, %v783
    %v822 = vmul.f32 %v742, %v785
    %v823 = vmul.f32 %v743, %v787
    %v824 = vmul.f32 %v744, %v789
    %v825 = vmul.f32 %v745, %v791
    %v826 = vmul.f32 %v746, %v793
    %v827 = vmul.f32 %v747, %v795
    %828 = vset.pattern.permute.xlu0 1
    %829 = vperm.xlu0 %828, %v28
    %v830 = vpop.permute.xlu0 %829
    %831 = vset.pattern.permute.xlu0 1
    %832 = vperm.xlu0 %831, %v29
    %v833 = vpop.permute.xlu0 %832
    %834 = vset.pattern.permute.xlu0 1
    %835 = vperm.xlu0 %834, %v30
    %v836 = vpop.permute.xlu0 %835
    %837 = vset.pattern.permute.xlu0 1
    %838 = vperm.xlu0 %837, %v31
    %v839 = vpop.permute.xlu0 %838
    %840 = vset.pattern.permute.xlu0 1
    %841 = vperm.xlu0 %840, %v32
    %v842 = vpop.permute.xlu0 %841
    %843 = vset.pattern.permute.xlu0 1
    %844 = vperm.xlu0 %843, %v33
    %v845 = vpop.permute.xlu0 %844
    %846 = vset.pattern.permute.xlu0 1
    %847 = vperm.xlu0 %846, %v34
    %v848 = vpop.permute.xlu0 %847
    %849 = vset.pattern.permute.xlu0 1
    %850 = vperm.xlu0 %849, %v35
    %v851 = vpop.permute.xlu0 %850
    %852 = vset.pattern.permute.xlu0 1
    %853 = vperm.xlu0 %852, %v36
    %v854 = vpop.permute.xlu0 %853
    %855 = vset.pattern.permute.xlu0 1
    %856 = vperm.xlu0 %855, %v37
    %v857 = vpop.permute.xlu0 %856
    %858 = vset.pattern.permute.xlu0 1
    %859 = vperm.xlu0 %858, %v38
    %v860 = vpop.permute.xlu0 %859
    %861 = vset.pattern.permute.xlu0 1
    %862 = vperm.xlu0 %861, %v39
    %v863 = vpop.permute.xlu0 %862
    %864 = vset.pattern.permute.xlu0 1
    %865 = vperm.xlu0 %864, %v40
    %v866 = vpop.permute.xlu0 %865
    %867 = vset.pattern.permute.xlu0 1
    %868 = vperm.xlu0 %867, %v41
    %v869 = vpop.permute.xlu0 %868
    %870 = vset.pattern.permute.xlu0 1
    %871 = vperm.xlu0 %870, %v42
    %v872 = vpop.permute.xlu0 %871
    %873 = vset.pattern.permute.xlu0 1
    %874 = vperm.xlu0 %873, %v43
    %v875 = vpop.permute.xlu0 %874
    %vm876 = vcmp.eq.s32.totalorder %v830, %v45
    %vm877 = vcmp.eq.s32.totalorder %v833, %v45
    %vm878 = vcmp.eq.s32.totalorder %v836, %v45
    %vm879 = vcmp.eq.s32.totalorder %v839, %v45
    %vm880 = vcmp.eq.s32.totalorder %v842, %v45
    %vm881 = vcmp.eq.s32.totalorder %v845, %v45
    %vm882 = vcmp.eq.s32.totalorder %v848, %v45
    %vm883 = vcmp.eq.s32.totalorder %v851, %v45
    %vm884 = vcmp.eq.s32.totalorder %v854, %v45
    %vm885 = vcmp.eq.s32.totalorder %v857, %v45
    %vm886 = vcmp.eq.s32.totalorder %v860, %v45
    %vm887 = vcmp.eq.s32.totalorder %v863, %v45
    %vm888 = vcmp.eq.s32.totalorder %v866, %v45
    %vm889 = vcmp.eq.s32.totalorder %v869, %v45
    %vm890 = vcmp.eq.s32.totalorder %v872, %v45
    %vm891 = vcmp.eq.s32.totalorder %v875, %v45
    %v892 = vsel %vm876, 1, 0
    %v893 = vsel %vm877, 1, 0
    %v894 = vsel %vm878, 1, 0
    %v895 = vsel %vm879, 1, 0
    %v896 = vsel %vm880, 1, 0
    %v897 = vsel %vm881, 1, 0
    %v898 = vsel %vm882, 1, 0
    %v899 = vsel %vm883, 1, 0
    %v900 = vsel %vm884, 1, 0
    %v901 = vsel %vm885, 1, 0
    %v902 = vsel %vm886, 1, 0
    %v903 = vsel %vm887, 1, 0
    %v904 = vsel %vm888, 1, 0
    %v905 = vsel %vm889, 1, 0
    %v906 = vsel %vm890, 1, 0
    %v907 = vsel %vm891, 1, 0
    %v908 = vcvt.s32.f32 %v892
    %v909 = vcvt.s32.f32 %v893
    %v910 = vcvt.s32.f32 %v894
    %v911 = vcvt.s32.f32 %v895
    %v912 = vcvt.s32.f32 %v896
    %v913 = vcvt.s32.f32 %v897
    %v914 = vcvt.s32.f32 %v898
    %v915 = vcvt.s32.f32 %v899
    %v916 = vcvt.s32.f32 %v900
    %v917 = vcvt.s32.f32 %v901
    %v918 = vcvt.s32.f32 %v902
    %v919 = vcvt.s32.f32 %v903
    %v920 = vcvt.s32.f32 %v904
    %v921 = vcvt.s32.f32 %v905
    %v922 = vcvt.s32.f32 %v906
    %v923 = vcvt.s32.f32 %v907
    %v924 = vpack.c.bf16 %v909, %v908
    %v925 = vpack.c.bf16 %v911, %v910
    %v926 = vpack.c.bf16 %v913, %v912
    %v927 = vpack.c.bf16 %v915, %v914
    %v928 = vpack.c.bf16 %v917, %v916
    %v929 = vpack.c.bf16 %v919, %v918
    %v930 = vpack.c.bf16 %v921, %v920
    %v931 = vpack.c.bf16 %v923, %v922
    %v933 = vsel %vm171, %v924, 0
    %v936 = vsel %vm171, %v925, 0
    %v939 = vsel %vm171, %v926, 0
    %v942 = vsel %vm171, %v927, 0
    %v945 = vsel %vm171, %v928, 0
    %v948 = vsel %vm171, %v929, 0
    %v951 = vsel %vm171, %v930, 0
    %v954 = vsel %vm171, %v931, 0
    %956 = vmatprep.subr.bf16.mxu0 0
    %957 = vmatpush1.bf16.msra.mxu0 %v401
    %958 = vmatprep.subr.bf16.mxu0 0
    %959 = vmatpush1.bf16.msra.mxu0 0
    %960 = vmatprep.subr.bf16.mxu0 0
    %961 = vmatpush1.bf16.msra.mxu0 0
    %962 = vmatprep.subr.bf16.mxu0 0
    %963 = vmatpush1.bf16.msra.mxu0 0
    %964 = vmatprep.subr.bf16.mxu0 0
    %965 = vmatpush1.bf16.msra.mxu0 0
    %966 = vmatprep.subr.bf16.mxu0 0
    %967 = vmatpush1.bf16.msra.mxu0 0
    %968 = vmatprep.subr.bf16.mxu0 0
    %969 = vmatpush1.bf16.msra.mxu0 0
    %970 = vmatprep.subr.bf16.mxu0 0
    %971 = vmatpush1.bf16.msra.mxu0 0
    %972 = vmatprep.subr.bf16.mxu0 0
    %973 = vmatpush1.bf16.msra.mxu0 0
    %974 = vmatprep.subr.bf16.mxu0 0
    %975 = vmatpush1.bf16.msra.mxu0 0
    %976 = vmatprep.subr.bf16.mxu0 0
    %977 = vmatpush1.bf16.msra.mxu0 0
    %978 = vmatprep.subr.bf16.mxu0 0
    %979 = vmatpush1.bf16.msra.mxu0 0
    %980 = vmatprep.subr.bf16.mxu0 0
    %981 = vmatpush1.bf16.msra.mxu0 0
    %982 = vmatprep.subr.bf16.mxu0 0
    %983 = vmatpush1.bf16.msra.mxu0 0
    %984 = vmatprep.subr.bf16.mxu0 0
    %985 = vmatpush1.bf16.msra.mxu0 0
    %986 = vmatprep.subr.bf16.mxu0 0
    %987 = vmatpush1.bf16.msra.mxu0 0
    %988 = vmatprep.mubr.bf16.mxu0 0
    %989 = vmatmul.mubr.bf16.gmra.mrb[0].mxu0 %v933
    %v990 = vpop.f32.mrb[0].mxu0
    %v991 = vadd.f32 0.0, %v990
    %v992 = vpop.f32.mrb[0].mxu0
    %v993 = vpop.f32.mrb[0].mxu0
    %v994 = vadd.f32 0.0, %v993
    %v995 = vpop.f32.mrb[0].mxu0
    %996 = vmatprep.mubr.bf16.mxu0 0
    %997 = vmatmul.mubr.bf16.gmra.mrb[0].mxu0 %v936
    %v998 = vpop.f32.mrb[0].mxu0
    %v999 = vadd.f32 0.0, %v998
    %v1000 = vpop.f32.mrb[0].mxu0
    %v1001 = vpop.f32.mrb[0].mxu0
    %v1002 = vadd.f32 0.0, %v1001
    %v1003 = vpop.f32.mrb[0].mxu0
    %1004 = vmatprep.mubr.bf16.mxu0 0
    %1005 = vmatmul.mubr.bf16.gmra.mrb[0].mxu0 %v939
    %v1006 = vpop.f32.mrb[0].mxu0
    %v1007 = vadd.f32 0.0, %v1006
    %v1008 = vpop.f32.mrb[0].mxu0
    %v1009 = vpop.f32.mrb[0].mxu0
    %v1010 = vadd.f32 0.0, %v1009
    %v1011 = vpop.f32.mrb[0].mxu0
    %1012 = vmatprep.mubr.bf16.mxu0 0
    %1013 = vmatmul.mubr.bf16.gmra.mrb[0].mxu0 %v942
    %v1014 = vpop.f32.mrb[0].mxu0
    %v1015 = vadd.f32 0.0, %v1014
    %v1016 = vpop.f32.mrb[0].mxu0
    %v1017 = vpop.f32.mrb[0].mxu0
    %v1018 = vadd.f32 0.0, %v1017
    %v1019 = vpop.f32.mrb[0].mxu0
    %1020 = vmatprep.mubr.bf16.mxu0 0
    %1021 = vmatmul.mubr.bf16.gmra.mrb[0].mxu0 %v945
    %v1022 = vpop.f32.mrb[0].mxu0
    %v1023 = vadd.f32 0.0, %v1022
    %v1024 = vpop.f32.mrb[0].mxu0
    %v1025 = vpop.f32.mrb[0].mxu0
    %v1026 = vadd.f32 0.0, %v1025
    %v1027 = vpop.f32.mrb[0].mxu0
    %1028 = vmatprep.mubr.bf16.mxu0 0
    %1029 = vmatmul.mubr.bf16.gmra.mrb[0].mxu0 %v948
    %v1030 = vpop.f32.mrb[0].mxu0
    %v1031 = vadd.f32 0.0, %v1030
    %v1032 = vpop.f32.mrb[0].mxu0
    %v1033 = vpop.f32.mrb[0].mxu0
    %v1034 = vadd.f32 0.0, %v1033
    %v1035 = vpop.f32.mrb[0].mxu0
    %1036 = vmatprep.mubr.bf16.mxu0 0
    %1037 = vmatmul.mubr.bf16.gmra.mrb[0].mxu0 %v951
    %v1038 = vpop.f32.mrb[0].mxu0
    %v1039 = vadd.f32 0.0, %v1038
    %v1040 = vpop.f32.mrb[0].mxu0
    %v1041 = vpop.f32.mrb[0].mxu0
    %v1042 = vadd.f32 0.0, %v1041
    %v1043 = vpop.f32.mrb[0].mxu0
    %1044 = vmatprep.mubr.bf16.mxu0 0
    %1045 = vmatmul.mubr.bf16.gmra.mrb[0].mxu0 %v954
    %v1046 = vpop.f32.mrb[0].mxu0
    %v1047 = vadd.f32 0.0, %v1046
    %v1048 = vpop.f32.mrb[0].mxu0
    %v1049 = vpop.f32.mrb[0].mxu0
    %v1050 = vadd.f32 0.0, %v1049
    %v1051 = vpop.f32.mrb[0].mxu0
    %1052 = vdwg.mxu0
    %v1053 = vpack.c.bf16 %v813, %v812
    %v1054 = vpack.c.bf16 %v815, %v814
    %v1055 = vpack.c.bf16 %v817, %v816
    %v1056 = vpack.c.bf16 %v819, %v818
    %v1057 = vpack.c.bf16 %v821, %v820
    %v1058 = vpack.c.bf16 %v823, %v822
    %v1059 = vpack.c.bf16 %v825, %v824
    %v1060 = vpack.c.bf16 %v827, %v826
    %1069 = vrot.lane.b32.xlu0 %v1053, 96
    %v1070 = vpop.permute.xlu0 %1069
    %1071 = vrot.lane.b32.xlu0 %v1054, 96
    %v1072 = vpop.permute.xlu0 %1071
    %1073 = vrot.lane.b32.xlu0 %v1055, 96
    %v1074 = vpop.permute.xlu0 %1073
    %1075 = vrot.lane.b32.xlu0 %v1056, 96
    %v1076 = vpop.permute.xlu0 %1075
    %1077 = vrot.lane.b32.xlu0 %v1057, 96
    %v1078 = vpop.permute.xlu0 %1077
    %1079 = vrot.lane.b32.xlu0 %v1058, 96
    %v1080 = vpop.permute.xlu0 %1079
    %1081 = vrot.lane.b32.xlu0 %v1059, 96
    %v1082 = vpop.permute.xlu0 %1081
    %1083 = vrot.lane.b32.xlu0 %v1060, 96
    %v1084 = vpop.permute.xlu0 %1083
    %v1089 = vunpack.c.l.b16 %v48
    %v1090 = vunpack.c.l.b16 %v49
    %v1091 = vunpack.c.l.b16 %v50
    %v1092 = vunpack.c.l.b16 %v51
    %v1093 = vpack.c.b16 %v1090, %v1089
    %v1094 = vpack.c.b16 %v1092, %v1091
    %vm1097 = vcmask 261120
    %v1099 = vsel %vm1097, %v1070, 0
    %v1102 = vsel %vm1097, %v1072, 0
    %v1105 = vsel %vm1097, %v1074, 0
    %v1108 = vsel %vm1097, %v1076, 0
    %v1111 = vsel %vm1097, %v1078, 0
    %v1114 = vsel %vm1097, %v1080, 0
    %v1117 = vsel %vm1097, %v1082, 0
    %v1120 = vsel %vm1097, %v1084, 0
    %1122 = vmatprep.subr.bf16.mxu0 0
    %1123 = vmatpush1.bf16.msra.mxu0 %v1093
    %1124 = vmatprep.subr.bf16.mxu0 0
    %1125 = vmatpush1.bf16.msra.mxu0 %v1094
    %1126 = vmatprep.subr.bf16.mxu0 0
    %1127 = vmatpush1.bf16.msra.mxu0 0
    %1128 = vmatprep.subr.bf16.mxu0 0
    %1129 = vmatpush1.bf16.msra.mxu0 0
    %1130 = vmatprep.subr.bf16.mxu0 0
    %1131 = vmatpush1.bf16.msra.mxu0 0
    %1132 = vmatprep.subr.bf16.mxu0 0
    %1133 = vmatpush1.bf16.msra.mxu0 0
    %1134 = vmatprep.subr.bf16.mxu0 0
    %1135 = vmatpush1.bf16.msra.mxu0 0
    %1136 = vmatprep.subr.bf16.mxu0 0
    %1137 = vmatpush1.bf16.msra.mxu0 0
    %1138 = vmatprep.subr.bf16.mxu0 0
    %1139 = vmatpush1.bf16.msra.mxu0 0
    %1140 = vmatprep.subr.bf16.mxu0 0
    %1141 = vmatpush1.bf16.msra.mxu0 0
    %1142 = vmatprep.subr.bf16.mxu0 0
    %1143 = vmatpush1.bf16.msra.mxu0 0
    %1144 = vmatprep.subr.bf16.mxu0 0
    %1145 = vmatpush1.bf16.msra.mxu0 0
    %1146 = vmatprep.subr.bf16.mxu0 0
    %1147 = vmatpush1.bf16.msra.mxu0 0
    %1148 = vmatprep.subr.bf16.mxu0 0
    %1149 = vmatpush1.bf16.msra.mxu0 0
    %1150 = vmatprep.subr.bf16.mxu0 0
    %1151 = vmatpush1.bf16.msra.mxu0 0
    %1152 = vmatprep.subr.bf16.mxu0 0
    %1153 = vmatpush1.bf16.msra.mxu0 0
    %1154 = vmatprep.mubr.bf16.mxu0 0
    %1155 = vmatmul.mubr.bf16.gmra.mrb[0].mxu0 %v1099
    %v1156 = vpop.f32.mrb[0].mxu0
    %v1157 = vadd.f32 0.0, %v1156
    %v1158 = vpop.f32.mrb[0].mxu0
    %v1159 = vpop.f32.mrb[0].mxu0
    %v1160 = vadd.f32 0.0, %v1159
    %v1161 = vpop.f32.mrb[0].mxu0
    %1162 = vmatprep.mubr.bf16.mxu0 0
    %1163 = vmatmul.mubr.bf16.gmra.mrb[0].mxu0 %v1102
    %v1164 = vpop.f32.mrb[0].mxu0
    %v1165 = vadd.f32 0.0, %v1164
    %v1166 = vpop.f32.mrb[0].mxu0
    %v1167 = vpop.f32.mrb[0].mxu0
    %v1168 = vadd.f32 0.0, %v1167
    %v1169 = vpop.f32.mrb[0].mxu0
    %1170 = vmatprep.mubr.bf16.mxu0 0
    %1171 = vmatmul.mubr.bf16.gmra.mrb[0].mxu0 %v1105
    %v1172 = vpop.f32.mrb[0].mxu0
    %v1173 = vadd.f32 0.0, %v1172
    %v1174 = vpop.f32.mrb[0].mxu0
    %v1175 = vpop.f32.mrb[0].mxu0
    %v1176 = vadd.f32 0.0, %v1175
    %v1177 = vpop.f32.mrb[0].mxu0
    %1178 = vmatprep.mubr.bf16.mxu0 0
    %1179 = vmatmul.mubr.bf16.gmra.mrb[0].mxu0 %v1108
    %v1180 = vpop.f32.mrb[0].mxu0
    %v1181 = vadd.f32 0.0, %v1180
    %v1182 = vpop.f32.mrb[0].mxu0
    %v1183 = vpop.f32.mrb[0].mxu0
    %v1184 = vadd.f32 0.0, %v1183
    %v1185 = vpop.f32.mrb[0].mxu0
    %1186 = vmatprep.mubr.bf16.mxu0 0
    %1187 = vmatmul.mubr.bf16.gmra.mrb[0].mxu0 %v1111
    %v1188 = vpop.f32.mrb[0].mxu0
    %v1189 = vadd.f32 0.0, %v1188
    %v1190 = vpop.f32.mrb[0].mxu0
    %v1191 = vpop.f32.mrb[0].mxu0
    %v1192 = vadd.f32 0.0, %v1191
    %v1193 = vpop.f32.mrb[0].mxu0
    %1194 = vmatprep.mubr.bf16.mxu0 0
    %1195 = vmatmul.mubr.bf16.gmra.mrb[0].mxu0 %v1114
    %v1196 = vpop.f32.mrb[0].mxu0
    %v1197 = vadd.f32 0.0, %v1196
    %v1198 = vpop.f32.mrb[0].mxu0
    %v1199 = vpop.f32.mrb[0].mxu0
    %v1200 = vadd.f32 0.0, %v1199
    %v1201 = vpop.f32.mrb[0].mxu0
    %1202 = vmatprep.mubr.bf16.mxu0 0
    %1203 = vmatmul.mubr.bf16.gmra.mrb[0].mxu0 %v1117
    %v1204 = vpop.f32.mrb[0].mxu0
    %v1205 = vadd.f32 0.0, %v1204
    %v1206 = vpop.f32.mrb[0].mxu0
    %v1207 = vpop.f32.mrb[0].mxu0
    %v1208 = vadd.f32 0.0, %v1207
    %v1209 = vpop.f32.mrb[0].mxu0
    %1210 = vmatprep.mubr.bf16.mxu0 0
    %1211 = vmatmul.mubr.bf16.gmra.mrb[0].mxu0 %v1120
    %v1212 = vpop.f32.mrb[0].mxu0
    %v1213 = vadd.f32 0.0, %v1212
    %v1214 = vpop.f32.mrb[0].mxu0
    %v1215 = vpop.f32.mrb[0].mxu0
    %v1216 = vadd.f32 0.0, %v1215
    %v1217 = vpop.f32.mrb[0].mxu0
    %1218 = vdwg.mxu0
    %v1219 = vadd.f32 %v991, %v1157
    %v1220 = vadd.f32 %v994, %v1160
    %v1221 = vadd.f32 %v999, %v1165
    %v1222 = vadd.f32 %v1002, %v1168
    %v1223 = vadd.f32 %v1007, %v1173
    %v1224 = vadd.f32 %v1010, %v1176
    %v1225 = vadd.f32 %v1015, %v1181
    %v1226 = vadd.f32 %v1018, %v1184
    %v1227 = vadd.f32 %v1023, %v1189
    %v1228 = vadd.f32 %v1026, %v1192
    %v1229 = vadd.f32 %v1031, %v1197
    %v1230 = vadd.f32 %v1034, %v1200
    %v1231 = vadd.f32 %v1039, %v1205
    %v1232 = vadd.f32 %v1042, %v1208
    %v1233 = vadd.f32 %v1047, %v1213
    %v1234 = vadd.f32 %v1050, %v1216
    %v1235 = vxor.u32 %v1219, 2147483648
    %v1236 = vxor.u32 %v1220, 2147483648
    %v1237 = vxor.u32 %v1221, 2147483648
    %v1238 = vxor.u32 %v1222, 2147483648
    %v1239 = vxor.u32 %v1223, 2147483648
    %v1240 = vxor.u32 %v1224, 2147483648
    %v1241 = vxor.u32 %v1225, 2147483648
    %v1242 = vxor.u32 %v1226, 2147483648
    %v1243 = vxor.u32 %v1227, 2147483648
    %v1244 = vxor.u32 %v1228, 2147483648
    %v1245 = vxor.u32 %v1229, 2147483648
    %v1246 = vxor.u32 %v1230, 2147483648
    %v1247 = vxor.u32 %v1231, 2147483648
    %v1248 = vxor.u32 %v1232, 2147483648
    %v1249 = vxor.u32 %v1233, 2147483648
    %v1250 = vxor.u32 %v1234, 2147483648
    %v1251 = vmul.f32 %v1235, 1.442695
    %v1252 = vpow.pop %v1251
    %v1253 = vmul.f32 %v1236, 1.442695
    %v1254 = vpow.pop %v1253
    %v1255 = vmul.f32 %v1237, 1.442695
    %v1256 = vpow.pop %v1255
    %v1257 = vmul.f32 %v1238, 1.442695
    %v1258 = vpow.pop %v1257
    %v1259 = vmul.f32 %v1239, 1.442695
    %v1260 = vpow.pop %v1259
    %v1261 = vmul.f32 %v1240, 1.442695
    %v1262 = vpow.pop %v1261
    %v1263 = vmul.f32 %v1241, 1.442695
    %v1264 = vpow.pop %v1263
    %v1265 = vmul.f32 %v1242, 1.442695
    %v1266 = vpow.pop %v1265
    %v1267 = vmul.f32 %v1243, 1.442695
    %v1268 = vpow.pop %v1267
    %v1269 = vmul.f32 %v1244, 1.442695
    %v1270 = vpow.pop %v1269
    %v1271 = vmul.f32 %v1245, 1.442695
    %v1272 = vpow.pop %v1271
    %v1273 = vmul.f32 %v1246, 1.442695
    %v1274 = vpow.pop %v1273
    %v1275 = vmul.f32 %v1247, 1.442695
    %v1276 = vpow.pop %v1275
    %v1277 = vmul.f32 %v1248, 1.442695
    %v1278 = vpow.pop %v1277
    %v1279 = vmul.f32 %v1249, 1.442695
    %v1280 = vpow.pop %v1279
    %v1281 = vmul.f32 %v1250, 1.442695
    %v1282 = vpow.pop %v1281
    %v1283 = vadd.f32 %v1252, 1.0
    %v1284 = vadd.f32 %v1254, 1.0
    %v1285 = vadd.f32 %v1256, 1.0
    %v1286 = vadd.f32 %v1258, 1.0
    %v1287 = vadd.f32 %v1260, 1.0
    %v1288 = vadd.f32 %v1262, 1.0
    %v1289 = vadd.f32 %v1264, 1.0
    %v1290 = vadd.f32 %v1266, 1.0
    %v1291 = vadd.f32 %v1268, 1.0
    %v1292 = vadd.f32 %v1270, 1.0
    %v1293 = vadd.f32 %v1272, 1.0
    %v1294 = vadd.f32 %v1274, 1.0
    %v1295 = vadd.f32 %v1276, 1.0
    %v1296 = vadd.f32 %v1278, 1.0
    %v1297 = vadd.f32 %v1280, 1.0
    %v1298 = vadd.f32 %v1282, 1.0
    %v1299 = vrcp.pop %v1283
    %v1300 = vmul.f32 1.0, %v1299
    %v1301 = vrcp.pop %v1284
    %v1302 = vmul.f32 1.0, %v1301
    %v1303 = vrcp.pop %v1285
    %v1304 = vmul.f32 1.0, %v1303
    %v1305 = vrcp.pop %v1286
    %v1306 = vmul.f32 1.0, %v1305
    %v1307 = vrcp.pop %v1287
    %v1308 = vmul.f32 1.0, %v1307
    %v1309 = vrcp.pop %v1288
    %v1310 = vmul.f32 1.0, %v1309
    %v1311 = vrcp.pop %v1289
    %v1312 = vmul.f32 1.0, %v1311
    %v1313 = vrcp.pop %v1290
    %v1314 = vmul.f32 1.0, %v1313
    %v1315 = vrcp.pop %v1291
    %v1316 = vmul.f32 1.0, %v1315
    %v1317 = vrcp.pop %v1292
    %v1318 = vmul.f32 1.0, %v1317
    %v1319 = vrcp.pop %v1293
    %v1320 = vmul.f32 1.0, %v1319
    %v1321 = vrcp.pop %v1294
    %v1322 = vmul.f32 1.0, %v1321
    %v1323 = vrcp.pop %v1295
    %v1324 = vmul.f32 1.0, %v1323
    %v1325 = vrcp.pop %v1296
    %v1326 = vmul.f32 1.0, %v1325
    %v1327 = vrcp.pop %v1297
    %v1328 = vmul.f32 1.0, %v1327
    %v1329 = vrcp.pop %v1298
    %v1330 = vmul.f32 1.0, %v1329
    %1331 = vrot.lane.b32.xlu0 %v57, 64
    %v1332 = vpop.permute.xlu0 %1331
    %v1334 = vadd.f32 %v1157, %v1332
    %v1335 = vadd.f32 %v1160, %v1332
    %v1336 = vadd.f32 %v1165, %v1332
    %v1337 = vadd.f32 %v1168, %v1332
    %v1338 = vadd.f32 %v1173, %v1332
    %v1339 = vadd.f32 %v1176, %v1332
    %v1340 = vadd.f32 %v1181, %v1332
    %v1341 = vadd.f32 %v1184, %v1332
    %v1342 = vadd.f32 %v1189, %v1332
    %v1343 = vadd.f32 %v1192, %v1332
    %v1344 = vadd.f32 %v1197, %v1332
    %v1345 = vadd.f32 %v1200, %v1332
    %v1346 = vadd.f32 %v1205, %v1332
    %v1347 = vadd.f32 %v1208, %v1332
    %v1348 = vadd.f32 %v1213, %v1332
    %v1349 = vadd.f32 %v1216, %v1332
    %1366 = vrot.lane.b32.xlu0 %v1334, 64
    %v1367 = vpop.permute.xlu0 %1366
    %1368 = vrot.lane.b32.xlu0 %v1335, 64
    %v1369 = vpop.permute.xlu0 %1368
    %1370 = vrot.lane.b32.xlu0 %v1336, 64
    %v1371 = vpop.permute.xlu0 %1370
    %1372 = vrot.lane.b32.xlu0 %v1337, 64
    %v1373 = vpop.permute.xlu0 %1372
    %1374 = vrot.lane.b32.xlu0 %v1338, 64
    %v1375 = vpop.permute.xlu0 %1374
    %1376 = vrot.lane.b32.xlu0 %v1339, 64
    %v1377 = vpop.permute.xlu0 %1376
    %1378 = vrot.lane.b32.xlu0 %v1340, 64
    %v1379 = vpop.permute.xlu0 %1378
    %1380 = vrot.lane.b32.xlu0 %v1341, 64
    %v1381 = vpop.permute.xlu0 %1380
    %1382 = vrot.lane.b32.xlu0 %v1342, 64
    %v1383 = vpop.permute.xlu0 %1382
    %1384 = vrot.lane.b32.xlu0 %v1343, 64
    %v1385 = vpop.permute.xlu0 %1384
    %1386 = vrot.lane.b32.xlu0 %v1344, 64
    %v1387 = vpop.permute.xlu0 %1386
    %1388 = vrot.lane.b32.xlu0 %v1345, 64
    %v1389 = vpop.permute.xlu0 %1388
    %1390 = vrot.lane.b32.xlu0 %v1346, 64
    %v1391 = vpop.permute.xlu0 %1390
    %1392 = vrot.lane.b32.xlu0 %v1347, 64
    %v1393 = vpop.permute.xlu0 %1392
    %1394 = vrot.lane.b32.xlu0 %v1348, 64
    %v1395 = vpop.permute.xlu0 %1394
    %1396 = vrot.lane.b32.xlu0 %v1349, 64
    %v1397 = vpop.permute.xlu0 %1396
    %v1414 = vmul.f32 %v1300, %v1367
    %v1415 = vmul.f32 %v1302, %v1369
    %v1416 = vmul.f32 %v1304, %v1371
    %v1417 = vmul.f32 %v1306, %v1373
    %v1418 = vmul.f32 %v1308, %v1375
    %v1419 = vmul.f32 %v1310, %v1377
    %v1420 = vmul.f32 %v1312, %v1379
    %v1421 = vmul.f32 %v1314, %v1381
    %v1422 = vmul.f32 %v1316, %v1383
    %v1423 = vmul.f32 %v1318, %v1385
    %v1424 = vmul.f32 %v1320, %v1387
    %v1425 = vmul.f32 %v1322, %v1389
    %v1426 = vmul.f32 %v1324, %v1391
    %v1427 = vmul.f32 %v1326, %v1393
    %v1428 = vmul.f32 %v1328, %v1395
    %v1429 = vmul.f32 %v1330, %v1397
    %1446 = vrot.lane.b32.xlu0 %v1414, 64
    %v1447 = vpop.permute.xlu0 %1446
    %1448 = vrot.lane.b32.xlu0 %v1415, 64
    %v1449 = vpop.permute.xlu0 %1448
    %1450 = vrot.lane.b32.xlu0 %v1416, 64
    %v1451 = vpop.permute.xlu0 %1450
    %1452 = vrot.lane.b32.xlu0 %v1417, 64
    %v1453 = vpop.permute.xlu0 %1452
    %1454 = vrot.lane.b32.xlu0 %v1418, 64
    %v1455 = vpop.permute.xlu0 %1454
    %1456 = vrot.lane.b32.xlu0 %v1419, 64
    %v1457 = vpop.permute.xlu0 %1456
    %1458 = vrot.lane.b32.xlu0 %v1420, 64
    %v1459 = vpop.permute.xlu0 %1458
    %1460 = vrot.lane.b32.xlu0 %v1421, 64
    %v1461 = vpop.permute.xlu0 %1460
    %1462 = vrot.lane.b32.xlu0 %v1422, 64
    %v1463 = vpop.permute.xlu0 %1462
    %1464 = vrot.lane.b32.xlu0 %v1423, 64
    %v1465 = vpop.permute.xlu0 %1464
    %1466 = vrot.lane.b32.xlu0 %v1424, 64
    %v1467 = vpop.permute.xlu0 %1466
    %1468 = vrot.lane.b32.xlu0 %v1425, 64
    %v1469 = vpop.permute.xlu0 %1468
    %1470 = vrot.lane.b32.xlu0 %v1426, 64
    %v1471 = vpop.permute.xlu0 %1470
    %1472 = vrot.lane.b32.xlu0 %v1427, 64
    %v1473 = vpop.permute.xlu0 %1472
    %1474 = vrot.lane.b32.xlu0 %v1428, 64
    %v1475 = vpop.permute.xlu0 %1474
    %1476 = vrot.lane.b32.xlu0 %v1429, 64
    %v1477 = vpop.permute.xlu0 %1476
    %v1494 = vadd.f32 %v991, %v1447
    %v1495 = vadd.f32 %v994, %v1449
    %v1496 = vadd.f32 %v999, %v1451
    %v1497 = vadd.f32 %v1002, %v1453
    %v1498 = vadd.f32 %v1007, %v1455
    %v1499 = vadd.f32 %v1010, %v1457
    %v1500 = vadd.f32 %v1015, %v1459
    %v1501 = vadd.f32 %v1018, %v1461
    %v1502 = vadd.f32 %v1023, %v1463
    %v1503 = vadd.f32 %v1026, %v1465
    %v1504 = vadd.f32 %v1031, %v1467
    %v1505 = vadd.f32 %v1034, %v1469
    %v1506 = vadd.f32 %v1039, %v1471
    %v1507 = vadd.f32 %v1042, %v1473
    %v1508 = vadd.f32 %v1047, %v1475
    %v1509 = vadd.f32 %v1050, %v1477
    %v1510 = vtanh.pop %v1494
    %v1511 = vtanh.pop %v1495
    %v1512 = vtanh.pop %v1496
    %v1513 = vtanh.pop %v1497
    %v1514 = vtanh.pop %v1498
    %v1515 = vtanh.pop %v1499
    %v1516 = vtanh.pop %v1500
    %v1517 = vtanh.pop %v1501
    %v1518 = vtanh.pop %v1502
    %v1519 = vtanh.pop %v1503
    %v1520 = vtanh.pop %v1504
    %v1521 = vtanh.pop %v1505
    %v1522 = vtanh.pop %v1506
    %v1523 = vtanh.pop %v1507
    %v1524 = vtanh.pop %v1508
    %v1525 = vtanh.pop %v1509
    %v1526 = vsub.f32 1.0, %v1300
    %v1527 = vsub.f32 1.0, %v1302
    %v1528 = vsub.f32 1.0, %v1304
    %v1529 = vsub.f32 1.0, %v1306
    %v1530 = vsub.f32 1.0, %v1308
    %v1531 = vsub.f32 1.0, %v1310
    %v1532 = vsub.f32 1.0, %v1312
    %v1533 = vsub.f32 1.0, %v1314
    %v1534 = vsub.f32 1.0, %v1316
    %v1535 = vsub.f32 1.0, %v1318
    %v1536 = vsub.f32 1.0, %v1320
    %v1537 = vsub.f32 1.0, %v1322
    %v1538 = vsub.f32 1.0, %v1324
    %v1539 = vsub.f32 1.0, %v1326
    %v1540 = vsub.f32 1.0, %v1328
    %v1541 = vsub.f32 1.0, %v1330
    %1558 = vrot.lane.b32.xlu0 %v1510, 96
    %v1559 = vpop.permute.xlu0 %1558
    %1560 = vrot.lane.b32.xlu0 %v1511, 96
    %v1561 = vpop.permute.xlu0 %1560
    %1562 = vrot.lane.b32.xlu0 %v1512, 96
    %v1563 = vpop.permute.xlu0 %1562
    %1564 = vrot.lane.b32.xlu0 %v1513, 96
    %v1565 = vpop.permute.xlu0 %1564
    %1566 = vrot.lane.b32.xlu0 %v1514, 96
    %v1567 = vpop.permute.xlu0 %1566
    %1568 = vrot.lane.b32.xlu0 %v1515, 96
    %v1569 = vpop.permute.xlu0 %1568
    %1570 = vrot.lane.b32.xlu0 %v1516, 96
    %v1571 = vpop.permute.xlu0 %1570
    %1572 = vrot.lane.b32.xlu0 %v1517, 96
    %v1573 = vpop.permute.xlu0 %1572
    %1574 = vrot.lane.b32.xlu0 %v1518, 96
    %v1575 = vpop.permute.xlu0 %1574
    %1576 = vrot.lane.b32.xlu0 %v1519, 96
    %v1577 = vpop.permute.xlu0 %1576
    %1578 = vrot.lane.b32.xlu0 %v1520, 96
    %v1579 = vpop.permute.xlu0 %1578
    %1580 = vrot.lane.b32.xlu0 %v1521, 96
    %v1581 = vpop.permute.xlu0 %1580
    %1582 = vrot.lane.b32.xlu0 %v1522, 96
    %v1583 = vpop.permute.xlu0 %1582
    %1584 = vrot.lane.b32.xlu0 %v1523, 96
    %v1585 = vpop.permute.xlu0 %1584
    %1586 = vrot.lane.b32.xlu0 %v1524, 96
    %v1587 = vpop.permute.xlu0 %1586
    %1588 = vrot.lane.b32.xlu0 %v1525, 96
    %v1589 = vpop.permute.xlu0 %1588
    %v1606 = vmul.f32 %v1526, %v1559
    %v1607 = vmul.f32 %v1527, %v1561
    %v1608 = vmul.f32 %v1528, %v1563
    %v1609 = vmul.f32 %v1529, %v1565
    %v1610 = vmul.f32 %v1530, %v1567
    %v1611 = vmul.f32 %v1531, %v1569
    %v1612 = vmul.f32 %v1532, %v1571
    %v1613 = vmul.f32 %v1533, %v1573
    %v1614 = vmul.f32 %v1534, %v1575
    %v1615 = vmul.f32 %v1535, %v1577
    %v1616 = vmul.f32 %v1536, %v1579
    %v1617 = vmul.f32 %v1537, %v1581
    %v1618 = vmul.f32 %v1538, %v1583
    %v1619 = vmul.f32 %v1539, %v1585
    %v1620 = vmul.f32 %v1540, %v1587
    %v1621 = vmul.f32 %v1541, %v1589
    %v1622 = vmul.f32 %v1300, %v812
    %v1623 = vmul.f32 %v1302, %v813
    %v1624 = vmul.f32 %v1304, %v814
    %v1625 = vmul.f32 %v1306, %v815
    %v1626 = vmul.f32 %v1308, %v816
    %v1627 = vmul.f32 %v1310, %v817
    %v1628 = vmul.f32 %v1312, %v818
    %v1629 = vmul.f32 %v1314, %v819
    %v1630 = vmul.f32 %v1316, %v820
    %v1631 = vmul.f32 %v1318, %v821
    %v1632 = vmul.f32 %v1320, %v822
    %v1633 = vmul.f32 %v1322, %v823
    %v1634 = vmul.f32 %v1324, %v824
    %v1635 = vmul.f32 %v1326, %v825
    %v1636 = vmul.f32 %v1328, %v826
    %v1637 = vmul.f32 %v1330, %v827
    %v1638 = vadd.f32 %v1606, %v1622
    %v1639 = vadd.f32 %v1607, %v1623
    %v1640 = vadd.f32 %v1608, %v1624
    %v1641 = vadd.f32 %v1609, %v1625
    %v1642 = vadd.f32 %v1610, %v1626
    %v1643 = vadd.f32 %v1611, %v1627
    %v1644 = vadd.f32 %v1612, %v1628
    %v1645 = vadd.f32 %v1613, %v1629
    %v1646 = vadd.f32 %v1614, %v1630
    %v1647 = vadd.f32 %v1615, %v1631
    %v1648 = vadd.f32 %v1616, %v1632
    %v1649 = vadd.f32 %v1617, %v1633
    %v1650 = vadd.f32 %v1618, %v1634
    %v1651 = vadd.f32 %v1619, %v1635
    %v1652 = vadd.f32 %v1620, %v1636
    %v1653 = vadd.f32 %v1621, %v1637
    %1654 = vset.pattern.permute.xlu0 2
    %1655 = vperm.xlu0 %1654, %v28
    %v1656 = vpop.permute.xlu0 %1655
    %1657 = vset.pattern.permute.xlu0 2
    %1658 = vperm.xlu0 %1657, %v29
    %v1659 = vpop.permute.xlu0 %1658
    %1660 = vset.pattern.permute.xlu0 2
    %1661 = vperm.xlu0 %1660, %v30
    %v1662 = vpop.permute.xlu0 %1661
    %1663 = vset.pattern.permute.xlu0 2
    %1664 = vperm.xlu0 %1663, %v31
    %v1665 = vpop.permute.xlu0 %1664
    %1666 = vset.pattern.permute.xlu0 2
    %1667 = vperm.xlu0 %1666, %v32
    %v1668 = vpop.permute.xlu0 %1667
    %1669 = vset.pattern.permute.xlu0 2
    %1670 = vperm.xlu0 %1669, %v33
    %v1671 = vpop.permute.xlu0 %1670
    %1672 = vset.pattern.permute.xlu0 2
    %1673 = vperm.xlu0 %1672, %v34
    %v1674 = vpop.permute.xlu0 %1673
    %1675 = vset.pattern.permute.xlu0 2
    %1676 = vperm.xlu0 %1675, %v35
    %v1677 = vpop.permute.xlu0 %1676
    %1678 = vset.pattern.permute.xlu0 2
    %1679 = vperm.xlu0 %1678, %v36
    %v1680 = vpop.permute.xlu0 %1679
    %1681 = vset.pattern.permute.xlu0 2
    %1682 = vperm.xlu0 %1681, %v37
    %v1683 = vpop.permute.xlu0 %1682
    %1684 = vset.pattern.permute.xlu0 2
    %1685 = vperm.xlu0 %1684, %v38
    %v1686 = vpop.permute.xlu0 %1685
    %1687 = vset.pattern.permute.xlu0 2
    %1688 = vperm.xlu0 %1687, %v39
    %v1689 = vpop.permute.xlu0 %1688
    %1690 = vset.pattern.permute.xlu0 2
    %1691 = vperm.xlu0 %1690, %v40
    %v1692 = vpop.permute.xlu0 %1691
    %1693 = vset.pattern.permute.xlu0 2
    %1694 = vperm.xlu0 %1693, %v41
    %v1695 = vpop.permute.xlu0 %1694
    %1696 = vset.pattern.permute.xlu0 2
    %1697 = vperm.xlu0 %1696, %v42
    %v1698 = vpop.permute.xlu0 %1697
    %1699 = vset.pattern.permute.xlu0 2
    %1700 = vperm.xlu0 %1699, %v43
    %v1701 = vpop.permute.xlu0 %1700
    %vm1702 = vcmp.eq.s32.totalorder %v1656, %v45
    %vm1703 = vcmp.eq.s32.totalorder %v1659, %v45
    %vm1704 = vcmp.eq.s32.totalorder %v1662, %v45
    %vm1705 = vcmp.eq.s32.totalorder %v1665, %v45
    %vm1706 = vcmp.eq.s32.totalorder %v1668, %v45
    %vm1707 = vcmp.eq.s32.totalorder %v1671, %v45
    %vm1708 = vcmp.eq.s32.totalorder %v1674, %v45
    %vm1709 = vcmp.eq.s32.totalorder %v1677, %v45
    %vm1710 = vcmp.eq.s32.totalorder %v1680, %v45
    %vm1711 = vcmp.eq.s32.totalorder %v1683, %v45
    %vm1712 = vcmp.eq.s32.totalorder %v1686, %v45
    %vm1713 = vcmp.eq.s32.totalorder %v1689, %v45
    %vm1714 = vcmp.eq.s32.totalorder %v1692, %v45
    %vm1715 = vcmp.eq.s32.totalorder %v1695, %v45
    %vm1716 = vcmp.eq.s32.totalorder %v1698, %v45
    %vm1717 = vcmp.eq.s32.totalorder %v1701, %v45
    %v1718 = vsel %vm1702, 1, 0
    %v1719 = vsel %vm1703, 1, 0
    %v1720 = vsel %vm1704, 1, 0
    %v1721 = vsel %vm1705, 1, 0
    %v1722 = vsel %vm1706, 1, 0
    %v1723 = vsel %vm1707, 1, 0
    %v1724 = vsel %vm1708, 1, 0
    %v1725 = vsel %vm1709, 1, 0
    %v1726 = vsel %vm1710, 1, 0
    %v1727 = vsel %vm1711, 1, 0
    %v1728 = vsel %vm1712, 1, 0
    %v1729 = vsel %vm1713, 1, 0
    %v1730 = vsel %vm1714, 1, 0
    %v1731 = vsel %vm1715, 1, 0
    %v1732 = vsel %vm1716, 1, 0
    %v1733 = vsel %vm1717, 1, 0
    %v1734 = vcvt.s32.f32 %v1718
    %v1735 = vcvt.s32.f32 %v1719
    %v1736 = vcvt.s32.f32 %v1720
    %v1737 = vcvt.s32.f32 %v1721
    %v1738 = vcvt.s32.f32 %v1722
    %v1739 = vcvt.s32.f32 %v1723
    %v1740 = vcvt.s32.f32 %v1724
    %v1741 = vcvt.s32.f32 %v1725
    %v1742 = vcvt.s32.f32 %v1726
    %v1743 = vcvt.s32.f32 %v1727
    %v1744 = vcvt.s32.f32 %v1728
    %v1745 = vcvt.s32.f32 %v1729
    %v1746 = vcvt.s32.f32 %v1730
    %v1747 = vcvt.s32.f32 %v1731
    %v1748 = vcvt.s32.f32 %v1732
    %v1749 = vcvt.s32.f32 %v1733
    %v1750 = vpack.c.bf16 %v1735, %v1734
    %v1751 = vpack.c.bf16 %v1737, %v1736
    %v1752 = vpack.c.bf16 %v1739, %v1738
    %v1753 = vpack.c.bf16 %v1741, %v1740
    %v1754 = vpack.c.bf16 %v1743, %v1742
    %v1755 = vpack.c.bf16 %v1745, %v1744
    %v1756 = vpack.c.bf16 %v1747, %v1746
    %v1757 = vpack.c.bf16 %v1749, %v1748
    %v1759 = vsel %vm171, %v1750, 0
    %v1762 = vsel %vm171, %v1751, 0
    %v1765 = vsel %vm171, %v1752, 0
    %v1768 = vsel %vm171, %v1753, 0
    %v1771 = vsel %vm171, %v1754, 0
    %v1774 = vsel %vm171, %v1755, 0
    %v1777 = vsel %vm171, %v1756, 0
    %v1780 = vsel %vm171, %v1757, 0
    %1782 = vmatprep.subr.bf16.mxu0 0
    %1783 = vmatpush1.bf16.msra.mxu0 %v401
    %1784 = vmatprep.subr.bf16.mxu0 0
    %1785 = vmatpush1.bf16.msra.mxu0 0
    %1786 = vmatprep.subr.bf16.mxu0 0
    %1787 = vmatpush1.bf16.msra.mxu0 0
    %1788 = vmatprep.subr.bf16.mxu0 0
    %1789 = vmatpush1.bf16.msra.mxu0 0
    %1790 = vmatprep.subr.bf16.mxu0 0
    %1791 = vmatpush1.bf16.msra.mxu0 0
    %1792 = vmatprep.subr.bf16.mxu0 0
    %1793 = vmatpush1.bf16.msra.mxu0 0
    %1794 = vmatprep.subr.bf16.mxu0 0
    %1795 = vmatpush1.bf16.msra.mxu0 0
    %1796 = vmatprep.subr.bf16.mxu0 0
    %1797 = vmatpush1.bf16.msra.mxu0 0
    %1798 = vmatprep.subr.bf16.mxu0 0
    %1799 = vmatpush1.bf16.msra.mxu0 0
    %1800 = vmatprep.subr.bf16.mxu0 0
    %1801 = vmatpush1.bf16.msra.mxu0 0
    %1802 = vmatprep.subr.bf16.mxu0 0
    %1803 = vmatpush1.bf16.msra.mxu0 0
    %1804 = vmatprep.subr.bf16.mxu0 0
    %1805 = vmatpush1.bf16.msra.mxu0 0
    %1806 = vmatprep.subr.bf16.mxu0 0
    %1807 = vmatpush1.bf16.msra.mxu0 0
    %1808 = vmatprep.subr.bf16.mxu0 0
    %1809 = vmatpush1.bf16.msra.mxu0 0
    %1810 = vmatprep.subr.bf16.mxu0 0
    %1811 = vmatpush1.bf16.msra.mxu0 0
    %1812 = vmatprep.subr.bf16.mxu0 0
    %1813 = vmatpush1.bf16.msra.mxu0 0
    %1814 = vmatprep.mubr.bf16.mxu0 0
    %1815 = vmatmul.mubr.bf16.gmra.mrb[0].mxu0 %v1759
    %v1816 = vpop.f32.mrb[0].mxu0
    %v1817 = vadd.f32 0.0, %v1816
    %v1818 = vpop.f32.mrb[0].mxu0
    %v1819 = vpop.f32.mrb[0].mxu0
    %v1820 = vadd.f32 0.0, %v1819
    %v1821 = vpop.f32.mrb[0].mxu0
    %1822 = vmatprep.mubr.bf16.mxu0 0
    %1823 = vmatmul.mubr.bf16.gmra.mrb[0].mxu0 %v1762
    %v1824 = vpop.f32.mrb[0].mxu0
    %v1825 = vadd.f32 0.0, %v1824
    %v1826 = vpop.f32.mrb[0].mxu0
    %v1827 = vpop.f32.mrb[0].mxu0
    %v1828 = vadd.f32 0.0, %v1827
    %v1829 = vpop.f32.mrb[0].mxu0
    %1830 = vmatprep.mubr.bf16.mxu0 0
    %1831 = vmatmul.mubr.bf16.gmra.mrb[0].mxu0 %v1765
    %v1832 = vpop.f32.mrb[0].mxu0
    %v1833 = vadd.f32 0.0, %v1832
    %v1834 = vpop.f32.mrb[0].mxu0
    %v1835 = vpop.f32.mrb[0].mxu0
    %v1836 = vadd.f32 0.0, %v1835
    %v1837 = vpop.f32.mrb[0].mxu0
    %1838 = vmatprep.mubr.bf16.mxu0 0
    %1839 = vmatmul.mubr.bf16.gmra.mrb[0].mxu0 %v1768
    %v1840 = vpop.f32.mrb[0].mxu0
    %v1841 = vadd.f32 0.0, %v1840
    %v1842 = vpop.f32.mrb[0].mxu0
    %v1843 = vpop.f32.mrb[0].mxu0
    %v1844 = vadd.f32 0.0, %v1843
    %v1845 = vpop.f32.mrb[0].mxu0
    %1846 = vmatprep.mubr.bf16.mxu0 0
    %1847 = vmatmul.mubr.bf16.gmra.mrb[0].mxu0 %v1771
    %v1848 = vpop.f32.mrb[0].mxu0
    %v1849 = vadd.f32 0.0, %v1848
    %v1850 = vpop.f32.mrb[0].mxu0
    %v1851 = vpop.f32.mrb[0].mxu0
    %v1852 = vadd.f32 0.0, %v1851
    %v1853 = vpop.f32.mrb[0].mxu0
    %1854 = vmatprep.mubr.bf16.mxu0 0
    %1855 = vmatmul.mubr.bf16.gmra.mrb[0].mxu0 %v1774
    %v1856 = vpop.f32.mrb[0].mxu0
    %v1857 = vadd.f32 0.0, %v1856
    %v1858 = vpop.f32.mrb[0].mxu0
    %v1859 = vpop.f32.mrb[0].mxu0
    %v1860 = vadd.f32 0.0, %v1859
    %v1861 = vpop.f32.mrb[0].mxu0
    %1862 = vmatprep.mubr.bf16.mxu0 0
    %1863 = vmatmul.mubr.bf16.gmra.mrb[0].mxu0 %v1777
    %v1864 = vpop.f32.mrb[0].mxu0
    %v1865 = vadd.f32 0.0, %v1864
    %v1866 = vpop.f32.mrb[0].mxu0
    %v1867 = vpop.f32.mrb[0].mxu0
    %v1868 = vadd.f32 0.0, %v1867
    %v1869 = vpop.f32.mrb[0].mxu0
    %1870 = vmatprep.mubr.bf16.mxu0 0
    %1871 = vmatmul.mubr.bf16.gmra.mrb[0].mxu0 %v1780
    %v1872 = vpop.f32.mrb[0].mxu0
    %v1873 = vadd.f32 0.0, %v1872
    %v1874 = vpop.f32.mrb[0].mxu0
    %v1875 = vpop.f32.mrb[0].mxu0
    %v1876 = vadd.f32 0.0, %v1875
    %v1877 = vpop.f32.mrb[0].mxu0
    %1878 = vdwg.mxu0
    %v1879 = vpack.c.bf16 %v1639, %v1638
    %v1880 = vpack.c.bf16 %v1641, %v1640
    %v1881 = vpack.c.bf16 %v1643, %v1642
    %v1882 = vpack.c.bf16 %v1645, %v1644
    %v1883 = vpack.c.bf16 %v1647, %v1646
    %v1884 = vpack.c.bf16 %v1649, %v1648
    %v1885 = vpack.c.bf16 %v1651, %v1650
    %v1886 = vpack.c.bf16 %v1653, %v1652
    %1895 = vrot.lane.b32.xlu0 %v1879, 96
    %v1896 = vpop.permute.xlu0 %1895
    %1897 = vrot.lane.b32.xlu0 %v1880, 96
    %v1898 = vpop.permute.xlu0 %1897
    %1899 = vrot.lane.b32.xlu0 %v1881, 96
    %v1900 = vpop.permute.xlu0 %1899
    %1901 = vrot.lane.b32.xlu0 %v1882, 96
    %v1902 = vpop.permute.xlu0 %1901
    %1903 = vrot.lane.b32.xlu0 %v1883, 96
    %v1904 = vpop.permute.xlu0 %1903
    %1905 = vrot.lane.b32.xlu0 %v1884, 96
    %v1906 = vpop.permute.xlu0 %1905
    %1907 = vrot.lane.b32.xlu0 %v1885, 96
    %v1908 = vpop.permute.xlu0 %1907
    %1909 = vrot.lane.b32.xlu0 %v1886, 96
    %v1910 = vpop.permute.xlu0 %1909
    %v1912 = vsel %vm1097, %v1896, 0
    %v1915 = vsel %vm1097, %v1898, 0
    %v1918 = vsel %vm1097, %v1900, 0
    %v1921 = vsel %vm1097, %v1902, 0
    %v1924 = vsel %vm1097, %v1904, 0
    %v1927 = vsel %vm1097, %v1906, 0
    %v1930 = vsel %vm1097, %v1908, 0
    %v1933 = vsel %vm1097, %v1910, 0
    %1935 = vmatprep.subr.bf16.mxu0 0
    %1936 = vmatpush1.bf16.msra.mxu0 %v1093
    %1937 = vmatprep.subr.bf16.mxu0 0
    %1938 = vmatpush1.bf16.msra.mxu0 %v1094
    %1939 = vmatprep.subr.bf16.mxu0 0
    %1940 = vmatpush1.bf16.msra.mxu0 0
    %1941 = vmatprep.subr.bf16.mxu0 0
    %1942 = vmatpush1.bf16.msra.mxu0 0
    %1943 = vmatprep.subr.bf16.mxu0 0
    %1944 = vmatpush1.bf16.msra.mxu0 0
    %1945 = vmatprep.subr.bf16.mxu0 0
    %1946 = vmatpush1.bf16.msra.mxu0 0
    %1947 = vmatprep.subr.bf16.mxu0 0
    %1948 = vmatpush1.bf16.msra.mxu0 0
    %1949 = vmatprep.subr.bf16.mxu0 0
    %1950 = vmatpush1.bf16.msra.mxu0 0
    %1951 = vmatprep.subr.bf16.mxu0 0
    %1952 = vmatpush1.bf16.msra.mxu0 0
    %1953 = vmatprep.subr.bf16.mxu0 0
    %1954 = vmatpush1.bf16.msra.mxu0 0
    %1955 = vmatprep.subr.bf16.mxu0 0
    %1956 = vmatpush1.bf16.msra.mxu0 0
    %1957 = vmatprep.subr.bf16.mxu0 0
    %1958 = vmatpush1.bf16.msra.mxu0 0
    %1959 = vmatprep.subr.bf16.mxu0 0
    %1960 = vmatpush1.bf16.msra.mxu0 0
    %1961 = vmatprep.subr.bf16.mxu0 0
    %1962 = vmatpush1.bf16.msra.mxu0 0
    %1963 = vmatprep.subr.bf16.mxu0 0
    %1964 = vmatpush1.bf16.msra.mxu0 0
    %1965 = vmatprep.subr.bf16.mxu0 0
    %1966 = vmatpush1.bf16.msra.mxu0 0
    %1967 = vmatprep.mubr.bf16.mxu0 0
    %1968 = vmatmul.mubr.bf16.gmra.mrb[0].mxu0 %v1912
    %v1969 = vpop.f32.mrb[0].mxu0
    %v1970 = vadd.f32 0.0, %v1969
    %v1971 = vpop.f32.mrb[0].mxu0
    %v1972 = vpop.f32.mrb[0].mxu0
    %v1973 = vadd.f32 0.0, %v1972
    %v1974 = vpop.f32.mrb[0].mxu0
    %1975 = vmatprep.mubr.bf16.mxu0 0
    %1976 = vmatmul.mubr.bf16.gmra.mrb[0].mxu0 %v1915
    %v1977 = vpop.f32.mrb[0].mxu0
    %v1978 = vadd.f32 0.0, %v1977
    %v1979 = vpop.f32.mrb[0].mxu0
    %v1980 = vpop.f32.mrb[0].mxu0
    %v1981 = vadd.f32 0.0, %v1980
    %v1982 = vpop.f32.mrb[0].mxu0
    %1983 = vmatprep.mubr.bf16.mxu0 0
    %1984 = vmatmul.mubr.bf16.gmra.mrb[0].mxu0 %v1918
    %v1985 = vpop.f32.mrb[0].mxu0
    %v1986 = vadd.f32 0.0, %v1985
    %v1987 = vpop.f32.mrb[0].mxu0
    %v1988 = vpop.f32.mrb[0].mxu0
    %v1989 = vadd.f32 0.0, %v1988
    %v1990 = vpop.f32.mrb[0].mxu0
    %1991 = vmatprep.mubr.bf16.mxu0 0
    %1992 = vmatmul.mubr.bf16.gmra.mrb[0].mxu0 %v1921
    %v1993 = vpop.f32.mrb[0].mxu0
    %v1994 = vadd.f32 0.0, %v1993
    %v1995 = vpop.f32.mrb[0].mxu0
    %v1996 = vpop.f32.mrb[0].mxu0
    %v1997 = vadd.f32 0.0, %v1996
    %v1998 = vpop.f32.mrb[0].mxu0
    %1999 = vmatprep.mubr.bf16.mxu0 0
    %2000 = vmatmul.mubr.bf16.gmra.mrb[0].mxu0 %v1924
    %v2001 = vpop.f32.mrb[0].mxu0
    %v2002 = vadd.f32 0.0, %v2001
    %v2003 = vpop.f32.mrb[0].mxu0
    %v2004 = vpop.f32.mrb[0].mxu0
    %v2005 = vadd.f32 0.0, %v2004
    %v2006 = vpop.f32.mrb[0].mxu0
    %2007 = vmatprep.mubr.bf16.mxu0 0
    %2008 = vmatmul.mubr.bf16.gmra.mrb[0].mxu0 %v1927
    %v2009 = vpop.f32.mrb[0].mxu0
    %v2010 = vadd.f32 0.0, %v2009
    %v2011 = vpop.f32.mrb[0].mxu0
    %v2012 = vpop.f32.mrb[0].mxu0
    %v2013 = vadd.f32 0.0, %v2012
    %v2014 = vpop.f32.mrb[0].mxu0
    %2015 = vmatprep.mubr.bf16.mxu0 0
    %2016 = vmatmul.mubr.bf16.gmra.mrb[0].mxu0 %v1930
    %v2017 = vpop.f32.mrb[0].mxu0
    %v2018 = vadd.f32 0.0, %v2017
    %v2019 = vpop.f32.mrb[0].mxu0
    %v2020 = vpop.f32.mrb[0].mxu0
    %v2021 = vadd.f32 0.0, %v2020
    %v2022 = vpop.f32.mrb[0].mxu0
    %2023 = vmatprep.mubr.bf16.mxu0 0
    %2024 = vmatmul.mubr.bf16.gmra.mrb[0].mxu0 %v1933
    %v2025 = vpop.f32.mrb[0].mxu0
    %v2026 = vadd.f32 0.0, %v2025
    %v2027 = vpop.f32.mrb[0].mxu0
    %v2028 = vpop.f32.mrb[0].mxu0
    %v2029 = vadd.f32 0.0, %v2028
    %v2030 = vpop.f32.mrb[0].mxu0
    %2031 = vdwg.mxu0
    %v2032 = vadd.f32 %v1817, %v1970
    %v2033 = vadd.f32 %v1820, %v1973
    %v2034 = vadd.f32 %v1825, %v1978
    %v2035 = vadd.f32 %v1828, %v1981
    %v2036 = vadd.f32 %v1833, %v1986
    %v2037 = vadd.f32 %v1836, %v1989
    %v2038 = vadd.f32 %v1841, %v1994
    %v2039 = vadd.f32 %v1844, %v1997
    %v2040 = vadd.f32 %v1849, %v2002
    %v2041 = vadd.f32 %v1852, %v2005
    %v2042 = vadd.f32 %v1857, %v2010
    %v2043 = vadd.f32 %v1860, %v2013
    %v2044 = vadd.f32 %v1865, %v2018
    %v2045 = vadd.f32 %v1868, %v2021
    %v2046 = vadd.f32 %v1873, %v2026
    %v2047 = vadd.f32 %v1876, %v2029
    %v2048 = vxor.u32 %v2032, 2147483648
    %v2049 = vxor.u32 %v2033, 2147483648
    %v2050 = vxor.u32 %v2034, 2147483648
    %v2051 = vxor.u32 %v2035, 2147483648
    %v2052 = vxor.u32 %v2036, 2147483648
    %v2053 = vxor.u32 %v2037, 2147483648
    %v2054 = vxor.u32 %v2038, 2147483648
    %v2055 = vxor.u32 %v2039, 2147483648
    %v2056 = vxor.u32 %v2040, 2147483648
    %v2057 = vxor.u32 %v2041, 2147483648
    %v2058 = vxor.u32 %v2042, 2147483648
    %v2059 = vxor.u32 %v2043, 2147483648
    %v2060 = vxor.u32 %v2044, 2147483648
    %v2061 = vxor.u32 %v2045, 2147483648
    %v2062 = vxor.u32 %v2046, 2147483648
    %v2063 = vxor.u32 %v2047, 2147483648
    %v2064 = vmul.f32 %v2048, 1.442695
    %v2065 = vpow.pop %v2064
    %v2066 = vmul.f32 %v2049, 1.442695
    %v2067 = vpow.pop %v2066
    %v2068 = vmul.f32 %v2050, 1.442695
    %v2069 = vpow.pop %v2068
    %v2070 = vmul.f32 %v2051, 1.442695
    %v2071 = vpow.pop %v2070
    %v2072 = vmul.f32 %v2052, 1.442695
    %v2073 = vpow.pop %v2072
    %v2074 = vmul.f32 %v2053, 1.442695
    %v2075 = vpow.pop %v2074
    %v2076 = vmul.f32 %v2054, 1.442695
    %v2077 = vpow.pop %v2076
    %v2078 = vmul.f32 %v2055, 1.442695
    %v2079 = vpow.pop %v2078
    %v2080 = vmul.f32 %v2056, 1.442695
    %v2081 = vpow.pop %v2080
    %v2082 = vmul.f32 %v2057, 1.442695
    %v2083 = vpow.pop %v2082
    %v2084 = vmul.f32 %v2058, 1.442695
    %v2085 = vpow.pop %v2084
    %v2086 = vmul.f32 %v2059, 1.442695
    %v2087 = vpow.pop %v2086
    %v2088 = vmul.f32 %v2060, 1.442695
    %v2089 = vpow.pop %v2088
    %v2090 = vmul.f32 %v2061, 1.442695
    %v2091 = vpow.pop %v2090
    %v2092 = vmul.f32 %v2062, 1.442695
    %v2093 = vpow.pop %v2092
    %v2094 = vmul.f32 %v2063, 1.442695
    %v2095 = vpow.pop %v2094
    %v2096 = vadd.f32 %v2065, 1.0
    %v2097 = vadd.f32 %v2067, 1.0
    %v2098 = vadd.f32 %v2069, 1.0
    %v2099 = vadd.f32 %v2071, 1.0
    %v2100 = vadd.f32 %v2073, 1.0
    %v2101 = vadd.f32 %v2075, 1.0
    %v2102 = vadd.f32 %v2077, 1.0
    %v2103 = vadd.f32 %v2079, 1.0
    %v2104 = vadd.f32 %v2081, 1.0
    %v2105 = vadd.f32 %v2083, 1.0
    %v2106 = vadd.f32 %v2085, 1.0
    %v2107 = vadd.f32 %v2087, 1.0
    %v2108 = vadd.f32 %v2089, 1.0
    %v2109 = vadd.f32 %v2091, 1.0
    %v2110 = vadd.f32 %v2093, 1.0
    %v2111 = vadd.f32 %v2095, 1.0
    %v2112 = vrcp.pop %v2096
    %v2113 = vmul.f32 1.0, %v2112
    %v2114 = vrcp.pop %v2097
    %v2115 = vmul.f32 1.0, %v2114
    %v2116 = vrcp.pop %v2098
    %v2117 = vmul.f32 1.0, %v2116
    %v2118 = vrcp.pop %v2099
    %v2119 = vmul.f32 1.0, %v2118
    %v2120 = vrcp.pop %v2100
    %v2121 = vmul.f32 1.0, %v2120
    %v2122 = vrcp.pop %v2101
    %v2123 = vmul.f32 1.0, %v2122
    %v2124 = vrcp.pop %v2102
    %v2125 = vmul.f32 1.0, %v2124
    %v2126 = vrcp.pop %v2103
    %v2127 = vmul.f32 1.0, %v2126
    %v2128 = vrcp.pop %v2104
    %v2129 = vmul.f32 1.0, %v2128
    %v2130 = vrcp.pop %v2105
    %v2131 = vmul.f32 1.0, %v2130
    %v2132 = vrcp.pop %v2106
    %v2133 = vmul.f32 1.0, %v2132
    %v2134 = vrcp.pop %v2107
    %v2135 = vmul.f32 1.0, %v2134
    %v2136 = vrcp.pop %v2108
    %v2137 = vmul.f32 1.0, %v2136
    %v2138 = vrcp.pop %v2109
    %v2139 = vmul.f32 1.0, %v2138
    %v2140 = vrcp.pop %v2110
    %v2141 = vmul.f32 1.0, %v2140
    %v2142 = vrcp.pop %v2111
    %v2143 = vmul.f32 1.0, %v2142
    %v2144 = vadd.f32 %v1970, %v1332
    %v2145 = vadd.f32 %v1973, %v1332
    %v2146 = vadd.f32 %v1978, %v1332
    %v2147 = vadd.f32 %v1981, %v1332
    %v2148 = vadd.f32 %v1986, %v1332
    %v2149 = vadd.f32 %v1989, %v1332
    %v2150 = vadd.f32 %v1994, %v1332
    %v2151 = vadd.f32 %v1997, %v1332
    %v2152 = vadd.f32 %v2002, %v1332
    %v2153 = vadd.f32 %v2005, %v1332
    %v2154 = vadd.f32 %v2010, %v1332
    %v2155 = vadd.f32 %v2013, %v1332
    %v2156 = vadd.f32 %v2018, %v1332
    %v2157 = vadd.f32 %v2021, %v1332
    %v2158 = vadd.f32 %v2026, %v1332
    %v2159 = vadd.f32 %v2029, %v1332
    %2176 = vrot.lane.b32.xlu0 %v2144, 64
    %v2177 = vpop.permute.xlu0 %2176
    %2178 = vrot.lane.b32.xlu0 %v2145, 64
    %v2179 = vpop.permute.xlu0 %2178
    %2180 = vrot.lane.b32.xlu0 %v2146, 64
    %v2181 = vpop.permute.xlu0 %2180
    %2182 = vrot.lane.b32.xlu0 %v2147, 64
    %v2183 = vpop.permute.xlu0 %2182
    %2184 = vrot.lane.b32.xlu0 %v2148, 64
    %v2185 = vpop.permute.xlu0 %2184
    %2186 = vrot.lane.b32.xlu0 %v2149, 64
    %v2187 = vpop.permute.xlu0 %2186
    %2188 = vrot.lane.b32.xlu0 %v2150, 64
    %v2189 = vpop.permute.xlu0 %2188
    %2190 = vrot.lane.b32.xlu0 %v2151, 64
    %v2191 = vpop.permute.xlu0 %2190
    %2192 = vrot.lane.b32.xlu0 %v2152, 64
    %v2193 = vpop.permute.xlu0 %2192
    %2194 = vrot.lane.b32.xlu0 %v2153, 64
    %v2195 = vpop.permute.xlu0 %2194
    %2196 = vrot.lane.b32.xlu0 %v2154, 64
    %v2197 = vpop.permute.xlu0 %2196
    %2198 = vrot.lane.b32.xlu0 %v2155, 64
    %v2199 = vpop.permute.xlu0 %2198
    %2200 = vrot.lane.b32.xlu0 %v2156, 64
    %v2201 = vpop.permute.xlu0 %2200
    %2202 = vrot.lane.b32.xlu0 %v2157, 64
    %v2203 = vpop.permute.xlu0 %2202
    %2204 = vrot.lane.b32.xlu0 %v2158, 64
    %v2205 = vpop.permute.xlu0 %2204
    %2206 = vrot.lane.b32.xlu0 %v2159, 64
    %v2207 = vpop.permute.xlu0 %2206
    %v2224 = vmul.f32 %v2113, %v2177
    %v2225 = vmul.f32 %v2115, %v2179
    %v2226 = vmul.f32 %v2117, %v2181
    %v2227 = vmul.f32 %v2119, %v2183
    %v2228 = vmul.f32 %v2121, %v2185
    %v2229 = vmul.f32 %v2123, %v2187
    %v2230 = vmul.f32 %v2125, %v2189
    %v2231 = vmul.f32 %v2127, %v2191
    %v2232 = vmul.f32 %v2129, %v2193
    %v2233 = vmul.f32 %v2131, %v2195
    %v2234 = vmul.f32 %v2133, %v2197
    %v2235 = vmul.f32 %v2135, %v2199
    %v2236 = vmul.f32 %v2137, %v2201
    %v2237 = vmul.f32 %v2139, %v2203
    %v2238 = vmul.f32 %v2141, %v2205
    %v2239 = vmul.f32 %v2143, %v2207
    %2256 = vrot.lane.b32.xlu0 %v2224, 64
    %v2257 = vpop.permute.xlu0 %2256
    %2258 = vrot.lane.b32.xlu0 %v2225, 64
    %v2259 = vpop.permute.xlu0 %2258
    %2260 = vrot.lane.b32.xlu0 %v2226, 64
    %v2261 = vpop.permute.xlu0 %2260
    %2262 = vrot.lane.b32.xlu0 %v2227, 64
    %v2263 = vpop.permute.xlu0 %2262
    %2264 = vrot.lane.b32.xlu0 %v2228, 64
    %v2265 = vpop.permute.xlu0 %2264
    %2266 = vrot.lane.b32.xlu0 %v2229, 64
    %v2267 = vpop.permute.xlu0 %2266
    %2268 = vrot.lane.b32.xlu0 %v2230, 64
    %v2269 = vpop.permute.xlu0 %2268
    %2270 = vrot.lane.b32.xlu0 %v2231, 64
    %v2271 = vpop.permute.xlu0 %2270
    %2272 = vrot.lane.b32.xlu0 %v2232, 64
    %v2273 = vpop.permute.xlu0 %2272
    %2274 = vrot.lane.b32.xlu0 %v2233, 64
    %v2275 = vpop.permute.xlu0 %2274
    %2276 = vrot.lane.b32.xlu0 %v2234, 64
    %v2277 = vpop.permute.xlu0 %2276
    %2278 = vrot.lane.b32.xlu0 %v2235, 64
    %v2279 = vpop.permute.xlu0 %2278
    %2280 = vrot.lane.b32.xlu0 %v2236, 64
    %v2281 = vpop.permute.xlu0 %2280
    %2282 = vrot.lane.b32.xlu0 %v2237, 64
    %v2283 = vpop.permute.xlu0 %2282
    %2284 = vrot.lane.b32.xlu0 %v2238, 64
    %v2285 = vpop.permute.xlu0 %2284
    %2286 = vrot.lane.b32.xlu0 %v2239, 64
    %v2287 = vpop.permute.xlu0 %2286
    %v2304 = vadd.f32 %v1817, %v2257
    %v2305 = vadd.f32 %v1820, %v2259
    %v2306 = vadd.f32 %v1825, %v2261
    %v2307 = vadd.f32 %v1828, %v2263
    %v2308 = vadd.f32 %v1833, %v2265
    %v2309 = vadd.f32 %v1836, %v2267
    %v2310 = vadd.f32 %v1841, %v2269
    %v2311 = vadd.f32 %v1844, %v2271
    %v2312 = vadd.f32 %v1849, %v2273
    %v2313 = vadd.f32 %v1852, %v2275
    %v2314 = vadd.f32 %v1857, %v2277
    %v2315 = vadd.f32 %v1860, %v2279
    %v2316 = vadd.f32 %v1865, %v2281
    %v2317 = vadd.f32 %v1868, %v2283
    %v2318 = vadd.f32 %v1873, %v2285
    %v2319 = vadd.f32 %v1876, %v2287
    %v2320 = vtanh.pop %v2304
    %v2321 = vtanh.pop %v2305
    %v2322 = vtanh.pop %v2306
    %v2323 = vtanh.pop %v2307
    %v2324 = vtanh.pop %v2308
    %v2325 = vtanh.pop %v2309
    %v2326 = vtanh.pop %v2310
    %v2327 = vtanh.pop %v2311
    %v2328 = vtanh.pop %v2312
    %v2329 = vtanh.pop %v2313
    %v2330 = vtanh.pop %v2314
    %v2331 = vtanh.pop %v2315
    %v2332 = vtanh.pop %v2316
    %v2333 = vtanh.pop %v2317
    %v2334 = vtanh.pop %v2318
    %v2335 = vtanh.pop %v2319
    %v2336 = vsub.f32 1.0, %v2113
    %v2337 = vsub.f32 1.0, %v2115
    %v2338 = vsub.f32 1.0, %v2117
    %v2339 = vsub.f32 1.0, %v2119
    %v2340 = vsub.f32 1.0, %v2121
    %v2341 = vsub.f32 1.0, %v2123
    %v2342 = vsub.f32 1.0, %v2125
    %v2343 = vsub.f32 1.0, %v2127
    %v2344 = vsub.f32 1.0, %v2129
    %v2345 = vsub.f32 1.0, %v2131
    %v2346 = vsub.f32 1.0, %v2133
    %v2347 = vsub.f32 1.0, %v2135
    %v2348 = vsub.f32 1.0, %v2137
    %v2349 = vsub.f32 1.0, %v2139
    %v2350 = vsub.f32 1.0, %v2141
    %v2351 = vsub.f32 1.0, %v2143
    %2368 = vrot.lane.b32.xlu0 %v2320, 96
    %v2369 = vpop.permute.xlu0 %2368
    %2370 = vrot.lane.b32.xlu0 %v2321, 96
    %v2371 = vpop.permute.xlu0 %2370
    %2372 = vrot.lane.b32.xlu0 %v2322, 96
    %v2373 = vpop.permute.xlu0 %2372
    %2374 = vrot.lane.b32.xlu0 %v2323, 96
    %v2375 = vpop.permute.xlu0 %2374
    %2376 = vrot.lane.b32.xlu0 %v2324, 96
    %v2377 = vpop.permute.xlu0 %2376
    %2378 = vrot.lane.b32.xlu0 %v2325, 96
    %v2379 = vpop.permute.xlu0 %2378
    %2380 = vrot.lane.b32.xlu0 %v2326, 96
    %v2381 = vpop.permute.xlu0 %2380
    %2382 = vrot.lane.b32.xlu0 %v2327, 96
    %v2383 = vpop.permute.xlu0 %2382
    %2384 = vrot.lane.b32.xlu0 %v2328, 96
    %v2385 = vpop.permute.xlu0 %2384
    %2386 = vrot.lane.b32.xlu0 %v2329, 96
    %v2387 = vpop.permute.xlu0 %2386
    %2388 = vrot.lane.b32.xlu0 %v2330, 96
    %v2389 = vpop.permute.xlu0 %2388
    %2390 = vrot.lane.b32.xlu0 %v2331, 96
    %v2391 = vpop.permute.xlu0 %2390
    %2392 = vrot.lane.b32.xlu0 %v2332, 96
    %v2393 = vpop.permute.xlu0 %2392
    %2394 = vrot.lane.b32.xlu0 %v2333, 96
    %v2395 = vpop.permute.xlu0 %2394
    %2396 = vrot.lane.b32.xlu0 %v2334, 96
    %v2397 = vpop.permute.xlu0 %2396
    %2398 = vrot.lane.b32.xlu0 %v2335, 96
    %v2399 = vpop.permute.xlu0 %2398
    %v2416 = vmul.f32 %v2336, %v2369
    %v2417 = vmul.f32 %v2337, %v2371
    %v2418 = vmul.f32 %v2338, %v2373
    %v2419 = vmul.f32 %v2339, %v2375
    %v2420 = vmul.f32 %v2340, %v2377
    %v2421 = vmul.f32 %v2341, %v2379
    %v2422 = vmul.f32 %v2342, %v2381
    %v2423 = vmul.f32 %v2343, %v2383
    %v2424 = vmul.f32 %v2344, %v2385
    %v2425 = vmul.f32 %v2345, %v2387
    %v2426 = vmul.f32 %v2346, %v2389
    %v2427 = vmul.f32 %v2347, %v2391
    %v2428 = vmul.f32 %v2348, %v2393
    %v2429 = vmul.f32 %v2349, %v2395
    %v2430 = vmul.f32 %v2350, %v2397
    %v2431 = vmul.f32 %v2351, %v2399
    %v2432 = vmul.f32 %v2113, %v1638
    %v2433 = vmul.f32 %v2115, %v1639
    %v2434 = vmul.f32 %v2117, %v1640
    %v2435 = vmul.f32 %v2119, %v1641
    %v2436 = vmul.f32 %v2121, %v1642
    %v2437 = vmul.f32 %v2123, %v1643
    %v2438 = vmul.f32 %v2125, %v1644
    %v2439 = vmul.f32 %v2127, %v1645
    %v2440 = vmul.f32 %v2129, %v1646
    %v2441 = vmul.f32 %v2131, %v1647
    %v2442 = vmul.f32 %v2133, %v1648
    %v2443 = vmul.f32 %v2135, %v1649
    %v2444 = vmul.f32 %v2137, %v1650
    %v2445 = vmul.f32 %v2139, %v1651
    %v2446 = vmul.f32 %v2141, %v1652
    %v2447 = vmul.f32 %v2143, %v1653
    %v2448 = vadd.f32 %v2416, %v2432
    %v2449 = vadd.f32 %v2417, %v2433
    %v2450 = vadd.f32 %v2418, %v2434
    %v2451 = vadd.f32 %v2419, %v2435
    %v2452 = vadd.f32 %v2420, %v2436
    %v2453 = vadd.f32 %v2421, %v2437
    %v2454 = vadd.f32 %v2422, %v2438
    %v2455 = vadd.f32 %v2423, %v2439
    %v2456 = vadd.f32 %v2424, %v2440
    %v2457 = vadd.f32 %v2425, %v2441
    %v2458 = vadd.f32 %v2426, %v2442
    %v2459 = vadd.f32 %v2427, %v2443
    %v2460 = vadd.f32 %v2428, %v2444
    %v2461 = vadd.f32 %v2429, %v2445
    %v2462 = vadd.f32 %v2430, %v2446
    %v2463 = vadd.f32 %v2431, %v2447
    %2464 = vset.pattern.permute.xlu0 3
    %2465 = vperm.xlu0 %2464, %v28
    %v2466 = vpop.permute.xlu0 %2465
    %2467 = vset.pattern.permute.xlu0 3
    %2468 = vperm.xlu0 %2467, %v29
    %v2469 = vpop.permute.xlu0 %2468
    %2470 = vset.pattern.permute.xlu0 3
    %2471 = vperm.xlu0 %2470, %v30
    %v2472 = vpop.permute.xlu0 %2471
    %2473 = vset.pattern.permute.xlu0 3
    %2474 = vperm.xlu0 %2473, %v31
    %v2475 = vpop.permute.xlu0 %2474
    %2476 = vset.pattern.permute.xlu0 3
    %2477 = vperm.xlu0 %2476, %v32
    %v2478 = vpop.permute.xlu0 %2477
    %2479 = vset.pattern.permute.xlu0 3
    %2480 = vperm.xlu0 %2479, %v33
    %v2481 = vpop.permute.xlu0 %2480
    %2482 = vset.pattern.permute.xlu0 3
    %2483 = vperm.xlu0 %2482, %v34
    %v2484 = vpop.permute.xlu0 %2483
    %2485 = vset.pattern.permute.xlu0 3
    %2486 = vperm.xlu0 %2485, %v35
    %v2487 = vpop.permute.xlu0 %2486
    %2488 = vset.pattern.permute.xlu0 3
    %2489 = vperm.xlu0 %2488, %v36
    %v2490 = vpop.permute.xlu0 %2489
    %2491 = vset.pattern.permute.xlu0 3
    %2492 = vperm.xlu0 %2491, %v37
    %v2493 = vpop.permute.xlu0 %2492
    %2494 = vset.pattern.permute.xlu0 3
    %2495 = vperm.xlu0 %2494, %v38
    %v2496 = vpop.permute.xlu0 %2495
    %2497 = vset.pattern.permute.xlu0 3
    %2498 = vperm.xlu0 %2497, %v39
    %v2499 = vpop.permute.xlu0 %2498
    %2500 = vset.pattern.permute.xlu0 3
    %2501 = vperm.xlu0 %2500, %v40
    %v2502 = vpop.permute.xlu0 %2501
    %2503 = vset.pattern.permute.xlu0 3
    %2504 = vperm.xlu0 %2503, %v41
    %v2505 = vpop.permute.xlu0 %2504
    %2506 = vset.pattern.permute.xlu0 3
    %2507 = vperm.xlu0 %2506, %v42
    %v2508 = vpop.permute.xlu0 %2507
    %2509 = vset.pattern.permute.xlu0 3
    %2510 = vperm.xlu0 %2509, %v43
    %v2511 = vpop.permute.xlu0 %2510
    %vm2512 = vcmp.eq.s32.totalorder %v2466, %v45
    %vm2513 = vcmp.eq.s32.totalorder %v2469, %v45
    %vm2514 = vcmp.eq.s32.totalorder %v2472, %v45
    %vm2515 = vcmp.eq.s32.totalorder %v2475, %v45
    %vm2516 = vcmp.eq.s32.totalorder %v2478, %v45
    %vm2517 = vcmp.eq.s32.totalorder %v2481, %v45
    %vm2518 = vcmp.eq.s32.totalorder %v2484, %v45
    %vm2519 = vcmp.eq.s32.totalorder %v2487, %v45
    %vm2520 = vcmp.eq.s32.totalorder %v2490, %v45
    %vm2521 = vcmp.eq.s32.totalorder %v2493, %v45
    %vm2522 = vcmp.eq.s32.totalorder %v2496, %v45
    %vm2523 = vcmp.eq.s32.totalorder %v2499, %v45
    %vm2524 = vcmp.eq.s32.totalorder %v2502, %v45
    %vm2525 = vcmp.eq.s32.totalorder %v2505, %v45
    %vm2526 = vcmp.eq.s32.totalorder %v2508, %v45
    %vm2527 = vcmp.eq.s32.totalorder %v2511, %v45
    %v2528 = vsel %vm2512, 1, 0
    %v2529 = vsel %vm2513, 1, 0
    %v2530 = vsel %vm2514, 1, 0
    %v2531 = vsel %vm2515, 1, 0
    %v2532 = vsel %vm2516, 1, 0
    %v2533 = vsel %vm2517, 1, 0
    %v2534 = vsel %vm2518, 1, 0
    %v2535 = vsel %vm2519, 1, 0
    %v2536 = vsel %vm2520, 1, 0
    %v2537 = vsel %vm2521, 1, 0
    %v2538 = vsel %vm2522, 1, 0
    %v2539 = vsel %vm2523, 1, 0
    %v2540 = vsel %vm2524, 1, 0
    %v2541 = vsel %vm2525, 1, 0
    %v2542 = vsel %vm2526, 1, 0
    %v2543 = vsel %vm2527, 1, 0
    %v2544 = vcvt.s32.f32 %v2528
    %v2545 = vcvt.s32.f32 %v2529
    %v2546 = vcvt.s32.f32 %v2530
    %v2547 = vcvt.s32.f32 %v2531
    %v2548 = vcvt.s32.f32 %v2532
    %v2549 = vcvt.s32.f32 %v2533
    %v2550 = vcvt.s32.f32 %v2534
    %v2551 = vcvt.s32.f32 %v2535
    %v2552 = vcvt.s32.f32 %v2536
    %v2553 = vcvt.s32.f32 %v2537
    %v2554 = vcvt.s32.f32 %v2538
    %v2555 = vcvt.s32.f32 %v2539
    %v2556 = vcvt.s32.f32 %v2540
    %v2557 = vcvt.s32.f32 %v2541
    %v2558 = vcvt.s32.f32 %v2542
    %v2559 = vcvt.s32.f32 %v2543
    %v2560 = vpack.c.bf16 %v2545, %v2544
    %v2561 = vpack.c.bf16 %v2547, %v2546
    %v2562 = vpack.c.bf16 %v2549, %v2548
    %v2563 = vpack.c.bf16 %v2551, %v2550
    %v2564 = vpack.c.bf16 %v2553, %v2552
    %v2565 = vpack.c.bf16 %v2555, %v2554
    %v2566 = vpack.c.bf16 %v2557, %v2556
    %v2567 = vpack.c.bf16 %v2559, %v2558
    %v2569 = vsel %vm171, %v2560, 0
    %v2572 = vsel %vm171, %v2561, 0
    %v2575 = vsel %vm171, %v2562, 0
    %v2578 = vsel %vm171, %v2563, 0
    %v2581 = vsel %vm171, %v2564, 0
    %v2584 = vsel %vm171, %v2565, 0
    %v2587 = vsel %vm171, %v2566, 0
    %v2590 = vsel %vm171, %v2567, 0
    %2592 = vmatprep.subr.bf16.mxu0 0
    %2593 = vmatpush1.bf16.msra.mxu0 %v401
    %2594 = vmatprep.subr.bf16.mxu0 0
    %2595 = vmatpush1.bf16.msra.mxu0 0
    %2596 = vmatprep.subr.bf16.mxu0 0
    %2597 = vmatpush1.bf16.msra.mxu0 0
    %2598 = vmatprep.subr.bf16.mxu0 0
    %2599 = vmatpush1.bf16.msra.mxu0 0
    %2600 = vmatprep.subr.bf16.mxu0 0
    %2601 = vmatpush1.bf16.msra.mxu0 0
    %2602 = vmatprep.subr.bf16.mxu0 0
    %2603 = vmatpush1.bf16.msra.mxu0 0
    %2604 = vmatprep.subr.bf16.mxu0 0
    %2605 = vmatpush1.bf16.msra.mxu0 0
    %2606 = vmatprep.subr.bf16.mxu0 0
    %2607 = vmatpush1.bf16.msra.mxu0 0
    %2608 = vmatprep.subr.bf16.mxu0 0
    %2609 = vmatpush1.bf16.msra.mxu0 0
    %2610 = vmatprep.subr.bf16.mxu0 0
    %2611 = vmatpush1.bf16.msra.mxu0 0
    %2612 = vmatprep.subr.bf16.mxu0 0
    %2613 = vmatpush1.bf16.msra.mxu0 0
    %2614 = vmatprep.subr.bf16.mxu0 0
    %2615 = vmatpush1.bf16.msra.mxu0 0
    %2616 = vmatprep.subr.bf16.mxu0 0
    %2617 = vmatpush1.bf16.msra.mxu0 0
    %2618 = vmatprep.subr.bf16.mxu0 0
    %2619 = vmatpush1.bf16.msra.mxu0 0
    %2620 = vmatprep.subr.bf16.mxu0 0
    %2621 = vmatpush1.bf16.msra.mxu0 0
    %2622 = vmatprep.subr.bf16.mxu0 0
    %2623 = vmatpush1.bf16.msra.mxu0 0
    %2624 = vmatprep.mubr.bf16.mxu0 0
    %2625 = vmatmul.mubr.bf16.gmra.mrb[0].mxu0 %v2569
    %v2626 = vpop.f32.mrb[0].mxu0
    %v2627 = vadd.f32 0.0, %v2626
    %v2628 = vpop.f32.mrb[0].mxu0
    %v2629 = vpop.f32.mrb[0].mxu0
    %v2630 = vadd.f32 0.0, %v2629
    %v2631 = vpop.f32.mrb[0].mxu0
    %2632 = vmatprep.mubr.bf16.mxu0 0
    %2633 = vmatmul.mubr.bf16.gmra.mrb[0].mxu0 %v2572
    %v2634 = vpop.f32.mrb[0].mxu0
    %v2635 = vadd.f32 0.0, %v2634
    %v2636 = vpop.f32.mrb[0].mxu0
    %v2637 = vpop.f32.mrb[0].mxu0
    %v2638 = vadd.f32 0.0, %v2637
    %v2639 = vpop.f32.mrb[0].mxu0
    %2640 = vmatprep.mubr.bf16.mxu0 0
    %2641 = vmatmul.mubr.bf16.gmra.mrb[0].mxu0 %v2575
    %v2642 = vpop.f32.mrb[0].mxu0
    %v2643 = vadd.f32 0.0, %v2642
    %v2644 = vpop.f32.mrb[0].mxu0
    %v2645 = vpop.f32.mrb[0].mxu0
    %v2646 = vadd.f32 0.0, %v2645
    %v2647 = vpop.f32.mrb[0].mxu0
    %2648 = vmatprep.mubr.bf16.mxu0 0
    %2649 = vmatmul.mubr.bf16.gmra.mrb[0].mxu0 %v2578
    %v2650 = vpop.f32.mrb[0].mxu0
    %v2651 = vadd.f32 0.0, %v2650
    %v2652 = vpop.f32.mrb[0].mxu0
    %v2653 = vpop.f32.mrb[0].mxu0
    %v2654 = vadd.f32 0.0, %v2653
    %v2655 = vpop.f32.mrb[0].mxu0
    %2656 = vmatprep.mubr.bf16.mxu0 0
    %2657 = vmatmul.mubr.bf16.gmra.mrb[0].mxu0 %v2581
    %v2658 = vpop.f32.mrb[0].mxu0
    %v2659 = vadd.f32 0.0, %v2658
    %v2660 = vpop.f32.mrb[0].mxu0
    %v2661 = vpop.f32.mrb[0].mxu0
    %v2662 = vadd.f32 0.0, %v2661
    %v2663 = vpop.f32.mrb[0].mxu0
    %2664 = vmatprep.mubr.bf16.mxu0 0
    %2665 = vmatmul.mubr.bf16.gmra.mrb[0].mxu0 %v2584
    %v2666 = vpop.f32.mrb[0].mxu0
    %v2667 = vadd.f32 0.0, %v2666
    %v2668 = vpop.f32.mrb[0].mxu0
    %v2669 = vpop.f32.mrb[0].mxu0
    %v2670 = vadd.f32 0.0, %v2669
    %v2671 = vpop.f32.mrb[0].mxu0
    %2672 = vmatprep.mubr.bf16.mxu0 0
    %2673 = vmatmul.mubr.bf16.gmra.mrb[0].mxu0 %v2587
    %v2674 = vpop.f32.mrb[0].mxu0
    %v2675 = vadd.f32 0.0, %v2674
    %v2676 = vpop.f32.mrb[0].mxu0
    %v2677 = vpop.f32.mrb[0].mxu0
    %v2678 = vadd.f32 0.0, %v2677
    %v2679 = vpop.f32.mrb[0].mxu0
    %2680 = vmatprep.mubr.bf16.mxu0 0
    %2681 = vmatmul.mubr.bf16.gmra.mrb[0].mxu0 %v2590
    %v2682 = vpop.f32.mrb[0].mxu0
    %v2683 = vadd.f32 0.0, %v2682
    %v2684 = vpop.f32.mrb[0].mxu0
    %v2685 = vpop.f32.mrb[0].mxu0
    %v2686 = vadd.f32 0.0, %v2685
    %v2687 = vpop.f32.mrb[0].mxu0
    %2688 = vdwg.mxu0
    %v2689 = vpack.c.bf16 %v2449, %v2448
    %v2690 = vpack.c.bf16 %v2451, %v2450
    %v2691 = vpack.c.bf16 %v2453, %v2452
    %v2692 = vpack.c.bf16 %v2455, %v2454
    %v2693 = vpack.c.bf16 %v2457, %v2456
    %v2694 = vpack.c.bf16 %v2459, %v2458
    %v2695 = vpack.c.bf16 %v2461, %v2460
    %v2696 = vpack.c.bf16 %v2463, %v2462
    %2705 = vrot.lane.b32.xlu0 %v2689, 96
    %v2706 = vpop.permute.xlu0 %2705
    %2707 = vrot.lane.b32.xlu0 %v2690, 96
    %v2708 = vpop.permute.xlu0 %2707
    %2709 = vrot.lane.b32.xlu0 %v2691, 96
    %v2710 = vpop.permute.xlu0 %2709
    %2711 = vrot.lane.b32.xlu0 %v2692, 96
    %v2712 = vpop.permute.xlu0 %2711
    %2713 = vrot.lane.b32.xlu0 %v2693, 96
    %v2714 = vpop.permute.xlu0 %2713
    %2715 = vrot.lane.b32.xlu0 %v2694, 96
    %v2716 = vpop.permute.xlu0 %2715
    %2717 = vrot.lane.b32.xlu0 %v2695, 96
    %v2718 = vpop.permute.xlu0 %2717
    %2719 = vrot.lane.b32.xlu0 %v2696, 96
    %v2720 = vpop.permute.xlu0 %2719
    %v2722 = vsel %vm1097, %v2706, 0
    %v2725 = vsel %vm1097, %v2708, 0
    %v2728 = vsel %vm1097, %v2710, 0
    %v2731 = vsel %vm1097, %v2712, 0
    %v2734 = vsel %vm1097, %v2714, 0
    %v2737 = vsel %vm1097, %v2716, 0
    %v2740 = vsel %vm1097, %v2718, 0
    %v2743 = vsel %vm1097, %v2720, 0
    %2745 = vmatprep.subr.bf16.mxu0 0
    %2746 = vmatpush1.bf16.msra.mxu0 %v1093
    %2747 = vmatprep.subr.bf16.mxu0 0
    %2748 = vmatpush1.bf16.msra.mxu0 %v1094
    %2749 = vmatprep.subr.bf16.mxu0 0
    %2750 = vmatpush1.bf16.msra.mxu0 0
    %2751 = vmatprep.subr.bf16.mxu0 0
    %2752 = vmatpush1.bf16.msra.mxu0 0
    %2753 = vmatprep.subr.bf16.mxu0 0
    %2754 = vmatpush1.bf16.msra.mxu0 0
    %2755 = vmatprep.subr.bf16.mxu0 0
    %2756 = vmatpush1.bf16.msra.mxu0 0
    %2757 = vmatprep.subr.bf16.mxu0 0
    %2758 = vmatpush1.bf16.msra.mxu0 0
    %2759 = vmatprep.subr.bf16.mxu0 0
    %2760 = vmatpush1.bf16.msra.mxu0 0
    %2761 = vmatprep.subr.bf16.mxu0 0
    %2762 = vmatpush1.bf16.msra.mxu0 0
    %2763 = vmatprep.subr.bf16.mxu0 0
    %2764 = vmatpush1.bf16.msra.mxu0 0
    %2765 = vmatprep.subr.bf16.mxu0 0
    %2766 = vmatpush1.bf16.msra.mxu0 0
    %2767 = vmatprep.subr.bf16.mxu0 0
    %2768 = vmatpush1.bf16.msra.mxu0 0
    %2769 = vmatprep.subr.bf16.mxu0 0
    %2770 = vmatpush1.bf16.msra.mxu0 0
    %2771 = vmatprep.subr.bf16.mxu0 0
    %2772 = vmatpush1.bf16.msra.mxu0 0
    %2773 = vmatprep.subr.bf16.mxu0 0
    %2774 = vmatpush1.bf16.msra.mxu0 0
    %2775 = vmatprep.subr.bf16.mxu0 0
    %2776 = vmatpush1.bf16.msra.mxu0 0
    %2777 = vmatprep.mubr.bf16.mxu0 0
    %2778 = vmatmul.mubr.bf16.gmra.mrb[0].mxu0 %v2722
    %v2779 = vpop.f32.mrb[0].mxu0
    %v2780 = vadd.f32 0.0, %v2779
    %v2781 = vpop.f32.mrb[0].mxu0
    %v2782 = vpop.f32.mrb[0].mxu0
    %v2783 = vadd.f32 0.0, %v2782
    %v2784 = vpop.f32.mrb[0].mxu0
    %2785 = vmatprep.mubr.bf16.mxu0 0
    %2786 = vmatmul.mubr.bf16.gmra.mrb[0].mxu0 %v2725
    %v2787 = vpop.f32.mrb[0].mxu0
    %v2788 = vadd.f32 0.0, %v2787
    %v2789 = vpop.f32.mrb[0].mxu0
    %v2790 = vpop.f32.mrb[0].mxu0
    %v2791 = vadd.f32 0.0, %v2790
    %v2792 = vpop.f32.mrb[0].mxu0
    %2793 = vmatprep.mubr.bf16.mxu0 0
    %2794 = vmatmul.mubr.bf16.gmra.mrb[0].mxu0 %v2728
    %v2795 = vpop.f32.mrb[0].mxu0
    %v2796 = vadd.f32 0.0, %v2795
    %v2797 = vpop.f32.mrb[0].mxu0
    %v2798 = vpop.f32.mrb[0].mxu0
    %v2799 = vadd.f32 0.0, %v2798
    %v2800 = vpop.f32.mrb[0].mxu0
    %2801 = vmatprep.mubr.bf16.mxu0 0
    %2802 = vmatmul.mubr.bf16.gmra.mrb[0].mxu0 %v2731
    %v2803 = vpop.f32.mrb[0].mxu0
    %v2804 = vadd.f32 0.0, %v2803
    %v2805 = vpop.f32.mrb[0].mxu0
    %v2806 = vpop.f32.mrb[0].mxu0
    %v2807 = vadd.f32 0.0, %v2806
    %v2808 = vpop.f32.mrb[0].mxu0
    %2809 = vmatprep.mubr.bf16.mxu0 0
    %2810 = vmatmul.mubr.bf16.gmra.mrb[0].mxu0 %v2734
    %v2811 = vpop.f32.mrb[0].mxu0
    %v2812 = vadd.f32 0.0, %v2811
    %v2813 = vpop.f32.mrb[0].mxu0
    %v2814 = vpop.f32.mrb[0].mxu0
    %v2815 = vadd.f32 0.0, %v2814
    %v2816 = vpop.f32.mrb[0].mxu0
    %2817 = vmatprep.mubr.bf16.mxu0 0
    %2818 = vmatmul.mubr.bf16.gmra.mrb[0].mxu0 %v2737
    %v2819 = vpop.f32.mrb[0].mxu0
    %v2820 = vadd.f32 0.0, %v2819
    %v2821 = vpop.f32.mrb[0].mxu0
    %v2822 = vpop.f32.mrb[0].mxu0
    %v2823 = vadd.f32 0.0, %v2822
    %v2824 = vpop.f32.mrb[0].mxu0
    %2825 = vmatprep.mubr.bf16.mxu0 0
    %2826 = vmatmul.mubr.bf16.gmra.mrb[0].mxu0 %v2740
    %v2827 = vpop.f32.mrb[0].mxu0
    %v2828 = vadd.f32 0.0, %v2827
    %v2829 = vpop.f32.mrb[0].mxu0
    %v2830 = vpop.f32.mrb[0].mxu0
    %v2831 = vadd.f32 0.0, %v2830
    %v2832 = vpop.f32.mrb[0].mxu0
    %2833 = vmatprep.mubr.bf16.mxu0 0
    %2834 = vmatmul.mubr.bf16.gmra.mrb[0].mxu0 %v2743
    %v2835 = vpop.f32.mrb[0].mxu0
    %v2836 = vadd.f32 0.0, %v2835
    %v2837 = vpop.f32.mrb[0].mxu0
    %v2838 = vpop.f32.mrb[0].mxu0
    %v2839 = vadd.f32 0.0, %v2838
    %v2840 = vpop.f32.mrb[0].mxu0
    %2841 = vdwg.mxu0
    %v2842 = vadd.f32 %v2627, %v2780
    %v2843 = vadd.f32 %v2630, %v2783
    %v2844 = vadd.f32 %v2635, %v2788
    %v2845 = vadd.f32 %v2638, %v2791
    %v2846 = vadd.f32 %v2643, %v2796
    %v2847 = vadd.f32 %v2646, %v2799
    %v2848 = vadd.f32 %v2651, %v2804
    %v2849 = vadd.f32 %v2654, %v2807
    %v2850 = vadd.f32 %v2659, %v2812
    %v2851 = vadd.f32 %v2662, %v2815
    %v2852 = vadd.f32 %v2667, %v2820
    %v2853 = vadd.f32 %v2670, %v2823
    %v2854 = vadd.f32 %v2675, %v2828
    %v2855 = vadd.f32 %v2678, %v2831
    %v2856 = vadd.f32 %v2683, %v2836
    %v2857 = vadd.f32 %v2686, %v2839
    %v2858 = vxor.u32 %v2842, 2147483648
    %v2859 = vxor.u32 %v2843, 2147483648
    %v2860 = vxor.u32 %v2844, 2147483648
    %v2861 = vxor.u32 %v2845, 2147483648
    %v2862 = vxor.u32 %v2846, 2147483648
    %v2863 = vxor.u32 %v2847, 2147483648
    %v2864 = vxor.u32 %v2848, 2147483648
    %v2865 = vxor.u32 %v2849, 2147483648
    %v2866 = vxor.u32 %v2850, 2147483648
    %v2867 = vxor.u32 %v2851, 2147483648
    %v2868 = vxor.u32 %v2852, 2147483648
    %v2869 = vxor.u32 %v2853, 2147483648
    %v2870 = vxor.u32 %v2854, 2147483648
    %v2871 = vxor.u32 %v2855, 2147483648
    %v2872 = vxor.u32 %v2856, 2147483648
    %v2873 = vxor.u32 %v2857, 2147483648
    %v2874 = vmul.f32 %v2858, 1.442695
    %v2875 = vpow.pop %v2874
    %v2876 = vmul.f32 %v2859, 1.442695
    %v2877 = vpow.pop %v2876
    %v2878 = vmul.f32 %v2860, 1.442695
    %v2879 = vpow.pop %v2878
    %v2880 = vmul.f32 %v2861, 1.442695
    %v2881 = vpow.pop %v2880
    %v2882 = vmul.f32 %v2862, 1.442695
    %v2883 = vpow.pop %v2882
    %v2884 = vmul.f32 %v2863, 1.442695
    %v2885 = vpow.pop %v2884
    %v2886 = vmul.f32 %v2864, 1.442695
    %v2887 = vpow.pop %v2886
    %v2888 = vmul.f32 %v2865, 1.442695
    %v2889 = vpow.pop %v2888
    %v2890 = vmul.f32 %v2866, 1.442695
    %v2891 = vpow.pop %v2890
    %v2892 = vmul.f32 %v2867, 1.442695
    %v2893 = vpow.pop %v2892
    %v2894 = vmul.f32 %v2868, 1.442695
    %v2895 = vpow.pop %v2894
    %v2896 = vmul.f32 %v2869, 1.442695
    %v2897 = vpow.pop %v2896
    %v2898 = vmul.f32 %v2870, 1.442695
    %v2899 = vpow.pop %v2898
    %v2900 = vmul.f32 %v2871, 1.442695
    %v2901 = vpow.pop %v2900
    %v2902 = vmul.f32 %v2872, 1.442695
    %v2903 = vpow.pop %v2902
    %v2904 = vmul.f32 %v2873, 1.442695
    %v2905 = vpow.pop %v2904
    %v2906 = vadd.f32 %v2875, 1.0
    %v2907 = vadd.f32 %v2877, 1.0
    %v2908 = vadd.f32 %v2879, 1.0
    %v2909 = vadd.f32 %v2881, 1.0
    %v2910 = vadd.f32 %v2883, 1.0
    %v2911 = vadd.f32 %v2885, 1.0
    %v2912 = vadd.f32 %v2887, 1.0
    %v2913 = vadd.f32 %v2889, 1.0
    %v2914 = vadd.f32 %v2891, 1.0
    %v2915 = vadd.f32 %v2893, 1.0
    %v2916 = vadd.f32 %v2895, 1.0
    %v2917 = vadd.f32 %v2897, 1.0
    %v2918 = vadd.f32 %v2899, 1.0
    %v2919 = vadd.f32 %v2901, 1.0
    %v2920 = vadd.f32 %v2903, 1.0
    %v2921 = vadd.f32 %v2905, 1.0
    %v2922 = vrcp.pop %v2906
    %v2923 = vmul.f32 1.0, %v2922
    %v2924 = vrcp.pop %v2907
    %v2925 = vmul.f32 1.0, %v2924
    %v2926 = vrcp.pop %v2908
    %v2927 = vmul.f32 1.0, %v2926
    %v2928 = vrcp.pop %v2909
    %v2929 = vmul.f32 1.0, %v2928
    %v2930 = vrcp.pop %v2910
    %v2931 = vmul.f32 1.0, %v2930
    %v2932 = vrcp.pop %v2911
    %v2933 = vmul.f32 1.0, %v2932
    %v2934 = vrcp.pop %v2912
    %v2935 = vmul.f32 1.0, %v2934
    %v2936 = vrcp.pop %v2913
    %v2937 = vmul.f32 1.0, %v2936
    %v2938 = vrcp.pop %v2914
    %v2939 = vmul.f32 1.0, %v2938
    %v2940 = vrcp.pop %v2915
    %v2941 = vmul.f32 1.0, %v2940
    %v2942 = vrcp.pop %v2916
    %v2943 = vmul.f32 1.0, %v2942
    %v2944 = vrcp.pop %v2917
    %v2945 = vmul.f32 1.0, %v2944
    %v2946 = vrcp.pop %v2918
    %v2947 = vmul.f32 1.0, %v2946
    %v2948 = vrcp.pop %v2919
    %v2949 = vmul.f32 1.0, %v2948
    %v2950 = vrcp.pop %v2920
    %v2951 = vmul.f32 1.0, %v2950
    %v2952 = vrcp.pop %v2921
    %v2953 = vmul.f32 1.0, %v2952
    %v2954 = vadd.f32 %v2780, %v1332
    %v2955 = vadd.f32 %v2783, %v1332
    %v2956 = vadd.f32 %v2788, %v1332
    %v2957 = vadd.f32 %v2791, %v1332
    %v2958 = vadd.f32 %v2796, %v1332
    %v2959 = vadd.f32 %v2799, %v1332
    %v2960 = vadd.f32 %v2804, %v1332
    %v2961 = vadd.f32 %v2807, %v1332
    %v2962 = vadd.f32 %v2812, %v1332
    %v2963 = vadd.f32 %v2815, %v1332
    %v2964 = vadd.f32 %v2820, %v1332
    %v2965 = vadd.f32 %v2823, %v1332
    %v2966 = vadd.f32 %v2828, %v1332
    %v2967 = vadd.f32 %v2831, %v1332
    %v2968 = vadd.f32 %v2836, %v1332
    %v2969 = vadd.f32 %v2839, %v1332
    %2986 = vrot.lane.b32.xlu0 %v2954, 64
    %v2987 = vpop.permute.xlu0 %2986
    %2988 = vrot.lane.b32.xlu0 %v2955, 64
    %v2989 = vpop.permute.xlu0 %2988
    %2990 = vrot.lane.b32.xlu0 %v2956, 64
    %v2991 = vpop.permute.xlu0 %2990
    %2992 = vrot.lane.b32.xlu0 %v2957, 64
    %v2993 = vpop.permute.xlu0 %2992
    %2994 = vrot.lane.b32.xlu0 %v2958, 64
    %v2995 = vpop.permute.xlu0 %2994
    %2996 = vrot.lane.b32.xlu0 %v2959, 64
    %v2997 = vpop.permute.xlu0 %2996
    %2998 = vrot.lane.b32.xlu0 %v2960, 64
    %v2999 = vpop.permute.xlu0 %2998
    %3000 = vrot.lane.b32.xlu0 %v2961, 64
    %v3001 = vpop.permute.xlu0 %3000
    %3002 = vrot.lane.b32.xlu0 %v2962, 64
    %v3003 = vpop.permute.xlu0 %3002
    %3004 = vrot.lane.b32.xlu0 %v2963, 64
    %v3005 = vpop.permute.xlu0 %3004
    %3006 = vrot.lane.b32.xlu0 %v2964, 64
    %v3007 = vpop.permute.xlu0 %3006
    %3008 = vrot.lane.b32.xlu0 %v2965, 64
    %v3009 = vpop.permute.xlu0 %3008
    %3010 = vrot.lane.b32.xlu0 %v2966, 64
    %v3011 = vpop.permute.xlu0 %3010
    %3012 = vrot.lane.b32.xlu0 %v2967, 64
    %v3013 = vpop.permute.xlu0 %3012
    %3014 = vrot.lane.b32.xlu0 %v2968, 64
    %v3015 = vpop.permute.xlu0 %3014
    %3016 = vrot.lane.b32.xlu0 %v2969, 64
    %v3017 = vpop.permute.xlu0 %3016
    %v3034 = vmul.f32 %v2923, %v2987
    %v3035 = vmul.f32 %v2925, %v2989
    %v3036 = vmul.f32 %v2927, %v2991
    %v3037 = vmul.f32 %v2929, %v2993
    %v3038 = vmul.f32 %v2931, %v2995
    %v3039 = vmul.f32 %v2933, %v2997
    %v3040 = vmul.f32 %v2935, %v2999
    %v3041 = vmul.f32 %v2937, %v3001
    %v3042 = vmul.f32 %v2939, %v3003
    %v3043 = vmul.f32 %v2941, %v3005
    %v3044 = vmul.f32 %v2943, %v3007
    %v3045 = vmul.f32 %v2945, %v3009
    %v3046 = vmul.f32 %v2947, %v3011
    %v3047 = vmul.f32 %v2949, %v3013
    %v3048 = vmul.f32 %v2951, %v3015
    %v3049 = vmul.f32 %v2953, %v3017
    %3066 = vrot.lane.b32.xlu0 %v3034, 64
    %v3067 = vpop.permute.xlu0 %3066
    %3068 = vrot.lane.b32.xlu0 %v3035, 64
    %v3069 = vpop.permute.xlu0 %3068
    %3070 = vrot.lane.b32.xlu0 %v3036, 64
    %v3071 = vpop.permute.xlu0 %3070
    %3072 = vrot.lane.b32.xlu0 %v3037, 64
    %v3073 = vpop.permute.xlu0 %3072
    %3074 = vrot.lane.b32.xlu0 %v3038, 64
    %v3075 = vpop.permute.xlu0 %3074
    %3076 = vrot.lane.b32.xlu0 %v3039, 64
    %v3077 = vpop.permute.xlu0 %3076
    %3078 = vrot.lane.b32.xlu0 %v3040, 64
    %v3079 = vpop.permute.xlu0 %3078
    %3080 = vrot.lane.b32.xlu0 %v3041, 64
    %v3081 = vpop.permute.xlu0 %3080
    %3082 = vrot.lane.b32.xlu0 %v3042, 64
    %v3083 = vpop.permute.xlu0 %3082
    %3084 = vrot.lane.b32.xlu0 %v3043, 64
    %v3085 = vpop.permute.xlu0 %3084
    %3086 = vrot.lane.b32.xlu0 %v3044, 64
    %v3087 = vpop.permute.xlu0 %3086
    %3088 = vrot.lane.b32.xlu0 %v3045, 64
    %v3089 = vpop.permute.xlu0 %3088
    %3090 = vrot.lane.b32.xlu0 %v3046, 64
    %v3091 = vpop.permute.xlu0 %3090
    %3092 = vrot.lane.b32.xlu0 %v3047, 64
    %v3093 = vpop.permute.xlu0 %3092
    %3094 = vrot.lane.b32.xlu0 %v3048, 64
    %v3095 = vpop.permute.xlu0 %3094
    %3096 = vrot.lane.b32.xlu0 %v3049, 64
    %v3097 = vpop.permute.xlu0 %3096
    %v3114 = vadd.f32 %v2627, %v3067
    %v3115 = vadd.f32 %v2630, %v3069
    %v3116 = vadd.f32 %v2635, %v3071
    %v3117 = vadd.f32 %v2638, %v3073
    %v3118 = vadd.f32 %v2643, %v3075
    %v3119 = vadd.f32 %v2646, %v3077
    %v3120 = vadd.f32 %v2651, %v3079
    %v3121 = vadd.f32 %v2654, %v3081
    %v3122 = vadd.f32 %v2659, %v3083
    %v3123 = vadd.f32 %v2662, %v3085
    %v3124 = vadd.f32 %v2667, %v3087
    %v3125 = vadd.f32 %v2670, %v3089
    %v3126 = vadd.f32 %v2675, %v3091
    %v3127 = vadd.f32 %v2678, %v3093
    %v3128 = vadd.f32 %v2683, %v3095
    %v3129 = vadd.f32 %v2686, %v3097
    %v3130 = vtanh.pop %v3114
    %v3131 = vtanh.pop %v3115
    %v3132 = vtanh.pop %v3116
    %v3133 = vtanh.pop %v3117
    %v3134 = vtanh.pop %v3118
    %v3135 = vtanh.pop %v3119
    %v3136 = vtanh.pop %v3120
    %v3137 = vtanh.pop %v3121
    %v3138 = vtanh.pop %v3122
    %v3139 = vtanh.pop %v3123
    %v3140 = vtanh.pop %v3124
    %v3141 = vtanh.pop %v3125
    %v3142 = vtanh.pop %v3126
    %v3143 = vtanh.pop %v3127
    %v3144 = vtanh.pop %v3128
    %v3145 = vtanh.pop %v3129
    %v3146 = vsub.f32 1.0, %v2923
    %v3147 = vsub.f32 1.0, %v2925
    %v3148 = vsub.f32 1.0, %v2927
    %v3149 = vsub.f32 1.0, %v2929
    %v3150 = vsub.f32 1.0, %v2931
    %v3151 = vsub.f32 1.0, %v2933
    %v3152 = vsub.f32 1.0, %v2935
    %v3153 = vsub.f32 1.0, %v2937
    %v3154 = vsub.f32 1.0, %v2939
    %v3155 = vsub.f32 1.0, %v2941
    %v3156 = vsub.f32 1.0, %v2943
    %v3157 = vsub.f32 1.0, %v2945
    %v3158 = vsub.f32 1.0, %v2947
    %v3159 = vsub.f32 1.0, %v2949
    %v3160 = vsub.f32 1.0, %v2951
    %v3161 = vsub.f32 1.0, %v2953
    %3178 = vrot.lane.b32.xlu0 %v3130, 96
    %v3179 = vpop.permute.xlu0 %3178
    %3180 = vrot.lane.b32.xlu0 %v3131, 96
    %v3181 = vpop.permute.xlu0 %3180
    %3182 = vrot.lane.b32.xlu0 %v3132, 96
    %v3183 = vpop.permute.xlu0 %3182
    %3184 = vrot.lane.b32.xlu0 %v3133, 96
    %v3185 = vpop.permute.xlu0 %3184
    %3186 = vrot.lane.b32.xlu0 %v3134, 96
    %v3187 = vpop.permute.xlu0 %3186
    %3188 = vrot.lane.b32.xlu0 %v3135, 96
    %v3189 = vpop.permute.xlu0 %3188
    %3190 = vrot.lane.b32.xlu0 %v3136, 96
    %v3191 = vpop.permute.xlu0 %3190
    %3192 = vrot.lane.b32.xlu0 %v3137, 96
    %v3193 = vpop.permute.xlu0 %3192
    %3194 = vrot.lane.b32.xlu0 %v3138, 96
    %v3195 = vpop.permute.xlu0 %3194
    %3196 = vrot.lane.b32.xlu0 %v3139, 96
    %v3197 = vpop.permute.xlu0 %3196
    %3198 = vrot.lane.b32.xlu0 %v3140, 96
    %v3199 = vpop.permute.xlu0 %3198
    %3200 = vrot.lane.b32.xlu0 %v3141, 96
    %v3201 = vpop.permute.xlu0 %3200
    %3202 = vrot.lane.b32.xlu0 %v3142, 96
    %v3203 = vpop.permute.xlu0 %3202
    %3204 = vrot.lane.b32.xlu0 %v3143, 96
    %v3205 = vpop.permute.xlu0 %3204
    %3206 = vrot.lane.b32.xlu0 %v3144, 96
    %v3207 = vpop.permute.xlu0 %3206
    %3208 = vrot.lane.b32.xlu0 %v3145, 96
    %v3209 = vpop.permute.xlu0 %3208
    %v3226 = vmul.f32 %v3146, %v3179
    %v3227 = vmul.f32 %v3147, %v3181
    %v3228 = vmul.f32 %v3148, %v3183
    %v3229 = vmul.f32 %v3149, %v3185
    %v3230 = vmul.f32 %v3150, %v3187
    %v3231 = vmul.f32 %v3151, %v3189
    %v3232 = vmul.f32 %v3152, %v3191
    %v3233 = vmul.f32 %v3153, %v3193
    %v3234 = vmul.f32 %v3154, %v3195
    %v3235 = vmul.f32 %v3155, %v3197
    %v3236 = vmul.f32 %v3156, %v3199
    %v3237 = vmul.f32 %v3157, %v3201
    %v3238 = vmul.f32 %v3158, %v3203
    %v3239 = vmul.f32 %v3159, %v3205
    %v3240 = vmul.f32 %v3160, %v3207
    %v3241 = vmul.f32 %v3161, %v3209
    %v3242 = vmul.f32 %v2923, %v2448
    %v3243 = vmul.f32 %v2925, %v2449
    %v3244 = vmul.f32 %v2927, %v2450
    %v3245 = vmul.f32 %v2929, %v2451
    %v3246 = vmul.f32 %v2931, %v2452
    %v3247 = vmul.f32 %v2933, %v2453
    %v3248 = vmul.f32 %v2935, %v2454
    %v3249 = vmul.f32 %v2937, %v2455
    %v3250 = vmul.f32 %v2939, %v2456
    %v3251 = vmul.f32 %v2941, %v2457
    %v3252 = vmul.f32 %v2943, %v2458
    %v3253 = vmul.f32 %v2945, %v2459
    %v3254 = vmul.f32 %v2947, %v2460
    %v3255 = vmul.f32 %v2949, %v2461
    %v3256 = vmul.f32 %v2951, %v2462
    %v3257 = vmul.f32 %v2953, %v2463
    %v3258 = vadd.f32 %v3226, %v3242
    %v3259 = vadd.f32 %v3227, %v3243
    %v3260 = vadd.f32 %v3228, %v3244
    %v3261 = vadd.f32 %v3229, %v3245
    %v3262 = vadd.f32 %v3230, %v3246
    %v3263 = vadd.f32 %v3231, %v3247
    %v3264 = vadd.f32 %v3232, %v3248
    %v3265 = vadd.f32 %v3233, %v3249
    %v3266 = vadd.f32 %v3234, %v3250
    %v3267 = vadd.f32 %v3235, %v3251
    %v3268 = vadd.f32 %v3236, %v3252
    %v3269 = vadd.f32 %v3237, %v3253
    %v3270 = vadd.f32 %v3238, %v3254
    %v3271 = vadd.f32 %v3239, %v3255
    %v3272 = vadd.f32 %v3240, %v3256
    %v3273 = vadd.f32 %v3241, %v3257
    %3274 = vset.pattern.permute.xlu0 4
    %3275 = vperm.xlu0 %3274, %v28
    %v3276 = vpop.permute.xlu0 %3275
    %3277 = vset.pattern.permute.xlu0 4
    %3278 = vperm.xlu0 %3277, %v29
    %v3279 = vpop.permute.xlu0 %3278
    %3280 = vset.pattern.permute.xlu0 4
    %3281 = vperm.xlu0 %3280, %v30
    %v3282 = vpop.permute.xlu0 %3281
    %3283 = vset.pattern.permute.xlu0 4
    %3284 = vperm.xlu0 %3283, %v31
    %v3285 = vpop.permute.xlu0 %3284
    %3286 = vset.pattern.permute.xlu0 4
    %3287 = vperm.xlu0 %3286, %v32
    %v3288 = vpop.permute.xlu0 %3287
    %3289 = vset.pattern.permute.xlu0 4
    %3290 = vperm.xlu0 %3289, %v33
    %v3291 = vpop.permute.xlu0 %3290
    %3292 = vset.pattern.permute.xlu0 4
    %3293 = vperm.xlu0 %3292, %v34
    %v3294 = vpop.permute.xlu0 %3293
    %3295 = vset.pattern.permute.xlu0 4
    %3296 = vperm.xlu0 %3295, %v35
    %v3297 = vpop.permute.xlu0 %3296
    %3298 = vset.pattern.permute.xlu0 4
    %3299 = vperm.xlu0 %3298, %v36
    %v3300 = vpop.permute.xlu0 %3299
    %3301 = vset.pattern.permute.xlu0 4
    %3302 = vperm.xlu0 %3301, %v37
    %v3303 = vpop.permute.xlu0 %3302
    %3304 = vset.pattern.permute.xlu0 4
    %3305 = vperm.xlu0 %3304, %v38
    %v3306 = vpop.permute.xlu0 %3305
    %3307 = vset.pattern.permute.xlu0 4
    %3308 = vperm.xlu0 %3307, %v39
    %v3309 = vpop.permute.xlu0 %3308
    %3310 = vset.pattern.permute.xlu0 4
    %3311 = vperm.xlu0 %3310, %v40
    %v3312 = vpop.permute.xlu0 %3311
    %3313 = vset.pattern.permute.xlu0 4
    %3314 = vperm.xlu0 %3313, %v41
    %v3315 = vpop.permute.xlu0 %3314
    %3316 = vset.pattern.permute.xlu0 4
    %3317 = vperm.xlu0 %3316, %v42
    %v3318 = vpop.permute.xlu0 %3317
    %3319 = vset.pattern.permute.xlu0 4
    %3320 = vperm.xlu0 %3319, %v43
    %v3321 = vpop.permute.xlu0 %3320
    %vm3322 = vcmp.eq.s32.totalorder %v3276, %v45
    %vm3323 = vcmp.eq.s32.totalorder %v3279, %v45
    %vm3324 = vcmp.eq.s32.totalorder %v3282, %v45
    %vm3325 = vcmp.eq.s32.totalorder %v3285, %v45
    %vm3326 = vcmp.eq.s32.totalorder %v3288, %v45
    %vm3327 = vcmp.eq.s32.totalorder %v3291, %v45
    %vm3328 = vcmp.eq.s32.totalorder %v3294, %v45
    %vm3329 = vcmp.eq.s32.totalorder %v3297, %v45
    %vm3330 = vcmp.eq.s32.totalorder %v3300, %v45
    %vm3331 = vcmp.eq.s32.totalorder %v3303, %v45
    %vm3332 = vcmp.eq.s32.totalorder %v3306, %v45
    %vm3333 = vcmp.eq.s32.totalorder %v3309, %v45
    %vm3334 = vcmp.eq.s32.totalorder %v3312, %v45
    %vm3335 = vcmp.eq.s32.totalorder %v3315, %v45
    %vm3336 = vcmp.eq.s32.totalorder %v3318, %v45
    %vm3337 = vcmp.eq.s32.totalorder %v3321, %v45
    %v3338 = vsel %vm3322, 1, 0
    %v3339 = vsel %vm3323, 1, 0
    %v3340 = vsel %vm3324, 1, 0
    %v3341 = vsel %vm3325, 1, 0
    %v3342 = vsel %vm3326, 1, 0
    %v3343 = vsel %vm3327, 1, 0
    %v3344 = vsel %vm3328, 1, 0
    %v3345 = vsel %vm3329, 1, 0
    %v3346 = vsel %vm3330, 1, 0
    %v3347 = vsel %vm3331, 1, 0
    %v3348 = vsel %vm3332, 1, 0
    %v3349 = vsel %vm3333, 1, 0
    %v3350 = vsel %vm3334, 1, 0
    %v3351 = vsel %vm3335, 1, 0
    %v3352 = vsel %vm3336, 1, 0
    %v3353 = vsel %vm3337, 1, 0
    %v3354 = vcvt.s32.f32 %v3338
    %v3355 = vcvt.s32.f32 %v3339
    %v3356 = vcvt.s32.f32 %v3340
    %v3357 = vcvt.s32.f32 %v3341
    %v3358 = vcvt.s32.f32 %v3342
    %v3359 = vcvt.s32.f32 %v3343
    %v3360 = vcvt.s32.f32 %v3344
    %v3361 = vcvt.s32.f32 %v3345
    %v3362 = vcvt.s32.f32 %v3346
    %v3363 = vcvt.s32.f32 %v3347
    %v3364 = vcvt.s32.f32 %v3348
    %v3365 = vcvt.s32.f32 %v3349
    %v3366 = vcvt.s32.f32 %v3350
    %v3367 = vcvt.s32.f32 %v3351
    %v3368 = vcvt.s32.f32 %v3352
    %v3369 = vcvt.s32.f32 %v3353
    %v3370 = vpack.c.bf16 %v3355, %v3354
    %v3371 = vpack.c.bf16 %v3357, %v3356
    %v3372 = vpack.c.bf16 %v3359, %v3358
    %v3373 = vpack.c.bf16 %v3361, %v3360
    %v3374 = vpack.c.bf16 %v3363, %v3362
    %v3375 = vpack.c.bf16 %v3365, %v3364
    %v3376 = vpack.c.bf16 %v3367, %v3366
    %v3377 = vpack.c.bf16 %v3369, %v3368
    %v3379 = vsel %vm171, %v3370, 0
    %v3382 = vsel %vm171, %v3371, 0
    %v3385 = vsel %vm171, %v3372, 0
    %v3388 = vsel %vm171, %v3373, 0
    %v3391 = vsel %vm171, %v3374, 0
    %v3394 = vsel %vm171, %v3375, 0
    %v3397 = vsel %vm171, %v3376, 0
    %v3400 = vsel %vm171, %v3377, 0
    %3402 = vmatprep.subr.bf16.mxu0 0
    %3403 = vmatpush1.bf16.msra.mxu0 %v401
    %3404 = vmatprep.subr.bf16.mxu0 0
    %3405 = vmatpush1.bf16.msra.mxu0 0
    %3406 = vmatprep.subr.bf16.mxu0 0
    %3407 = vmatpush1.bf16.msra.mxu0 0
    %3408 = vmatprep.subr.bf16.mxu0 0
    %3409 = vmatpush1.bf16.msra.mxu0 0
    %3410 = vmatprep.subr.bf16.mxu0 0
    %3411 = vmatpush1.bf16.msra.mxu0 0
    %3412 = vmatprep.subr.bf16.mxu0 0
    %3413 = vmatpush1.bf16.msra.mxu0 0
    %3414 = vmatprep.subr.bf16.mxu0 0
    %3415 = vmatpush1.bf16.msra.mxu0 0
    %3416 = vmatprep.subr.bf16.mxu0 0
    %3417 = vmatpush1.bf16.msra.mxu0 0
    %3418 = vmatprep.subr.bf16.mxu0 0
    %3419 = vmatpush1.bf16.msra.mxu0 0
    %3420 = vmatprep.subr.bf16.mxu0 0
    %3421 = vmatpush1.bf16.msra.mxu0 0
    %3422 = vmatprep.subr.bf16.mxu0 0
    %3423 = vmatpush1.bf16.msra.mxu0 0
    %3424 = vmatprep.subr.bf16.mxu0 0
    %3425 = vmatpush1.bf16.msra.mxu0 0
    %3426 = vmatprep.subr.bf16.mxu0 0
    %3427 = vmatpush1.bf16.msra.mxu0 0
    %3428 = vmatprep.subr.bf16.mxu0 0
    %3429 = vmatpush1.bf16.msra.mxu0 0
    %3430 = vmatprep.subr.bf16.mxu0 0
    %3431 = vmatpush1.bf16.msra.mxu0 0
    %3432 = vmatprep.subr.bf16.mxu0 0
    %3433 = vmatpush1.bf16.msra.mxu0 0
    %3434 = vmatprep.mubr.bf16.mxu0 0
    %3435 = vmatmul.mubr.bf16.gmra.mrb[0].mxu0 %v3379
    %v3436 = vpop.f32.mrb[0].mxu0
    %v3437 = vadd.f32 0.0, %v3436
    %v3438 = vpop.f32.mrb[0].mxu0
    %v3439 = vpop.f32.mrb[0].mxu0
    %v3440 = vadd.f32 0.0, %v3439
    %v3441 = vpop.f32.mrb[0].mxu0
    %3442 = vmatprep.mubr.bf16.mxu0 0
    %3443 = vmatmul.mubr.bf16.gmra.mrb[0].mxu0 %v3382
    %v3444 = vpop.f32.mrb[0].mxu0
    %v3445 = vadd.f32 0.0, %v3444
    %v3446 = vpop.f32.mrb[0].mxu0
    %v3447 = vpop.f32.mrb[0].mxu0
    %v3448 = vadd.f32 0.0, %v3447
    %v3449 = vpop.f32.mrb[0].mxu0
    %3450 = vmatprep.mubr.bf16.mxu0 0
    %3451 = vmatmul.mubr.bf16.gmra.mrb[0].mxu0 %v3385
    %v3452 = vpop.f32.mrb[0].mxu0
    %v3453 = vadd.f32 0.0, %v3452
    %v3454 = vpop.f32.mrb[0].mxu0
    %v3455 = vpop.f32.mrb[0].mxu0
    %v3456 = vadd.f32 0.0, %v3455
    %v3457 = vpop.f32.mrb[0].mxu0
    %3458 = vmatprep.mubr.bf16.mxu0 0
    %3459 = vmatmul.mubr.bf16.gmra.mrb[0].mxu0 %v3388
    %v3460 = vpop.f32.mrb[0].mxu0
    %v3461 = vadd.f32 0.0, %v3460
    %v3462 = vpop.f32.mrb[0].mxu0
    %v3463 = vpop.f32.mrb[0].mxu0
    %v3464 = vadd.f32 0.0, %v3463
    %v3465 = vpop.f32.mrb[0].mxu0
    %3466 = vmatprep.mubr.bf16.mxu0 0
    %3467 = vmatmul.mubr.bf16.gmra.mrb[0].mxu0 %v3391
    %v3468 = vpop.f32.mrb[0].mxu0
    %v3469 = vadd.f32 0.0, %v3468
    %v3470 = vpop.f32.mrb[0].mxu0
    %v3471 = vpop.f32.mrb[0].mxu0
    %v3472 = vadd.f32 0.0, %v3471
    %v3473 = vpop.f32.mrb[0].mxu0
    %3474 = vmatprep.mubr.bf16.mxu0 0
    %3475 = vmatmul.mubr.bf16.gmra.mrb[0].mxu0 %v3394
    %v3476 = vpop.f32.mrb[0].mxu0
    %v3477 = vadd.f32 0.0, %v3476
    %v3478 = vpop.f32.mrb[0].mxu0
    %v3479 = vpop.f32.mrb[0].mxu0
    %v3480 = vadd.f32 0.0, %v3479
    %v3481 = vpop.f32.mrb[0].mxu0
    %3482 = vmatprep.mubr.bf16.mxu0 0
    %3483 = vmatmul.mubr.bf16.gmra.mrb[0].mxu0 %v3397
    %v3484 = vpop.f32.mrb[0].mxu0
    %v3485 = vadd.f32 0.0, %v3484
    %v3486 = vpop.f32.mrb[0].mxu0
    %v3487 = vpop.f32.mrb[0].mxu0
    %v3488 = vadd.f32 0.0, %v3487
    %v3489 = vpop.f32.mrb[0].mxu0
    %3490 = vmatprep.mubr.bf16.mxu0 0
    %3491 = vmatmul.mubr.bf16.gmra.mrb[0].mxu0 %v3400
    %v3492 = vpop.f32.mrb[0].mxu0
    %v3493 = vadd.f32 0.0, %v3492
    %v3494 = vpop.f32.mrb[0].mxu0
    %v3495 = vpop.f32.mrb[0].mxu0
    %v3496 = vadd.f32 0.0, %v3495
    %v3497 = vpop.f32.mrb[0].mxu0
    %3498 = vdwg.mxu0
    %v3499 = vpack.c.bf16 %v3259, %v3258
    %v3500 = vpack.c.bf16 %v3261, %v3260
    %v3501 = vpack.c.bf16 %v3263, %v3262
    %v3502 = vpack.c.bf16 %v3265, %v3264
    %v3503 = vpack.c.bf16 %v3267, %v3266
    %v3504 = vpack.c.bf16 %v3269, %v3268
    %v3505 = vpack.c.bf16 %v3271, %v3270
    %v3506 = vpack.c.bf16 %v3273, %v3272
    %3515 = vrot.lane.b32.xlu0 %v3499, 96
    %v3516 = vpop.permute.xlu0 %3515
    %3517 = vrot.lane.b32.xlu0 %v3500, 96
    %v3518 = vpop.permute.xlu0 %3517
    %3519 = vrot.lane.b32.xlu0 %v3501, 96
    %v3520 = vpop.permute.xlu0 %3519
    %3521 = vrot.lane.b32.xlu0 %v3502, 96
    %v3522 = vpop.permute.xlu0 %3521
    %3523 = vrot.lane.b32.xlu0 %v3503, 96
    %v3524 = vpop.permute.xlu0 %3523
    %3525 = vrot.lane.b32.xlu0 %v3504, 96
    %v3526 = vpop.permute.xlu0 %3525
    %3527 = vrot.lane.b32.xlu0 %v3505, 96
    %v3528 = vpop.permute.xlu0 %3527
    %3529 = vrot.lane.b32.xlu0 %v3506, 96
    %v3530 = vpop.permute.xlu0 %3529
    %v3532 = vsel %vm1097, %v3516, 0
    %v3535 = vsel %vm1097, %v3518, 0
    %v3538 = vsel %vm1097, %v3520, 0
    %v3541 = vsel %vm1097, %v3522, 0
    %v3544 = vsel %vm1097, %v3524, 0
    %v3547 = vsel %vm1097, %v3526, 0
    %v3550 = vsel %vm1097, %v3528, 0
    %v3553 = vsel %vm1097, %v3530, 0
    %3555 = vmatprep.subr.bf16.mxu0 0
    %3556 = vmatpush1.bf16.msra.mxu0 %v1093
    %3557 = vmatprep.subr.bf16.mxu0 0
    %3558 = vmatpush1.bf16.msra.mxu0 %v1094
    %3559 = vmatprep.subr.bf16.mxu0 0
    %3560 = vmatpush1.bf16.msra.mxu0 0
    %3561 = vmatprep.subr.bf16.mxu0 0
    %3562 = vmatpush1.bf16.msra.mxu0 0
    %3563 = vmatprep.subr.bf16.mxu0 0
    %3564 = vmatpush1.bf16.msra.mxu0 0
    %3565 = vmatprep.subr.bf16.mxu0 0
    %3566 = vmatpush1.bf16.msra.mxu0 0
    %3567 = vmatprep.subr.bf16.mxu0 0
    %3568 = vmatpush1.bf16.msra.mxu0 0
    %3569 = vmatprep.subr.bf16.mxu0 0
    %3570 = vmatpush1.bf16.msra.mxu0 0
    %3571 = vmatprep.subr.bf16.mxu0 0
    %3572 = vmatpush1.bf16.msra.mxu0 0
    %3573 = vmatprep.subr.bf16.mxu0 0
    %3574 = vmatpush1.bf16.msra.mxu0 0
    %3575 = vmatprep.subr.bf16.mxu0 0
    %3576 = vmatpush1.bf16.msra.mxu0 0
    %3577 = vmatprep.subr.bf16.mxu0 0
    %3578 = vmatpush1.bf16.msra.mxu0 0
    %3579 = vmatprep.subr.bf16.mxu0 0
    %3580 = vmatpush1.bf16.msra.mxu0 0
    %3581 = vmatprep.subr.bf16.mxu0 0
    %3582 = vmatpush1.bf16.msra.mxu0 0
    %3583 = vmatprep.subr.bf16.mxu0 0
    %3584 = vmatpush1.bf16.msra.mxu0 0
    %3585 = vmatprep.subr.bf16.mxu0 0
    %3586 = vmatpush1.bf16.msra.mxu0 0
    %3587 = vmatprep.mubr.bf16.mxu0 0
    %3588 = vmatmul.mubr.bf16.gmra.mrb[0].mxu0 %v3532
    %v3589 = vpop.f32.mrb[0].mxu0
    %v3590 = vadd.f32 0.0, %v3589
    %v3591 = vpop.f32.mrb[0].mxu0
    %v3592 = vpop.f32.mrb[0].mxu0
    %v3593 = vadd.f32 0.0, %v3592
    %v3594 = vpop.f32.mrb[0].mxu0
    %3595 = vmatprep.mubr.bf16.mxu0 0
    %3596 = vmatmul.mubr.bf16.gmra.mrb[0].mxu0 %v3535
    %v3597 = vpop.f32.mrb[0].mxu0
    %v3598 = vadd.f32 0.0, %v3597
    %v3599 = vpop.f32.mrb[0].mxu0
    %v3600 = vpop.f32.mrb[0].mxu0
    %v3601 = vadd.f32 0.0, %v3600
    %v3602 = vpop.f32.mrb[0].mxu0
    %3603 = vmatprep.mubr.bf16.mxu0 0
    %3604 = vmatmul.mubr.bf16.gmra.mrb[0].mxu0 %v3538
    %v3605 = vpop.f32.mrb[0].mxu0
    %v3606 = vadd.f32 0.0, %v3605
    %v3607 = vpop.f32.mrb[0].mxu0
    %v3608 = vpop.f32.mrb[0].mxu0
    %v3609 = vadd.f32 0.0, %v3608
    %v3610 = vpop.f32.mrb[0].mxu0
    %3611 = vmatprep.mubr.bf16.mxu0 0
    %3612 = vmatmul.mubr.bf16.gmra.mrb[0].mxu0 %v3541
    %v3613 = vpop.f32.mrb[0].mxu0
    %v3614 = vadd.f32 0.0, %v3613
    %v3615 = vpop.f32.mrb[0].mxu0
    %v3616 = vpop.f32.mrb[0].mxu0
    %v3617 = vadd.f32 0.0, %v3616
    %v3618 = vpop.f32.mrb[0].mxu0
    %3619 = vmatprep.mubr.bf16.mxu0 0
    %3620 = vmatmul.mubr.bf16.gmra.mrb[0].mxu0 %v3544
    %v3621 = vpop.f32.mrb[0].mxu0
    %v3622 = vadd.f32 0.0, %v3621
    %v3623 = vpop.f32.mrb[0].mxu0
    %v3624 = vpop.f32.mrb[0].mxu0
    %v3625 = vadd.f32 0.0, %v3624
    %v3626 = vpop.f32.mrb[0].mxu0
    %3627 = vmatprep.mubr.bf16.mxu0 0
    %3628 = vmatmul.mubr.bf16.gmra.mrb[0].mxu0 %v3547
    %v3629 = vpop.f32.mrb[0].mxu0
    %v3630 = vadd.f32 0.0, %v3629
    %v3631 = vpop.f32.mrb[0].mxu0
    %v3632 = vpop.f32.mrb[0].mxu0
    %v3633 = vadd.f32 0.0, %v3632
    %v3634 = vpop.f32.mrb[0].mxu0
    %3635 = vmatprep.mubr.bf16.mxu0 0
    %3636 = vmatmul.mubr.bf16.gmra.mrb[0].mxu0 %v3550
    %v3637 = vpop.f32.mrb[0].mxu0
    %v3638 = vadd.f32 0.0, %v3637
    %v3639 = vpop.f32.mrb[0].mxu0
    %v3640 = vpop.f32.mrb[0].mxu0
    %v3641 = vadd.f32 0.0, %v3640
    %v3642 = vpop.f32.mrb[0].mxu0
    %3643 = vmatprep.mubr.bf16.mxu0 0
    %3644 = vmatmul.mubr.bf16.gmra.mrb[0].mxu0 %v3553
    %v3645 = vpop.f32.mrb[0].mxu0
    %v3646 = vadd.f32 0.0, %v3645
    %v3647 = vpop.f32.mrb[0].mxu0
    %v3648 = vpop.f32.mrb[0].mxu0
    %v3649 = vadd.f32 0.0, %v3648
    %v3650 = vpop.f32.mrb[0].mxu0
    %3651 = vdwg.mxu0
    %v3652 = vadd.f32 %v3437, %v3590
    %v3653 = vadd.f32 %v3440, %v3593
    %v3654 = vadd.f32 %v3445, %v3598
    %v3655 = vadd.f32 %v3448, %v3601
    %v3656 = vadd.f32 %v3453, %v3606
    %v3657 = vadd.f32 %v3456, %v3609
    %v3658 = vadd.f32 %v3461, %v3614
    %v3659 = vadd.f32 %v3464, %v3617
    %v3660 = vadd.f32 %v3469, %v3622
    %v3661 = vadd.f32 %v3472, %v3625
    %v3662 = vadd.f32 %v3477, %v3630
    %v3663 = vadd.f32 %v3480, %v3633
    %v3664 = vadd.f32 %v3485, %v3638
    %v3665 = vadd.f32 %v3488, %v3641
    %v3666 = vadd.f32 %v3493, %v3646
    %v3667 = vadd.f32 %v3496, %v3649
    %v3668 = vxor.u32 %v3652, 2147483648
    %v3669 = vxor.u32 %v3653, 2147483648
    %v3670 = vxor.u32 %v3654, 2147483648
    %v3671 = vxor.u32 %v3655, 2147483648
    %v3672 = vxor.u32 %v3656, 2147483648
    %v3673 = vxor.u32 %v3657, 2147483648
    %v3674 = vxor.u32 %v3658, 2147483648
    %v3675 = vxor.u32 %v3659, 2147483648
    %v3676 = vxor.u32 %v3660, 2147483648
    %v3677 = vxor.u32 %v3661, 2147483648
    %v3678 = vxor.u32 %v3662, 2147483648
    %v3679 = vxor.u32 %v3663, 2147483648
    %v3680 = vxor.u32 %v3664, 2147483648
    %v3681 = vxor.u32 %v3665, 2147483648
    %v3682 = vxor.u32 %v3666, 2147483648
    %v3683 = vxor.u32 %v3667, 2147483648
    %v3684 = vmul.f32 %v3668, 1.442695
    %v3685 = vpow.pop %v3684
    %v3686 = vmul.f32 %v3669, 1.442695
    %v3687 = vpow.pop %v3686
    %v3688 = vmul.f32 %v3670, 1.442695
    %v3689 = vpow.pop %v3688
    %v3690 = vmul.f32 %v3671, 1.442695
    %v3691 = vpow.pop %v3690
    %v3692 = vmul.f32 %v3672, 1.442695
    %v3693 = vpow.pop %v3692
    %v3694 = vmul.f32 %v3673, 1.442695
    %v3695 = vpow.pop %v3694
    %v3696 = vmul.f32 %v3674, 1.442695
    %v3697 = vpow.pop %v3696
    %v3698 = vmul.f32 %v3675, 1.442695
    %v3699 = vpow.pop %v3698
    %v3700 = vmul.f32 %v3676, 1.442695
    %v3701 = vpow.pop %v3700
    %v3702 = vmul.f32 %v3677, 1.442695
    %v3703 = vpow.pop %v3702
    %v3704 = vmul.f32 %v3678, 1.442695
    %v3705 = vpow.pop %v3704
    %v3706 = vmul.f32 %v3679, 1.442695
    %v3707 = vpow.pop %v3706
    %v3708 = vmul.f32 %v3680, 1.442695
    %v3709 = vpow.pop %v3708
    %v3710 = vmul.f32 %v3681, 1.442695
    %v3711 = vpow.pop %v3710
    %v3712 = vmul.f32 %v3682, 1.442695
    %v3713 = vpow.pop %v3712
    %v3714 = vmul.f32 %v3683, 1.442695
    %v3715 = vpow.pop %v3714
    %v3716 = vadd.f32 %v3685, 1.0
    %v3717 = vadd.f32 %v3687, 1.0
    %v3718 = vadd.f32 %v3689, 1.0
    %v3719 = vadd.f32 %v3691, 1.0
    %v3720 = vadd.f32 %v3693, 1.0
    %v3721 = vadd.f32 %v3695, 1.0
    %v3722 = vadd.f32 %v3697, 1.0
    %v3723 = vadd.f32 %v3699, 1.0
    %v3724 = vadd.f32 %v3701, 1.0
    %v3725 = vadd.f32 %v3703, 1.0
    %v3726 = vadd.f32 %v3705, 1.0
    %v3727 = vadd.f32 %v3707, 1.0
    %v3728 = vadd.f32 %v3709, 1.0
    %v3729 = vadd.f32 %v3711, 1.0
    %v3730 = vadd.f32 %v3713, 1.0
    %v3731 = vadd.f32 %v3715, 1.0
    %v3732 = vrcp.pop %v3716
    %v3733 = vmul.f32 1.0, %v3732
    %v3734 = vrcp.pop %v3717
    %v3735 = vmul.f32 1.0, %v3734
    %v3736 = vrcp.pop %v3718
    %v3737 = vmul.f32 1.0, %v3736
    %v3738 = vrcp.pop %v3719
    %v3739 = vmul.f32 1.0, %v3738
    %v3740 = vrcp.pop %v3720
    %v3741 = vmul.f32 1.0, %v3740
    %v3742 = vrcp.pop %v3721
    %v3743 = vmul.f32 1.0, %v3742
    %v3744 = vrcp.pop %v3722
    %v3745 = vmul.f32 1.0, %v3744
    %v3746 = vrcp.pop %v3723
    %v3747 = vmul.f32 1.0, %v3746
    %v3748 = vrcp.pop %v3724
    %v3749 = vmul.f32 1.0, %v3748
    %v3750 = vrcp.pop %v3725
    %v3751 = vmul.f32 1.0, %v3750
    %v3752 = vrcp.pop %v3726
    %v3753 = vmul.f32 1.0, %v3752
    %v3754 = vrcp.pop %v3727
    %v3755 = vmul.f32 1.0, %v3754
    %v3756 = vrcp.pop %v3728
    %v3757 = vmul.f32 1.0, %v3756
    %v3758 = vrcp.pop %v3729
    %v3759 = vmul.f32 1.0, %v3758
    %v3760 = vrcp.pop %v3730
    %v3761 = vmul.f32 1.0, %v3760
    %v3762 = vrcp.pop %v3731
    %v3763 = vmul.f32 1.0, %v3762
    %v3764 = vadd.f32 %v3590, %v1332
    %v3765 = vadd.f32 %v3593, %v1332
    %v3766 = vadd.f32 %v3598, %v1332
    %v3767 = vadd.f32 %v3601, %v1332
    %v3768 = vadd.f32 %v3606, %v1332
    %v3769 = vadd.f32 %v3609, %v1332
    %v3770 = vadd.f32 %v3614, %v1332
    %v3771 = vadd.f32 %v3617, %v1332
    %v3772 = vadd.f32 %v3622, %v1332
    %v3773 = vadd.f32 %v3625, %v1332
    %v3774 = vadd.f32 %v3630, %v1332
    %v3775 = vadd.f32 %v3633, %v1332
    %v3776 = vadd.f32 %v3638, %v1332
    %v3777 = vadd.f32 %v3641, %v1332
    %v3778 = vadd.f32 %v3646, %v1332
    %v3779 = vadd.f32 %v3649, %v1332
    %3796 = vrot.lane.b32.xlu0 %v3764, 64
    %v3797 = vpop.permute.xlu0 %3796
    %3798 = vrot.lane.b32.xlu0 %v3765, 64
    %v3799 = vpop.permute.xlu0 %3798
    %3800 = vrot.lane.b32.xlu0 %v3766, 64
    %v3801 = vpop.permute.xlu0 %3800
    %3802 = vrot.lane.b32.xlu0 %v3767, 64
    %v3803 = vpop.permute.xlu0 %3802
    %3804 = vrot.lane.b32.xlu0 %v3768, 64
    %v3805 = vpop.permute.xlu0 %3804
    %3806 = vrot.lane.b32.xlu0 %v3769, 64
    %v3807 = vpop.permute.xlu0 %3806
    %3808 = vrot.lane.b32.xlu0 %v3770, 64
    %v3809 = vpop.permute.xlu0 %3808
    %3810 = vrot.lane.b32.xlu0 %v3771, 64
    %v3811 = vpop.permute.xlu0 %3810
    %3812 = vrot.lane.b32.xlu0 %v3772, 64
    %v3813 = vpop.permute.xlu0 %3812
    %3814 = vrot.lane.b32.xlu0 %v3773, 64
    %v3815 = vpop.permute.xlu0 %3814
    %3816 = vrot.lane.b32.xlu0 %v3774, 64
    %v3817 = vpop.permute.xlu0 %3816
    %3818 = vrot.lane.b32.xlu0 %v3775, 64
    %v3819 = vpop.permute.xlu0 %3818
    %3820 = vrot.lane.b32.xlu0 %v3776, 64
    %v3821 = vpop.permute.xlu0 %3820
    %3822 = vrot.lane.b32.xlu0 %v3777, 64
    %v3823 = vpop.permute.xlu0 %3822
    %3824 = vrot.lane.b32.xlu0 %v3778, 64
    %v3825 = vpop.permute.xlu0 %3824
    %3826 = vrot.lane.b32.xlu0 %v3779, 64
    %v3827 = vpop.permute.xlu0 %3826
    %v3844 = vmul.f32 %v3733, %v3797
    %v3845 = vmul.f32 %v3735, %v3799
    %v3846 = vmul.f32 %v3737, %v3801
    %v3847 = vmul.f32 %v3739, %v3803
    %v3848 = vmul.f32 %v3741, %v3805
    %v3849 = vmul.f32 %v3743, %v3807
    %v3850 = vmul.f32 %v3745, %v3809
    %v3851 = vmul.f32 %v3747, %v3811
    %v3852 = vmul.f32 %v3749, %v3813
    %v3853 = vmul.f32 %v3751, %v3815
    %v3854 = vmul.f32 %v3753, %v3817
    %v3855 = vmul.f32 %v3755, %v3819
    %v3856 = vmul.f32 %v3757, %v3821
    %v3857 = vmul.f32 %v3759, %v3823
    %v3858 = vmul.f32 %v3761, %v3825
    %v3859 = vmul.f32 %v3763, %v3827
    %3876 = vrot.lane.b32.xlu0 %v3844, 64
    %v3877 = vpop.permute.xlu0 %3876
    %3878 = vrot.lane.b32.xlu0 %v3845, 64
    %v3879 = vpop.permute.xlu0 %3878
    %3880 = vrot.lane.b32.xlu0 %v3846, 64
    %v3881 = vpop.permute.xlu0 %3880
    %3882 = vrot.lane.b32.xlu0 %v3847, 64
    %v3883 = vpop.permute.xlu0 %3882
    %3884 = vrot.lane.b32.xlu0 %v3848, 64
    %v3885 = vpop.permute.xlu0 %3884
    %3886 = vrot.lane.b32.xlu0 %v3849, 64
    %v3887 = vpop.permute.xlu0 %3886
    %3888 = vrot.lane.b32.xlu0 %v3850, 64
    %v3889 = vpop.permute.xlu0 %3888
    %3890 = vrot.lane.b32.xlu0 %v3851, 64
    %v3891 = vpop.permute.xlu0 %3890
    %3892 = vrot.lane.b32.xlu0 %v3852, 64
    %v3893 = vpop.permute.xlu0 %3892
    %3894 = vrot.lane.b32.xlu0 %v3853, 64
    %v3895 = vpop.permute.xlu0 %3894
    %3896 = vrot.lane.b32.xlu0 %v3854, 64
    %v3897 = vpop.permute.xlu0 %3896
    %3898 = vrot.lane.b32.xlu0 %v3855, 64
    %v3899 = vpop.permute.xlu0 %3898
    %3900 = vrot.lane.b32.xlu0 %v3856, 64
    %v3901 = vpop.permute.xlu0 %3900
    %3902 = vrot.lane.b32.xlu0 %v3857, 64
    %v3903 = vpop.permute.xlu0 %3902
    %3904 = vrot.lane.b32.xlu0 %v3858, 64
    %v3905 = vpop.permute.xlu0 %3904
    %3906 = vrot.lane.b32.xlu0 %v3859, 64
    %v3907 = vpop.permute.xlu0 %3906
    %v3924 = vadd.f32 %v3437, %v3877
    %v3925 = vadd.f32 %v3440, %v3879
    %v3926 = vadd.f32 %v3445, %v3881
    %v3927 = vadd.f32 %v3448, %v3883
    %v3928 = vadd.f32 %v3453, %v3885
    %v3929 = vadd.f32 %v3456, %v3887
    %v3930 = vadd.f32 %v3461, %v3889
    %v3931 = vadd.f32 %v3464, %v3891
    %v3932 = vadd.f32 %v3469, %v3893
    %v3933 = vadd.f32 %v3472, %v3895
    %v3934 = vadd.f32 %v3477, %v3897
    %v3935 = vadd.f32 %v3480, %v3899
    %v3936 = vadd.f32 %v3485, %v3901
    %v3937 = vadd.f32 %v3488, %v3903
    %v3938 = vadd.f32 %v3493, %v3905
    %v3939 = vadd.f32 %v3496, %v3907
    %v3940 = vtanh.pop %v3924
    %v3941 = vtanh.pop %v3925
    %v3942 = vtanh.pop %v3926
    %v3943 = vtanh.pop %v3927
    %v3944 = vtanh.pop %v3928
    %v3945 = vtanh.pop %v3929
    %v3946 = vtanh.pop %v3930
    %v3947 = vtanh.pop %v3931
    %v3948 = vtanh.pop %v3932
    %v3949 = vtanh.pop %v3933
    %v3950 = vtanh.pop %v3934
    %v3951 = vtanh.pop %v3935
    %v3952 = vtanh.pop %v3936
    %v3953 = vtanh.pop %v3937
    %v3954 = vtanh.pop %v3938
    %v3955 = vtanh.pop %v3939
    %v3956 = vsub.f32 1.0, %v3733
    %v3957 = vsub.f32 1.0, %v3735
    %v3958 = vsub.f32 1.0, %v3737
    %v3959 = vsub.f32 1.0, %v3739
    %v3960 = vsub.f32 1.0, %v3741
    %v3961 = vsub.f32 1.0, %v3743
    %v3962 = vsub.f32 1.0, %v3745
    %v3963 = vsub.f32 1.0, %v3747
    %v3964 = vsub.f32 1.0, %v3749
    %v3965 = vsub.f32 1.0, %v3751
    %v3966 = vsub.f32 1.0, %v3753
    %v3967 = vsub.f32 1.0, %v3755
    %v3968 = vsub.f32 1.0, %v3757
    %v3969 = vsub.f32 1.0, %v3759
    %v3970 = vsub.f32 1.0, %v3761
    %v3971 = vsub.f32 1.0, %v3763
    %3988 = vrot.lane.b32.xlu0 %v3940, 96
    %v3989 = vpop.permute.xlu0 %3988
    %3990 = vrot.lane.b32.xlu0 %v3941, 96
    %v3991 = vpop.permute.xlu0 %3990
    %3992 = vrot.lane.b32.xlu0 %v3942, 96
    %v3993 = vpop.permute.xlu0 %3992
    %3994 = vrot.lane.b32.xlu0 %v3943, 96
    %v3995 = vpop.permute.xlu0 %3994
    %3996 = vrot.lane.b32.xlu0 %v3944, 96
    %v3997 = vpop.permute.xlu0 %3996
    %3998 = vrot.lane.b32.xlu0 %v3945, 96
    %v3999 = vpop.permute.xlu0 %3998
    %4000 = vrot.lane.b32.xlu0 %v3946, 96
    %v4001 = vpop.permute.xlu0 %4000
    %4002 = vrot.lane.b32.xlu0 %v3947, 96
    %v4003 = vpop.permute.xlu0 %4002
    %4004 = vrot.lane.b32.xlu0 %v3948, 96
    %v4005 = vpop.permute.xlu0 %4004
    %4006 = vrot.lane.b32.xlu0 %v3949, 96
    %v4007 = vpop.permute.xlu0 %4006
    %4008 = vrot.lane.b32.xlu0 %v3950, 96
    %v4009 = vpop.permute.xlu0 %4008
    %4010 = vrot.lane.b32.xlu0 %v3951, 96
    %v4011 = vpop.permute.xlu0 %4010
    %4012 = vrot.lane.b32.xlu0 %v3952, 96
    %v4013 = vpop.permute.xlu0 %4012
    %4014 = vrot.lane.b32.xlu0 %v3953, 96
    %v4015 = vpop.permute.xlu0 %4014
    %4016 = vrot.lane.b32.xlu0 %v3954, 96
    %v4017 = vpop.permute.xlu0 %4016
    %4018 = vrot.lane.b32.xlu0 %v3955, 96
    %v4019 = vpop.permute.xlu0 %4018
    %v4036 = vmul.f32 %v3956, %v3989
    %v4037 = vmul.f32 %v3957, %v3991
    %v4038 = vmul.f32 %v3958, %v3993
    %v4039 = vmul.f32 %v3959, %v3995
    %v4040 = vmul.f32 %v3960, %v3997
    %v4041 = vmul.f32 %v3961, %v3999
    %v4042 = vmul.f32 %v3962, %v4001
    %v4043 = vmul.f32 %v3963, %v4003
    %v4044 = vmul.f32 %v3964, %v4005
    %v4045 = vmul.f32 %v3965, %v4007
    %v4046 = vmul.f32 %v3966, %v4009
    %v4047 = vmul.f32 %v3967, %v4011
    %v4048 = vmul.f32 %v3968, %v4013
    %v4049 = vmul.f32 %v3969, %v4015
    %v4050 = vmul.f32 %v3970, %v4017
    %v4051 = vmul.f32 %v3971, %v4019
    %v4052 = vmul.f32 %v3733, %v3258
    %v4053 = vmul.f32 %v3735, %v3259
    %v4054 = vmul.f32 %v3737, %v3260
    %v4055 = vmul.f32 %v3739, %v3261
    %v4056 = vmul.f32 %v3741, %v3262
    %v4057 = vmul.f32 %v3743, %v3263
    %v4058 = vmul.f32 %v3745, %v3264
    %v4059 = vmul.f32 %v3747, %v3265
    %v4060 = vmul.f32 %v3749, %v3266
    %v4061 = vmul.f32 %v3751, %v3267
    %v4062 = vmul.f32 %v3753, %v3268
    %v4063 = vmul.f32 %v3755, %v3269
    %v4064 = vmul.f32 %v3757, %v3270
    %v4065 = vmul.f32 %v3759, %v3271
    %v4066 = vmul.f32 %v3761, %v3272
    %v4067 = vmul.f32 %v3763, %v3273
    %v4068 = vadd.f32 %v4036, %v4052
    %v4069 = vadd.f32 %v4037, %v4053
    %v4070 = vadd.f32 %v4038, %v4054
    %v4071 = vadd.f32 %v4039, %v4055
    %v4072 = vadd.f32 %v4040, %v4056
    %v4073 = vadd.f32 %v4041, %v4057
    %v4074 = vadd.f32 %v4042, %v4058
    %v4075 = vadd.f32 %v4043, %v4059
    %v4076 = vadd.f32 %v4044, %v4060
    %v4077 = vadd.f32 %v4045, %v4061
    %v4078 = vadd.f32 %v4046, %v4062
    %v4079 = vadd.f32 %v4047, %v4063
    %v4080 = vadd.f32 %v4048, %v4064
    %v4081 = vadd.f32 %v4049, %v4065
    %v4082 = vadd.f32 %v4050, %v4066
    %v4083 = vadd.f32 %v4051, %v4067
    %4084 = vset.pattern.permute.xlu0 5
    %4085 = vperm.xlu0 %4084, %v28
    %v4086 = vpop.permute.xlu0 %4085
    %4087 = vset.pattern.permute.xlu0 5
    %4088 = vperm.xlu0 %4087, %v29
    %v4089 = vpop.permute.xlu0 %4088
    %4090 = vset.pattern.permute.xlu0 5
    %4091 = vperm.xlu0 %4090, %v30
    %v4092 = vpop.permute.xlu0 %4091
    %4093 = vset.pattern.permute.xlu0 5
    %4094 = vperm.xlu0 %4093, %v31
    %v4095 = vpop.permute.xlu0 %4094
    %4096 = vset.pattern.permute.xlu0 5
    %4097 = vperm.xlu0 %4096, %v32
    %v4098 = vpop.permute.xlu0 %4097
    %4099 = vset.pattern.permute.xlu0 5
    %4100 = vperm.xlu0 %4099, %v33
    %v4101 = vpop.permute.xlu0 %4100
    %4102 = vset.pattern.permute.xlu0 5
    %4103 = vperm.xlu0 %4102, %v34
    %v4104 = vpop.permute.xlu0 %4103
    %4105 = vset.pattern.permute.xlu0 5
    %4106 = vperm.xlu0 %4105, %v35
    %v4107 = vpop.permute.xlu0 %4106
    %4108 = vset.pattern.permute.xlu0 5
    %4109 = vperm.xlu0 %4108, %v36
    %v4110 = vpop.permute.xlu0 %4109
    %4111 = vset.pattern.permute.xlu0 5
    %4112 = vperm.xlu0 %4111, %v37
    %v4113 = vpop.permute.xlu0 %4112
    %4114 = vset.pattern.permute.xlu0 5
    %4115 = vperm.xlu0 %4114, %v38
    %v4116 = vpop.permute.xlu0 %4115
    %4117 = vset.pattern.permute.xlu0 5
    %4118 = vperm.xlu0 %4117, %v39
    %v4119 = vpop.permute.xlu0 %4118
    %4120 = vset.pattern.permute.xlu0 5
    %4121 = vperm.xlu0 %4120, %v40
    %v4122 = vpop.permute.xlu0 %4121
    %4123 = vset.pattern.permute.xlu0 5
    %4124 = vperm.xlu0 %4123, %v41
    %v4125 = vpop.permute.xlu0 %4124
    %4126 = vset.pattern.permute.xlu0 5
    %4127 = vperm.xlu0 %4126, %v42
    %v4128 = vpop.permute.xlu0 %4127
    %4129 = vset.pattern.permute.xlu0 5
    %4130 = vperm.xlu0 %4129, %v43
    %v4131 = vpop.permute.xlu0 %4130
    %vm4132 = vcmp.eq.s32.totalorder %v4086, %v45
    %vm4133 = vcmp.eq.s32.totalorder %v4089, %v45
    %vm4134 = vcmp.eq.s32.totalorder %v4092, %v45
    %vm4135 = vcmp.eq.s32.totalorder %v4095, %v45
    %vm4136 = vcmp.eq.s32.totalorder %v4098, %v45
    %vm4137 = vcmp.eq.s32.totalorder %v4101, %v45
    %vm4138 = vcmp.eq.s32.totalorder %v4104, %v45
    %vm4139 = vcmp.eq.s32.totalorder %v4107, %v45
    %vm4140 = vcmp.eq.s32.totalorder %v4110, %v45
    %vm4141 = vcmp.eq.s32.totalorder %v4113, %v45
    %vm4142 = vcmp.eq.s32.totalorder %v4116, %v45
    %vm4143 = vcmp.eq.s32.totalorder %v4119, %v45
    %vm4144 = vcmp.eq.s32.totalorder %v4122, %v45
    %vm4145 = vcmp.eq.s32.totalorder %v4125, %v45
    %vm4146 = vcmp.eq.s32.totalorder %v4128, %v45
    %vm4147 = vcmp.eq.s32.totalorder %v4131, %v45
    %v4148 = vsel %vm4132, 1, 0
    %v4149 = vsel %vm4133, 1, 0
    %v4150 = vsel %vm4134, 1, 0
    %v4151 = vsel %vm4135, 1, 0
    %v4152 = vsel %vm4136, 1, 0
    %v4153 = vsel %vm4137, 1, 0
    %v4154 = vsel %vm4138, 1, 0
    %v4155 = vsel %vm4139, 1, 0
    %v4156 = vsel %vm4140, 1, 0
    %v4157 = vsel %vm4141, 1, 0
    %v4158 = vsel %vm4142, 1, 0
    %v4159 = vsel %vm4143, 1, 0
    %v4160 = vsel %vm4144, 1, 0
    %v4161 = vsel %vm4145, 1, 0
    %v4162 = vsel %vm4146, 1, 0
    %v4163 = vsel %vm4147, 1, 0
    %v4164 = vcvt.s32.f32 %v4148
    %v4165 = vcvt.s32.f32 %v4149
    %v4166 = vcvt.s32.f32 %v4150
    %v4167 = vcvt.s32.f32 %v4151
    %v4168 = vcvt.s32.f32 %v4152
    %v4169 = vcvt.s32.f32 %v4153
    %v4170 = vcvt.s32.f32 %v4154
    %v4171 = vcvt.s32.f32 %v4155
    %v4172 = vcvt.s32.f32 %v4156
    %v4173 = vcvt.s32.f32 %v4157
    %v4174 = vcvt.s32.f32 %v4158
    %v4175 = vcvt.s32.f32 %v4159
    %v4176 = vcvt.s32.f32 %v4160
    %v4177 = vcvt.s32.f32 %v4161
    %v4178 = vcvt.s32.f32 %v4162
    %v4179 = vcvt.s32.f32 %v4163
    %v4180 = vpack.c.bf16 %v4165, %v4164
    %v4181 = vpack.c.bf16 %v4167, %v4166
    %v4182 = vpack.c.bf16 %v4169, %v4168
    %v4183 = vpack.c.bf16 %v4171, %v4170
    %v4184 = vpack.c.bf16 %v4173, %v4172
    %v4185 = vpack.c.bf16 %v4175, %v4174
    %v4186 = vpack.c.bf16 %v4177, %v4176
    %v4187 = vpack.c.bf16 %v4179, %v4178
    %v4189 = vsel %vm171, %v4180, 0
    %v4192 = vsel %vm171, %v4181, 0
    %v4195 = vsel %vm171, %v4182, 0
    %v4198 = vsel %vm171, %v4183, 0
    %v4201 = vsel %vm171, %v4184, 0
    %v4204 = vsel %vm171, %v4185, 0
    %v4207 = vsel %vm171, %v4186, 0
    %v4210 = vsel %vm171, %v4187, 0
    %4212 = vmatprep.subr.bf16.mxu0 0
    %4213 = vmatpush1.bf16.msra.mxu0 %v401
    %4214 = vmatprep.subr.bf16.mxu0 0
    %4215 = vmatpush1.bf16.msra.mxu0 0
    %4216 = vmatprep.subr.bf16.mxu0 0
    %4217 = vmatpush1.bf16.msra.mxu0 0
    %4218 = vmatprep.subr.bf16.mxu0 0
    %4219 = vmatpush1.bf16.msra.mxu0 0
    %4220 = vmatprep.subr.bf16.mxu0 0
    %4221 = vmatpush1.bf16.msra.mxu0 0
    %4222 = vmatprep.subr.bf16.mxu0 0
    %4223 = vmatpush1.bf16.msra.mxu0 0
    %4224 = vmatprep.subr.bf16.mxu0 0
    %4225 = vmatpush1.bf16.msra.mxu0 0
    %4226 = vmatprep.subr.bf16.mxu0 0
    %4227 = vmatpush1.bf16.msra.mxu0 0
    %4228 = vmatprep.subr.bf16.mxu0 0
    %4229 = vmatpush1.bf16.msra.mxu0 0
    %4230 = vmatprep.subr.bf16.mxu0 0
    %4231 = vmatpush1.bf16.msra.mxu0 0
    %4232 = vmatprep.subr.bf16.mxu0 0
    %4233 = vmatpush1.bf16.msra.mxu0 0
    %4234 = vmatprep.subr.bf16.mxu0 0
    %4235 = vmatpush1.bf16.msra.mxu0 0
    %4236 = vmatprep.subr.bf16.mxu0 0
    %4237 = vmatpush1.bf16.msra.mxu0 0
    %4238 = vmatprep.subr.bf16.mxu0 0
    %4239 = vmatpush1.bf16.msra.mxu0 0
    %4240 = vmatprep.subr.bf16.mxu0 0
    %4241 = vmatpush1.bf16.msra.mxu0 0
    %4242 = vmatprep.subr.bf16.mxu0 0
    %4243 = vmatpush1.bf16.msra.mxu0 0
    %4244 = vmatprep.mubr.bf16.mxu0 0
    %4245 = vmatmul.mubr.bf16.gmra.mrb[0].mxu0 %v4189
    %v4246 = vpop.f32.mrb[0].mxu0
    %v4247 = vadd.f32 0.0, %v4246
    %v4248 = vpop.f32.mrb[0].mxu0
    %v4249 = vpop.f32.mrb[0].mxu0
    %v4250 = vadd.f32 0.0, %v4249
    %v4251 = vpop.f32.mrb[0].mxu0
    %4252 = vmatprep.mubr.bf16.mxu0 0
    %4253 = vmatmul.mubr.bf16.gmra.mrb[0].mxu0 %v4192
    %v4254 = vpop.f32.mrb[0].mxu0
    %v4255 = vadd.f32 0.0, %v4254
    %v4256 = vpop.f32.mrb[0].mxu0
    %v4257 = vpop.f32.mrb[0].mxu0
    %v4258 = vadd.f32 0.0, %v4257
    %v4259 = vpop.f32.mrb[0].mxu0
    %4260 = vmatprep.mubr.bf16.mxu0 0
    %4261 = vmatmul.mubr.bf16.gmra.mrb[0].mxu0 %v4195
    %v4262 = vpop.f32.mrb[0].mxu0
    %v4263 = vadd.f32 0.0, %v4262
    %v4264 = vpop.f32.mrb[0].mxu0
    %v4265 = vpop.f32.mrb[0].mxu0
    %v4266 = vadd.f32 0.0, %v4265
    %v4267 = vpop.f32.mrb[0].mxu0
    %4268 = vmatprep.mubr.bf16.mxu0 0
    %4269 = vmatmul.mubr.bf16.gmra.mrb[0].mxu0 %v4198
    %v4270 = vpop.f32.mrb[0].mxu0
    %v4271 = vadd.f32 0.0, %v4270
    %v4272 = vpop.f32.mrb[0].mxu0
    %v4273 = vpop.f32.mrb[0].mxu0
    %v4274 = vadd.f32 0.0, %v4273
    %v4275 = vpop.f32.mrb[0].mxu0
    %4276 = vmatprep.mubr.bf16.mxu0 0
    %4277 = vmatmul.mubr.bf16.gmra.mrb[0].mxu0 %v4201
    %v4278 = vpop.f32.mrb[0].mxu0
    %v4279 = vadd.f32 0.0, %v4278
    %v4280 = vpop.f32.mrb[0].mxu0
    %v4281 = vpop.f32.mrb[0].mxu0
    %v4282 = vadd.f32 0.0, %v4281
    %v4283 = vpop.f32.mrb[0].mxu0
    %4284 = vmatprep.mubr.bf16.mxu0 0
    %4285 = vmatmul.mubr.bf16.gmra.mrb[0].mxu0 %v4204
    %v4286 = vpop.f32.mrb[0].mxu0
    %v4287 = vadd.f32 0.0, %v4286
    %v4288 = vpop.f32.mrb[0].mxu0
    %v4289 = vpop.f32.mrb[0].mxu0
    %v4290 = vadd.f32 0.0, %v4289
    %v4291 = vpop.f32.mrb[0].mxu0
    %4292 = vmatprep.mubr.bf16.mxu0 0
    %4293 = vmatmul.mubr.bf16.gmra.mrb[0].mxu0 %v4207
    %v4294 = vpop.f32.mrb[0].mxu0
    %v4295 = vadd.f32 0.0, %v4294
    %v4296 = vpop.f32.mrb[0].mxu0
    %v4297 = vpop.f32.mrb[0].mxu0
    %v4298 = vadd.f32 0.0, %v4297
    %v4299 = vpop.f32.mrb[0].mxu0
    %4300 = vmatprep.mubr.bf16.mxu0 0
    %4301 = vmatmul.mubr.bf16.gmra.mrb[0].mxu0 %v4210
    %v4302 = vpop.f32.mrb[0].mxu0
    %v4303 = vadd.f32 0.0, %v4302
    %v4304 = vpop.f32.mrb[0].mxu0
    %v4305 = vpop.f32.mrb[0].mxu0
    %v4306 = vadd.f32 0.0, %v4305
    %v4307 = vpop.f32.mrb[0].mxu0
    %4308 = vdwg.mxu0
    %v4309 = vpack.c.bf16 %v4069, %v4068
    %v4310 = vpack.c.bf16 %v4071, %v4070
    %v4311 = vpack.c.bf16 %v4073, %v4072
    %v4312 = vpack.c.bf16 %v4075, %v4074
    %v4313 = vpack.c.bf16 %v4077, %v4076
    %v4314 = vpack.c.bf16 %v4079, %v4078
    %v4315 = vpack.c.bf16 %v4081, %v4080
    %v4316 = vpack.c.bf16 %v4083, %v4082
    %4325 = vrot.lane.b32.xlu0 %v4309, 96
    %v4326 = vpop.permute.xlu0 %4325
    %4327 = vrot.lane.b32.xlu0 %v4310, 96
    %v4328 = vpop.permute.xlu0 %4327
    %4329 = vrot.lane.b32.xlu0 %v4311, 96
    %v4330 = vpop.permute.xlu0 %4329
    %4331 = vrot.lane.b32.xlu0 %v4312, 96
    %v4332 = vpop.permute.xlu0 %4331
    %4333 = vrot.lane.b32.xlu0 %v4313, 96
    %v4334 = vpop.permute.xlu0 %4333
    %4335 = vrot.lane.b32.xlu0 %v4314, 96
    %v4336 = vpop.permute.xlu0 %4335
    %4337 = vrot.lane.b32.xlu0 %v4315, 96
    %v4338 = vpop.permute.xlu0 %4337
    %4339 = vrot.lane.b32.xlu0 %v4316, 96
    %v4340 = vpop.permute.xlu0 %4339
    %v4342 = vsel %vm1097, %v4326, 0
    %v4345 = vsel %vm1097, %v4328, 0
    %v4348 = vsel %vm1097, %v4330, 0
    %v4351 = vsel %vm1097, %v4332, 0
    %v4354 = vsel %vm1097, %v4334, 0
    %v4357 = vsel %vm1097, %v4336, 0
    %v4360 = vsel %vm1097, %v4338, 0
    %v4363 = vsel %vm1097, %v4340, 0
    %4365 = vmatprep.subr.bf16.mxu0 0
    %4366 = vmatpush1.bf16.msra.mxu0 %v1093
    %4367 = vmatprep.subr.bf16.mxu0 0
    %4368 = vmatpush1.bf16.msra.mxu0 %v1094
    %4369 = vmatprep.subr.bf16.mxu0 0
    %4370 = vmatpush1.bf16.msra.mxu0 0
    %4371 = vmatprep.subr.bf16.mxu0 0
    %4372 = vmatpush1.bf16.msra.mxu0 0
    %4373 = vmatprep.subr.bf16.mxu0 0
    %4374 = vmatpush1.bf16.msra.mxu0 0
    %4375 = vmatprep.subr.bf16.mxu0 0
    %4376 = vmatpush1.bf16.msra.mxu0 0
    %4377 = vmatprep.subr.bf16.mxu0 0
    %4378 = vmatpush1.bf16.msra.mxu0 0
    %4379 = vmatprep.subr.bf16.mxu0 0
    %4380 = vmatpush1.bf16.msra.mxu0 0
    %4381 = vmatprep.subr.bf16.mxu0 0
    %4382 = vmatpush1.bf16.msra.mxu0 0
    %4383 = vmatprep.subr.bf16.mxu0 0
    %4384 = vmatpush1.bf16.msra.mxu0 0
    %4385 = vmatprep.subr.bf16.mxu0 0
    %4386 = vmatpush1.bf16.msra.mxu0 0
    %4387 = vmatprep.subr.bf16.mxu0 0
    %4388 = vmatpush1.bf16.msra.mxu0 0
    %4389 = vmatprep.subr.bf16.mxu0 0
    %4390 = vmatpush1.bf16.msra.mxu0 0
    %4391 = vmatprep.subr.bf16.mxu0 0
    %4392 = vmatpush1.bf16.msra.mxu0 0
    %4393 = vmatprep.subr.bf16.mxu0 0
    %4394 = vmatpush1.bf16.msra.mxu0 0
    %4395 = vmatprep.subr.bf16.mxu0 0
    %4396 = vmatpush1.bf16.msra.mxu0 0
    %4397 = vmatprep.mubr.bf16.mxu0 0
    %4398 = vmatmul.mubr.bf16.gmra.mrb[0].mxu0 %v4342
    %v4399 = vpop.f32.mrb[0].mxu0
    %v4400 = vadd.f32 0.0, %v4399
    %v4401 = vpop.f32.mrb[0].mxu0
    %v4402 = vpop.f32.mrb[0].mxu0
    %v4403 = vadd.f32 0.0, %v4402
    %v4404 = vpop.f32.mrb[0].mxu0
    %4405 = vmatprep.mubr.bf16.mxu0 0
    %4406 = vmatmul.mubr.bf16.gmra.mrb[0].mxu0 %v4345
    %v4407 = vpop.f32.mrb[0].mxu0
    %v4408 = vadd.f32 0.0, %v4407
    %v4409 = vpop.f32.mrb[0].mxu0
    %v4410 = vpop.f32.mrb[0].mxu0
    %v4411 = vadd.f32 0.0, %v4410
    %v4412 = vpop.f32.mrb[0].mxu0
    %4413 = vmatprep.mubr.bf16.mxu0 0
    %4414 = vmatmul.mubr.bf16.gmra.mrb[0].mxu0 %v4348
    %v4415 = vpop.f32.mrb[0].mxu0
    %v4416 = vadd.f32 0.0, %v4415
    %v4417 = vpop.f32.mrb[0].mxu0
    %v4418 = vpop.f32.mrb[0].mxu0
    %v4419 = vadd.f32 0.0, %v4418
    %v4420 = vpop.f32.mrb[0].mxu0
    %4421 = vmatprep.mubr.bf16.mxu0 0
    %4422 = vmatmul.mubr.bf16.gmra.mrb[0].mxu0 %v4351
    %v4423 = vpop.f32.mrb[0].mxu0
    %v4424 = vadd.f32 0.0, %v4423
    %v4425 = vpop.f32.mrb[0].mxu0
    %v4426 = vpop.f32.mrb[0].mxu0
    %v4427 = vadd.f32 0.0, %v4426
    %v4428 = vpop.f32.mrb[0].mxu0
    %4429 = vmatprep.mubr.bf16.mxu0 0
    %4430 = vmatmul.mubr.bf16.gmra.mrb[0].mxu0 %v4354
    %v4431 = vpop.f32.mrb[0].mxu0
    %v4432 = vadd.f32 0.0, %v4431
    %v4433 = vpop.f32.mrb[0].mxu0
    %v4434 = vpop.f32.mrb[0].mxu0
    %v4435 = vadd.f32 0.0, %v4434
    %v4436 = vpop.f32.mrb[0].mxu0
    %4437 = vmatprep.mubr.bf16.mxu0 0
    %4438 = vmatmul.mubr.bf16.gmra.mrb[0].mxu0 %v4357
    %v4439 = vpop.f32.mrb[0].mxu0
    %v4440 = vadd.f32 0.0, %v4439
    %v4441 = vpop.f32.mrb[0].mxu0
    %v4442 = vpop.f32.mrb[0].mxu0
    %v4443 = vadd.f32 0.0, %v4442
    %v4444 = vpop.f32.mrb[0].mxu0
    %4445 = vmatprep.mubr.bf16.mxu0 0
    %4446 = vmatmul.mubr.bf16.gmra.mrb[0].mxu0 %v4360
    %v4447 = vpop.f32.mrb[0].mxu0
    %v4448 = vadd.f32 0.0, %v4447
    %v4449 = vpop.f32.mrb[0].mxu0
    %v4450 = vpop.f32.mrb[0].mxu0
    %v4451 = vadd.f32 0.0, %v4450
    %v4452 = vpop.f32.mrb[0].mxu0
    %4453 = vmatprep.mubr.bf16.mxu0 0
    %4454 = vmatmul.mubr.bf16.gmra.mrb[0].mxu0 %v4363
    %v4455 = vpop.f32.mrb[0].mxu0
    %v4456 = vadd.f32 0.0, %v4455
    %v4457 = vpop.f32.mrb[0].mxu0
    %v4458 = vpop.f32.mrb[0].mxu0
    %v4459 = vadd.f32 0.0, %v4458
    %v4460 = vpop.f32.mrb[0].mxu0
    %4461 = vdwg.mxu0
    %v4462 = vadd.f32 %v4247, %v4400
    %v4463 = vadd.f32 %v4250, %v4403
    %v4464 = vadd.f32 %v4255, %v4408
    %v4465 = vadd.f32 %v4258, %v4411
    %v4466 = vadd.f32 %v4263, %v4416
    %v4467 = vadd.f32 %v4266, %v4419
    %v4468 = vadd.f32 %v4271, %v4424
    %v4469 = vadd.f32 %v4274, %v4427
    %v4470 = vadd.f32 %v4279, %v4432
    %v4471 = vadd.f32 %v4282, %v4435
    %v4472 = vadd.f32 %v4287, %v4440
    %v4473 = vadd.f32 %v4290, %v4443
    %v4474 = vadd.f32 %v4295, %v4448
    %v4475 = vadd.f32 %v4298, %v4451
    %v4476 = vadd.f32 %v4303, %v4456
    %v4477 = vadd.f32 %v4306, %v4459
    %v4478 = vxor.u32 %v4462, 2147483648
    %v4479 = vxor.u32 %v4463, 2147483648
    %v4480 = vxor.u32 %v4464, 2147483648
    %v4481 = vxor.u32 %v4465, 2147483648
    %v4482 = vxor.u32 %v4466, 2147483648
    %v4483 = vxor.u32 %v4467, 2147483648
    %v4484 = vxor.u32 %v4468, 2147483648
    %v4485 = vxor.u32 %v4469, 2147483648
    %v4486 = vxor.u32 %v4470, 2147483648
    %v4487 = vxor.u32 %v4471, 2147483648
    %v4488 = vxor.u32 %v4472, 2147483648
    %v4489 = vxor.u32 %v4473, 2147483648
    %v4490 = vxor.u32 %v4474, 2147483648
    %v4491 = vxor.u32 %v4475, 2147483648
    %v4492 = vxor.u32 %v4476, 2147483648
    %v4493 = vxor.u32 %v4477, 2147483648
    %v4494 = vmul.f32 %v4478, 1.442695
    %v4495 = vpow.pop %v4494
    %v4496 = vmul.f32 %v4479, 1.442695
    %v4497 = vpow.pop %v4496
    %v4498 = vmul.f32 %v4480, 1.442695
    %v4499 = vpow.pop %v4498
    %v4500 = vmul.f32 %v4481, 1.442695
    %v4501 = vpow.pop %v4500
    %v4502 = vmul.f32 %v4482, 1.442695
    %v4503 = vpow.pop %v4502
    %v4504 = vmul.f32 %v4483, 1.442695
    %v4505 = vpow.pop %v4504
    %v4506 = vmul.f32 %v4484, 1.442695
    %v4507 = vpow.pop %v4506
    %v4508 = vmul.f32 %v4485, 1.442695
    %v4509 = vpow.pop %v4508
    %v4510 = vmul.f32 %v4486, 1.442695
    %v4511 = vpow.pop %v4510
    %v4512 = vmul.f32 %v4487, 1.442695
    %v4513 = vpow.pop %v4512
    %v4514 = vmul.f32 %v4488, 1.442695
    %v4515 = vpow.pop %v4514
    %v4516 = vmul.f32 %v4489, 1.442695
    %v4517 = vpow.pop %v4516
    %v4518 = vmul.f32 %v4490, 1.442695
    %v4519 = vpow.pop %v4518
    %v4520 = vmul.f32 %v4491, 1.442695
    %v4521 = vpow.pop %v4520
    %v4522 = vmul.f32 %v4492, 1.442695
    %v4523 = vpow.pop %v4522
    %v4524 = vmul.f32 %v4493, 1.442695
    %v4525 = vpow.pop %v4524
    %v4526 = vadd.f32 %v4495, 1.0
    %v4527 = vadd.f32 %v4497, 1.0
    %v4528 = vadd.f32 %v4499, 1.0
    %v4529 = vadd.f32 %v4501, 1.0
    %v4530 = vadd.f32 %v4503, 1.0
    %v4531 = vadd.f32 %v4505, 1.0
    %v4532 = vadd.f32 %v4507, 1.0
    %v4533 = vadd.f32 %v4509, 1.0
    %v4534 = vadd.f32 %v4511, 1.0
    %v4535 = vadd.f32 %v4513, 1.0
    %v4536 = vadd.f32 %v4515, 1.0
    %v4537 = vadd.f32 %v4517, 1.0
    %v4538 = vadd.f32 %v4519, 1.0
    %v4539 = vadd.f32 %v4521, 1.0
    %v4540 = vadd.f32 %v4523, 1.0
    %v4541 = vadd.f32 %v4525, 1.0
    %v4542 = vrcp.pop %v4526
    %v4543 = vmul.f32 1.0, %v4542
    %v4544 = vrcp.pop %v4527
    %v4545 = vmul.f32 1.0, %v4544
    %v4546 = vrcp.pop %v4528
    %v4547 = vmul.f32 1.0, %v4546
    %v4548 = vrcp.pop %v4529
    %v4549 = vmul.f32 1.0, %v4548
    %v4550 = vrcp.pop %v4530
    %v4551 = vmul.f32 1.0, %v4550
    %v4552 = vrcp.pop %v4531
    %v4553 = vmul.f32 1.0, %v4552
    %v4554 = vrcp.pop %v4532
    %v4555 = vmul.f32 1.0, %v4554
    %v4556 = vrcp.pop %v4533
    %v4557 = vmul.f32 1.0, %v4556
    %v4558 = vrcp.pop %v4534
    %v4559 = vmul.f32 1.0, %v4558
    %v4560 = vrcp.pop %v4535
    %v4561 = vmul.f32 1.0, %v4560
    %v4562 = vrcp.pop %v4536
    %v4563 = vmul.f32 1.0, %v4562
    %v4564 = vrcp.pop %v4537
    %v4565 = vmul.f32 1.0, %v4564
    %v4566 = vrcp.pop %v4538
    %v4567 = vmul.f32 1.0, %v4566
    %v4568 = vrcp.pop %v4539
    %v4569 = vmul.f32 1.0, %v4568
    %v4570 = vrcp.pop %v4540
    %v4571 = vmul.f32 1.0, %v4570
    %v4572 = vrcp.pop %v4541
    %v4573 = vmul.f32 1.0, %v4572
    %v4574 = vadd.f32 %v4400, %v1332
    %v4575 = vadd.f32 %v4403, %v1332
    %v4576 = vadd.f32 %v4408, %v1332
    %v4577 = vadd.f32 %v4411, %v1332
    %v4578 = vadd.f32 %v4416, %v1332
    %v4579 = vadd.f32 %v4419, %v1332
    %v4580 = vadd.f32 %v4424, %v1332
    %v4581 = vadd.f32 %v4427, %v1332
    %v4582 = vadd.f32 %v4432, %v1332
    %v4583 = vadd.f32 %v4435, %v1332
    %v4584 = vadd.f32 %v4440, %v1332
    %v4585 = vadd.f32 %v4443, %v1332
    %v4586 = vadd.f32 %v4448, %v1332
    %v4587 = vadd.f32 %v4451, %v1332
    %v4588 = vadd.f32 %v4456, %v1332
    %v4589 = vadd.f32 %v4459, %v1332
    %4606 = vrot.lane.b32.xlu0 %v4574, 64
    %v4607 = vpop.permute.xlu0 %4606
    %4608 = vrot.lane.b32.xlu0 %v4575, 64
    %v4609 = vpop.permute.xlu0 %4608
    %4610 = vrot.lane.b32.xlu0 %v4576, 64
    %v4611 = vpop.permute.xlu0 %4610
    %4612 = vrot.lane.b32.xlu0 %v4577, 64
    %v4613 = vpop.permute.xlu0 %4612
    %4614 = vrot.lane.b32.xlu0 %v4578, 64
    %v4615 = vpop.permute.xlu0 %4614
    %4616 = vrot.lane.b32.xlu0 %v4579, 64
    %v4617 = vpop.permute.xlu0 %4616
    %4618 = vrot.lane.b32.xlu0 %v4580, 64
    %v4619 = vpop.permute.xlu0 %4618
    %4620 = vrot.lane.b32.xlu0 %v4581, 64
    %v4621 = vpop.permute.xlu0 %4620
    %4622 = vrot.lane.b32.xlu0 %v4582, 64
    %v4623 = vpop.permute.xlu0 %4622
    %4624 = vrot.lane.b32.xlu0 %v4583, 64
    %v4625 = vpop.permute.xlu0 %4624
    %4626 = vrot.lane.b32.xlu0 %v4584, 64
    %v4627 = vpop.permute.xlu0 %4626
    %4628 = vrot.lane.b32.xlu0 %v4585, 64
    %v4629 = vpop.permute.xlu0 %4628
    %4630 = vrot.lane.b32.xlu0 %v4586, 64
    %v4631 = vpop.permute.xlu0 %4630
    %4632 = vrot.lane.b32.xlu0 %v4587, 64
    %v4633 = vpop.permute.xlu0 %4632
    %4634 = vrot.lane.b32.xlu0 %v4588, 64
    %v4635 = vpop.permute.xlu0 %4634
    %4636 = vrot.lane.b32.xlu0 %v4589, 64
    %v4637 = vpop.permute.xlu0 %4636
    %v4654 = vmul.f32 %v4543, %v4607
    %v4655 = vmul.f32 %v4545, %v4609
    %v4656 = vmul.f32 %v4547, %v4611
    %v4657 = vmul.f32 %v4549, %v4613
    %v4658 = vmul.f32 %v4551, %v4615
    %v4659 = vmul.f32 %v4553, %v4617
    %v4660 = vmul.f32 %v4555, %v4619
    %v4661 = vmul.f32 %v4557, %v4621
    %v4662 = vmul.f32 %v4559, %v4623
    %v4663 = vmul.f32 %v4561, %v4625
    %v4664 = vmul.f32 %v4563, %v4627
    %v4665 = vmul.f32 %v4565, %v4629
    %v4666 = vmul.f32 %v4567, %v4631
    %v4667 = vmul.f32 %v4569, %v4633
    %v4668 = vmul.f32 %v4571, %v4635
    %v4669 = vmul.f32 %v4573, %v4637
    %4686 = vrot.lane.b32.xlu0 %v4654, 64
    %v4687 = vpop.permute.xlu0 %4686
    %4688 = vrot.lane.b32.xlu0 %v4655, 64
    %v4689 = vpop.permute.xlu0 %4688
    %4690 = vrot.lane.b32.xlu0 %v4656, 64
    %v4691 = vpop.permute.xlu0 %4690
    %4692 = vrot.lane.b32.xlu0 %v4657, 64
    %v4693 = vpop.permute.xlu0 %4692
    %4694 = vrot.lane.b32.xlu0 %v4658, 64
    %v4695 = vpop.permute.xlu0 %4694
    %4696 = vrot.lane.b32.xlu0 %v4659, 64
    %v4697 = vpop.permute.xlu0 %4696
    %4698 = vrot.lane.b32.xlu0 %v4660, 64
    %v4699 = vpop.permute.xlu0 %4698
    %4700 = vrot.lane.b32.xlu0 %v4661, 64
    %v4701 = vpop.permute.xlu0 %4700
    %4702 = vrot.lane.b32.xlu0 %v4662, 64
    %v4703 = vpop.permute.xlu0 %4702
    %4704 = vrot.lane.b32.xlu0 %v4663, 64
    %v4705 = vpop.permute.xlu0 %4704
    %4706 = vrot.lane.b32.xlu0 %v4664, 64
    %v4707 = vpop.permute.xlu0 %4706
    %4708 = vrot.lane.b32.xlu0 %v4665, 64
    %v4709 = vpop.permute.xlu0 %4708
    %4710 = vrot.lane.b32.xlu0 %v4666, 64
    %v4711 = vpop.permute.xlu0 %4710
    %4712 = vrot.lane.b32.xlu0 %v4667, 64
    %v4713 = vpop.permute.xlu0 %4712
    %4714 = vrot.lane.b32.xlu0 %v4668, 64
    %v4715 = vpop.permute.xlu0 %4714
    %4716 = vrot.lane.b32.xlu0 %v4669, 64
    %v4717 = vpop.permute.xlu0 %4716
    %v4734 = vadd.f32 %v4247, %v4687
    %v4735 = vadd.f32 %v4250, %v4689
    %v4736 = vadd.f32 %v4255, %v4691
    %v4737 = vadd.f32 %v4258, %v4693
    %v4738 = vadd.f32 %v4263, %v4695
    %v4739 = vadd.f32 %v4266, %v4697
    %v4740 = vadd.f32 %v4271, %v4699
    %v4741 = vadd.f32 %v4274, %v4701
    %v4742 = vadd.f32 %v4279, %v4703
    %v4743 = vadd.f32 %v4282, %v4705
    %v4744 = vadd.f32 %v4287, %v4707
    %v4745 = vadd.f32 %v4290, %v4709
    %v4746 = vadd.f32 %v4295, %v4711
    %v4747 = vadd.f32 %v4298, %v4713
    %v4748 = vadd.f32 %v4303, %v4715
    %v4749 = vadd.f32 %v4306, %v4717
    %v4750 = vtanh.pop %v4734
    %v4751 = vtanh.pop %v4735
    %v4752 = vtanh.pop %v4736
    %v4753 = vtanh.pop %v4737
    %v4754 = vtanh.pop %v4738
    %v4755 = vtanh.pop %v4739
    %v4756 = vtanh.pop %v4740
    %v4757 = vtanh.pop %v4741
    %v4758 = vtanh.pop %v4742
    %v4759 = vtanh.pop %v4743
    %v4760 = vtanh.pop %v4744
    %v4761 = vtanh.pop %v4745
    %v4762 = vtanh.pop %v4746
    %v4763 = vtanh.pop %v4747
    %v4764 = vtanh.pop %v4748
    %v4765 = vtanh.pop %v4749
    %v4766 = vsub.f32 1.0, %v4543
    %v4767 = vsub.f32 1.0, %v4545
    %v4768 = vsub.f32 1.0, %v4547
    %v4769 = vsub.f32 1.0, %v4549
    %v4770 = vsub.f32 1.0, %v4551
    %v4771 = vsub.f32 1.0, %v4553
    %v4772 = vsub.f32 1.0, %v4555
    %v4773 = vsub.f32 1.0, %v4557
    %v4774 = vsub.f32 1.0, %v4559
    %v4775 = vsub.f32 1.0, %v4561
    %v4776 = vsub.f32 1.0, %v4563
    %v4777 = vsub.f32 1.0, %v4565
    %v4778 = vsub.f32 1.0, %v4567
    %v4779 = vsub.f32 1.0, %v4569
    %v4780 = vsub.f32 1.0, %v4571
    %v4781 = vsub.f32 1.0, %v4573
    %4798 = vrot.lane.b32.xlu0 %v4750, 96
    %v4799 = vpop.permute.xlu0 %4798
    %4800 = vrot.lane.b32.xlu0 %v4751, 96
    %v4801 = vpop.permute.xlu0 %4800
    %4802 = vrot.lane.b32.xlu0 %v4752, 96
    %v4803 = vpop.permute.xlu0 %4802
    %4804 = vrot.lane.b32.xlu0 %v4753, 96
    %v4805 = vpop.permute.xlu0 %4804
    %4806 = vrot.lane.b32.xlu0 %v4754, 96
    %v4807 = vpop.permute.xlu0 %4806
    %4808 = vrot.lane.b32.xlu0 %v4755, 96
    %v4809 = vpop.permute.xlu0 %4808
    %4810 = vrot.lane.b32.xlu0 %v4756, 96
    %v4811 = vpop.permute.xlu0 %4810
    %4812 = vrot.lane.b32.xlu0 %v4757, 96
    %v4813 = vpop.permute.xlu0 %4812
    %4814 = vrot.lane.b32.xlu0 %v4758, 96
    %v4815 = vpop.permute.xlu0 %4814
    %4816 = vrot.lane.b32.xlu0 %v4759, 96
    %v4817 = vpop.permute.xlu0 %4816
    %4818 = vrot.lane.b32.xlu0 %v4760, 96
    %v4819 = vpop.permute.xlu0 %4818
    %4820 = vrot.lane.b32.xlu0 %v4761, 96
    %v4821 = vpop.permute.xlu0 %4820
    %4822 = vrot.lane.b32.xlu0 %v4762, 96
    %v4823 = vpop.permute.xlu0 %4822
    %4824 = vrot.lane.b32.xlu0 %v4763, 96
    %v4825 = vpop.permute.xlu0 %4824
    %4826 = vrot.lane.b32.xlu0 %v4764, 96
    %v4827 = vpop.permute.xlu0 %4826
    %4828 = vrot.lane.b32.xlu0 %v4765, 96
    %v4829 = vpop.permute.xlu0 %4828
    %v4846 = vmul.f32 %v4766, %v4799
    %v4847 = vmul.f32 %v4767, %v4801
    %v4848 = vmul.f32 %v4768, %v4803
    %v4849 = vmul.f32 %v4769, %v4805
    %v4850 = vmul.f32 %v4770, %v4807
    %v4851 = vmul.f32 %v4771, %v4809
    %v4852 = vmul.f32 %v4772, %v4811
    %v4853 = vmul.f32 %v4773, %v4813
    %v4854 = vmul.f32 %v4774, %v4815
    %v4855 = vmul.f32 %v4775, %v4817
    %v4856 = vmul.f32 %v4776, %v4819
    %v4857 = vmul.f32 %v4777, %v4821
    %v4858 = vmul.f32 %v4778, %v4823
    %v4859 = vmul.f32 %v4779, %v4825
    %v4860 = vmul.f32 %v4780, %v4827
    %v4861 = vmul.f32 %v4781, %v4829
    %v4862 = vmul.f32 %v4543, %v4068
    %v4863 = vmul.f32 %v4545, %v4069
    %v4864 = vmul.f32 %v4547, %v4070
    %v4865 = vmul.f32 %v4549, %v4071
    %v4866 = vmul.f32 %v4551, %v4072
    %v4867 = vmul.f32 %v4553, %v4073
    %v4868 = vmul.f32 %v4555, %v4074
    %v4869 = vmul.f32 %v4557, %v4075
    %v4870 = vmul.f32 %v4559, %v4076
    %v4871 = vmul.f32 %v4561, %v4077
    %v4872 = vmul.f32 %v4563, %v4078
    %v4873 = vmul.f32 %v4565, %v4079
    %v4874 = vmul.f32 %v4567, %v4080
    %v4875 = vmul.f32 %v4569, %v4081
    %v4876 = vmul.f32 %v4571, %v4082
    %v4877 = vmul.f32 %v4573, %v4083
    %v4878 = vadd.f32 %v4846, %v4862
    %v4879 = vadd.f32 %v4847, %v4863
    %v4880 = vadd.f32 %v4848, %v4864
    %v4881 = vadd.f32 %v4849, %v4865
    %v4882 = vadd.f32 %v4850, %v4866
    %v4883 = vadd.f32 %v4851, %v4867
    %v4884 = vadd.f32 %v4852, %v4868
    %v4885 = vadd.f32 %v4853, %v4869
    %v4886 = vadd.f32 %v4854, %v4870
    %v4887 = vadd.f32 %v4855, %v4871
    %v4888 = vadd.f32 %v4856, %v4872
    %v4889 = vadd.f32 %v4857, %v4873
    %v4890 = vadd.f32 %v4858, %v4874
    %v4891 = vadd.f32 %v4859, %v4875
    %v4892 = vadd.f32 %v4860, %v4876
    %v4893 = vadd.f32 %v4861, %v4877
    %4894 = vset.pattern.permute.xlu0 6
    %4895 = vperm.xlu0 %4894, %v28
    %v4896 = vpop.permute.xlu0 %4895
    %4897 = vset.pattern.permute.xlu0 6
    %4898 = vperm.xlu0 %4897, %v29
    %v4899 = vpop.permute.xlu0 %4898
    %4900 = vset.pattern.permute.xlu0 6
    %4901 = vperm.xlu0 %4900, %v30
    %v4902 = vpop.permute.xlu0 %4901
    %4903 = vset.pattern.permute.xlu0 6
    %4904 = vperm.xlu0 %4903, %v31
    %v4905 = vpop.permute.xlu0 %4904
    %4906 = vset.pattern.permute.xlu0 6
    %4907 = vperm.xlu0 %4906, %v32
    %v4908 = vpop.permute.xlu0 %4907
    %4909 = vset.pattern.permute.xlu0 6
    %4910 = vperm.xlu0 %4909, %v33
    %v4911 = vpop.permute.xlu0 %4910
    %4912 = vset.pattern.permute.xlu0 6
    %4913 = vperm.xlu0 %4912, %v34
    %v4914 = vpop.permute.xlu0 %4913
    %4915 = vset.pattern.permute.xlu0 6
    %4916 = vperm.xlu0 %4915, %v35
    %v4917 = vpop.permute.xlu0 %4916
    %4918 = vset.pattern.permute.xlu0 6
    %4919 = vperm.xlu0 %4918, %v36
    %v4920 = vpop.permute.xlu0 %4919
    %4921 = vset.pattern.permute.xlu0 6
    %4922 = vperm.xlu0 %4921, %v37
    %v4923 = vpop.permute.xlu0 %4922
    %4924 = vset.pattern.permute.xlu0 6
    %4925 = vperm.xlu0 %4924, %v38
    %v4926 = vpop.permute.xlu0 %4925
    %4927 = vset.pattern.permute.xlu0 6
    %4928 = vperm.xlu0 %4927, %v39
    %v4929 = vpop.permute.xlu0 %4928
    %4930 = vset.pattern.permute.xlu0 6
    %4931 = vperm.xlu0 %4930, %v40
    %v4932 = vpop.permute.xlu0 %4931
    %4933 = vset.pattern.permute.xlu0 6
    %4934 = vperm.xlu0 %4933, %v41
    %v4935 = vpop.permute.xlu0 %4934
    %4936 = vset.pattern.permute.xlu0 6
    %4937 = vperm.xlu0 %4936, %v42
    %v4938 = vpop.permute.xlu0 %4937
    %4939 = vset.pattern.permute.xlu0 6
    %4940 = vperm.xlu0 %4939, %v43
    %v4941 = vpop.permute.xlu0 %4940
    %vm4942 = vcmp.eq.s32.totalorder %v4896, %v45
    %vm4943 = vcmp.eq.s32.totalorder %v4899, %v45
    %vm4944 = vcmp.eq.s32.totalorder %v4902, %v45
    %vm4945 = vcmp.eq.s32.totalorder %v4905, %v45
    %vm4946 = vcmp.eq.s32.totalorder %v4908, %v45
    %vm4947 = vcmp.eq.s32.totalorder %v4911, %v45
    %vm4948 = vcmp.eq.s32.totalorder %v4914, %v45
    %vm4949 = vcmp.eq.s32.totalorder %v4917, %v45
    %vm4950 = vcmp.eq.s32.totalorder %v4920, %v45
    %vm4951 = vcmp.eq.s32.totalorder %v4923, %v45
    %vm4952 = vcmp.eq.s32.totalorder %v4926, %v45
    %vm4953 = vcmp.eq.s32.totalorder %v4929, %v45
    %vm4954 = vcmp.eq.s32.totalorder %v4932, %v45
    %vm4955 = vcmp.eq.s32.totalorder %v4935, %v45
    %vm4956 = vcmp.eq.s32.totalorder %v4938, %v45
    %vm4957 = vcmp.eq.s32.totalorder %v4941, %v45
    %v4958 = vsel %vm4942, 1, 0
    %v4959 = vsel %vm4943, 1, 0
    %v4960 = vsel %vm4944, 1, 0
    %v4961 = vsel %vm4945, 1, 0
    %v4962 = vsel %vm4946, 1, 0
    %v4963 = vsel %vm4947, 1, 0
    %v4964 = vsel %vm4948, 1, 0
    %v4965 = vsel %vm4949, 1, 0
    %v4966 = vsel %vm4950, 1, 0
    %v4967 = vsel %vm4951, 1, 0
    %v4968 = vsel %vm4952, 1, 0
    %v4969 = vsel %vm4953, 1, 0
    %v4970 = vsel %vm4954, 1, 0
    %v4971 = vsel %vm4955, 1, 0
    %v4972 = vsel %vm4956, 1, 0
    %v4973 = vsel %vm4957, 1, 0
    %v4974 = vcvt.s32.f32 %v4958
    %v4975 = vcvt.s32.f32 %v4959
    %v4976 = vcvt.s32.f32 %v4960
    %v4977 = vcvt.s32.f32 %v4961
    %v4978 = vcvt.s32.f32 %v4962
    %v4979 = vcvt.s32.f32 %v4963
    %v4980 = vcvt.s32.f32 %v4964
    %v4981 = vcvt.s32.f32 %v4965
    %v4982 = vcvt.s32.f32 %v4966
    %v4983 = vcvt.s32.f32 %v4967
    %v4984 = vcvt.s32.f32 %v4968
    %v4985 = vcvt.s32.f32 %v4969
    %v4986 = vcvt.s32.f32 %v4970
    %v4987 = vcvt.s32.f32 %v4971
    %v4988 = vcvt.s32.f32 %v4972
    %v4989 = vcvt.s32.f32 %v4973
    %v4990 = vpack.c.bf16 %v4975, %v4974
    %v4991 = vpack.c.bf16 %v4977, %v4976
    %v4992 = vpack.c.bf16 %v4979, %v4978
    %v4993 = vpack.c.bf16 %v4981, %v4980
    %v4994 = vpack.c.bf16 %v4983, %v4982
    %v4995 = vpack.c.bf16 %v4985, %v4984
    %v4996 = vpack.c.bf16 %v4987, %v4986
    %v4997 = vpack.c.bf16 %v4989, %v4988
    %v4999 = vsel %vm171, %v4990, 0
    %v5002 = vsel %vm171, %v4991, 0
    %v5005 = vsel %vm171, %v4992, 0
    %v5008 = vsel %vm171, %v4993, 0
    %v5011 = vsel %vm171, %v4994, 0
    %v5014 = vsel %vm171, %v4995, 0
    %v5017 = vsel %vm171, %v4996, 0
    %v5020 = vsel %vm171, %v4997, 0
    %5022 = vmatprep.subr.bf16.mxu0 0
    %5023 = vmatpush1.bf16.msra.mxu0 %v401
    %5024 = vmatprep.subr.bf16.mxu0 0
    %5025 = vmatpush1.bf16.msra.mxu0 0
    %5026 = vmatprep.subr.bf16.mxu0 0
    %5027 = vmatpush1.bf16.msra.mxu0 0
    %5028 = vmatprep.subr.bf16.mxu0 0
    %5029 = vmatpush1.bf16.msra.mxu0 0
    %5030 = vmatprep.subr.bf16.mxu0 0
    %5031 = vmatpush1.bf16.msra.mxu0 0
    %5032 = vmatprep.subr.bf16.mxu0 0
    %5033 = vmatpush1.bf16.msra.mxu0 0
    %5034 = vmatprep.subr.bf16.mxu0 0
    %5035 = vmatpush1.bf16.msra.mxu0 0
    %5036 = vmatprep.subr.bf16.mxu0 0
    %5037 = vmatpush1.bf16.msra.mxu0 0
    %5038 = vmatprep.subr.bf16.mxu0 0
    %5039 = vmatpush1.bf16.msra.mxu0 0
    %5040 = vmatprep.subr.bf16.mxu0 0
    %5041 = vmatpush1.bf16.msra.mxu0 0
    %5042 = vmatprep.subr.bf16.mxu0 0
    %5043 = vmatpush1.bf16.msra.mxu0 0
    %5044 = vmatprep.subr.bf16.mxu0 0
    %5045 = vmatpush1.bf16.msra.mxu0 0
    %5046 = vmatprep.subr.bf16.mxu0 0
    %5047 = vmatpush1.bf16.msra.mxu0 0
    %5048 = vmatprep.subr.bf16.mxu0 0
    %5049 = vmatpush1.bf16.msra.mxu0 0
    %5050 = vmatprep.subr.bf16.mxu0 0
    %5051 = vmatpush1.bf16.msra.mxu0 0
    %5052 = vmatprep.subr.bf16.mxu0 0
    %5053 = vmatpush1.bf16.msra.mxu0 0
    %5054 = vmatprep.mubr.bf16.mxu0 0
    %5055 = vmatmul.mubr.bf16.gmra.mrb[0].mxu0 %v4999
    %v5056 = vpop.f32.mrb[0].mxu0
    %v5057 = vadd.f32 0.0, %v5056
    %v5058 = vpop.f32.mrb[0].mxu0
    %v5059 = vpop.f32.mrb[0].mxu0
    %v5060 = vadd.f32 0.0, %v5059
    %v5061 = vpop.f32.mrb[0].mxu0
    %5062 = vmatprep.mubr.bf16.mxu0 0
    %5063 = vmatmul.mubr.bf16.gmra.mrb[0].mxu0 %v5002
    %v5064 = vpop.f32.mrb[0].mxu0
    %v5065 = vadd.f32 0.0, %v5064
    %v5066 = vpop.f32.mrb[0].mxu0
    %v5067 = vpop.f32.mrb[0].mxu0
    %v5068 = vadd.f32 0.0, %v5067
    %v5069 = vpop.f32.mrb[0].mxu0
    %5070 = vmatprep.mubr.bf16.mxu0 0
    %5071 = vmatmul.mubr.bf16.gmra.mrb[0].mxu0 %v5005
    %v5072 = vpop.f32.mrb[0].mxu0
    %v5073 = vadd.f32 0.0, %v5072
    %v5074 = vpop.f32.mrb[0].mxu0
    %v5075 = vpop.f32.mrb[0].mxu0
    %v5076 = vadd.f32 0.0, %v5075
    %v5077 = vpop.f32.mrb[0].mxu0
    %5078 = vmatprep.mubr.bf16.mxu0 0
    %5079 = vmatmul.mubr.bf16.gmra.mrb[0].mxu0 %v5008
    %v5080 = vpop.f32.mrb[0].mxu0
    %v5081 = vadd.f32 0.0, %v5080
    %v5082 = vpop.f32.mrb[0].mxu0
    %v5083 = vpop.f32.mrb[0].mxu0
    %v5084 = vadd.f32 0.0, %v5083
    %v5085 = vpop.f32.mrb[0].mxu0
    %5086 = vmatprep.mubr.bf16.mxu0 0
    %5087 = vmatmul.mubr.bf16.gmra.mrb[0].mxu0 %v5011
    %v5088 = vpop.f32.mrb[0].mxu0
    %v5089 = vadd.f32 0.0, %v5088
    %v5090 = vpop.f32.mrb[0].mxu0
    %v5091 = vpop.f32.mrb[0].mxu0
    %v5092 = vadd.f32 0.0, %v5091
    %v5093 = vpop.f32.mrb[0].mxu0
    %5094 = vmatprep.mubr.bf16.mxu0 0
    %5095 = vmatmul.mubr.bf16.gmra.mrb[0].mxu0 %v5014
    %v5096 = vpop.f32.mrb[0].mxu0
    %v5097 = vadd.f32 0.0, %v5096
    %v5098 = vpop.f32.mrb[0].mxu0
    %v5099 = vpop.f32.mrb[0].mxu0
    %v5100 = vadd.f32 0.0, %v5099
    %v5101 = vpop.f32.mrb[0].mxu0
    %5102 = vmatprep.mubr.bf16.mxu0 0
    %5103 = vmatmul.mubr.bf16.gmra.mrb[0].mxu0 %v5017
    %v5104 = vpop.f32.mrb[0].mxu0
    %v5105 = vadd.f32 0.0, %v5104
    %v5106 = vpop.f32.mrb[0].mxu0
    %v5107 = vpop.f32.mrb[0].mxu0
    %v5108 = vadd.f32 0.0, %v5107
    %v5109 = vpop.f32.mrb[0].mxu0
    %5110 = vmatprep.mubr.bf16.mxu0 0
    %5111 = vmatmul.mubr.bf16.gmra.mrb[0].mxu0 %v5020
    %v5112 = vpop.f32.mrb[0].mxu0
    %v5113 = vadd.f32 0.0, %v5112
    %v5114 = vpop.f32.mrb[0].mxu0
    %v5115 = vpop.f32.mrb[0].mxu0
    %v5116 = vadd.f32 0.0, %v5115
    %v5117 = vpop.f32.mrb[0].mxu0
    %5118 = vdwg.mxu0
    %v5119 = vpack.c.bf16 %v4879, %v4878
    %v5120 = vpack.c.bf16 %v4881, %v4880
    %v5121 = vpack.c.bf16 %v4883, %v4882
    %v5122 = vpack.c.bf16 %v4885, %v4884
    %v5123 = vpack.c.bf16 %v4887, %v4886
    %v5124 = vpack.c.bf16 %v4889, %v4888
    %v5125 = vpack.c.bf16 %v4891, %v4890
    %v5126 = vpack.c.bf16 %v4893, %v4892
    %5135 = vrot.lane.b32.xlu0 %v5119, 96
    %v5136 = vpop.permute.xlu0 %5135
    %5137 = vrot.lane.b32.xlu0 %v5120, 96
    %v5138 = vpop.permute.xlu0 %5137
    %5139 = vrot.lane.b32.xlu0 %v5121, 96
    %v5140 = vpop.permute.xlu0 %5139
    %5141 = vrot.lane.b32.xlu0 %v5122, 96
    %v5142 = vpop.permute.xlu0 %5141
    %5143 = vrot.lane.b32.xlu0 %v5123, 96
    %v5144 = vpop.permute.xlu0 %5143
    %5145 = vrot.lane.b32.xlu0 %v5124, 96
    %v5146 = vpop.permute.xlu0 %5145
    %5147 = vrot.lane.b32.xlu0 %v5125, 96
    %v5148 = vpop.permute.xlu0 %5147
    %5149 = vrot.lane.b32.xlu0 %v5126, 96
    %v5150 = vpop.permute.xlu0 %5149
    %v5152 = vsel %vm1097, %v5136, 0
    %v5155 = vsel %vm1097, %v5138, 0
    %v5158 = vsel %vm1097, %v5140, 0
    %v5161 = vsel %vm1097, %v5142, 0
    %v5164 = vsel %vm1097, %v5144, 0
    %v5167 = vsel %vm1097, %v5146, 0
    %v5170 = vsel %vm1097, %v5148, 0
    %v5173 = vsel %vm1097, %v5150, 0
    %5175 = vmatprep.subr.bf16.mxu0 0
    %5176 = vmatpush1.bf16.msra.mxu0 %v1093
    %5177 = vmatprep.subr.bf16.mxu0 0
    %5178 = vmatpush1.bf16.msra.mxu0 %v1094
    %5179 = vmatprep.subr.bf16.mxu0 0
    %5180 = vmatpush1.bf16.msra.mxu0 0
    %5181 = vmatprep.subr.bf16.mxu0 0
    %5182 = vmatpush1.bf16.msra.mxu0 0
    %5183 = vmatprep.subr.bf16.mxu0 0
    %5184 = vmatpush1.bf16.msra.mxu0 0
    %5185 = vmatprep.subr.bf16.mxu0 0
    %5186 = vmatpush1.bf16.msra.mxu0 0
    %5187 = vmatprep.subr.bf16.mxu0 0
    %5188 = vmatpush1.bf16.msra.mxu0 0
    %5189 = vmatprep.subr.bf16.mxu0 0
    %5190 = vmatpush1.bf16.msra.mxu0 0
    %5191 = vmatprep.subr.bf16.mxu0 0
    %5192 = vmatpush1.bf16.msra.mxu0 0
    %5193 = vmatprep.subr.bf16.mxu0 0
    %5194 = vmatpush1.bf16.msra.mxu0 0
    %5195 = vmatprep.subr.bf16.mxu0 0
    %5196 = vmatpush1.bf16.msra.mxu0 0
    %5197 = vmatprep.subr.bf16.mxu0 0
    %5198 = vmatpush1.bf16.msra.mxu0 0
    %5199 = vmatprep.subr.bf16.mxu0 0
    %5200 = vmatpush1.bf16.msra.mxu0 0
    %5201 = vmatprep.subr.bf16.mxu0 0
    %5202 = vmatpush1.bf16.msra.mxu0 0
    %5203 = vmatprep.subr.bf16.mxu0 0
    %5204 = vmatpush1.bf16.msra.mxu0 0
    %5205 = vmatprep.subr.bf16.mxu0 0
    %5206 = vmatpush1.bf16.msra.mxu0 0
    %5207 = vmatprep.mubr.bf16.mxu0 0
    %5208 = vmatmul.mubr.bf16.gmra.mrb[0].mxu0 %v5152
    %v5209 = vpop.f32.mrb[0].mxu0
    %v5210 = vadd.f32 0.0, %v5209
    %v5211 = vpop.f32.mrb[0].mxu0
    %v5212 = vpop.f32.mrb[0].mxu0
    %v5213 = vadd.f32 0.0, %v5212
    %v5214 = vpop.f32.mrb[0].mxu0
    %5215 = vmatprep.mubr.bf16.mxu0 0
    %5216 = vmatmul.mubr.bf16.gmra.mrb[0].mxu0 %v5155
    %v5217 = vpop.f32.mrb[0].mxu0
    %v5218 = vadd.f32 0.0, %v5217
    %v5219 = vpop.f32.mrb[0].mxu0
    %v5220 = vpop.f32.mrb[0].mxu0
    %v5221 = vadd.f32 0.0, %v5220
    %v5222 = vpop.f32.mrb[0].mxu0
    %5223 = vmatprep.mubr.bf16.mxu0 0
    %5224 = vmatmul.mubr.bf16.gmra.mrb[0].mxu0 %v5158
    %v5225 = vpop.f32.mrb[0].mxu0
    %v5226 = vadd.f32 0.0, %v5225
    %v5227 = vpop.f32.mrb[0].mxu0
    %v5228 = vpop.f32.mrb[0].mxu0
    %v5229 = vadd.f32 0.0, %v5228
    %v5230 = vpop.f32.mrb[0].mxu0
    %5231 = vmatprep.mubr.bf16.mxu0 0
    %5232 = vmatmul.mubr.bf16.gmra.mrb[0].mxu0 %v5161
    %v5233 = vpop.f32.mrb[0].mxu0
    %v5234 = vadd.f32 0.0, %v5233
    %v5235 = vpop.f32.mrb[0].mxu0
    %v5236 = vpop.f32.mrb[0].mxu0
    %v5237 = vadd.f32 0.0, %v5236
    %v5238 = vpop.f32.mrb[0].mxu0
    %5239 = vmatprep.mubr.bf16.mxu0 0
    %5240 = vmatmul.mubr.bf16.gmra.mrb[0].mxu0 %v5164
    %v5241 = vpop.f32.mrb[0].mxu0
    %v5242 = vadd.f32 0.0, %v5241
    %v5243 = vpop.f32.mrb[0].mxu0
    %v5244 = vpop.f32.mrb[0].mxu0
    %v5245 = vadd.f32 0.0, %v5244
    %v5246 = vpop.f32.mrb[0].mxu0
    %5247 = vmatprep.mubr.bf16.mxu0 0
    %5248 = vmatmul.mubr.bf16.gmra.mrb[0].mxu0 %v5167
    %v5249 = vpop.f32.mrb[0].mxu0
    %v5250 = vadd.f32 0.0, %v5249
    %v5251 = vpop.f32.mrb[0].mxu0
    %v5252 = vpop.f32.mrb[0].mxu0
    %v5253 = vadd.f32 0.0, %v5252
    %v5254 = vpop.f32.mrb[0].mxu0
    %5255 = vmatprep.mubr.bf16.mxu0 0
    %5256 = vmatmul.mubr.bf16.gmra.mrb[0].mxu0 %v5170
    %v5257 = vpop.f32.mrb[0].mxu0
    %v5258 = vadd.f32 0.0, %v5257
    %v5259 = vpop.f32.mrb[0].mxu0
    %v5260 = vpop.f32.mrb[0].mxu0
    %v5261 = vadd.f32 0.0, %v5260
    %v5262 = vpop.f32.mrb[0].mxu0
    %5263 = vmatprep.mubr.bf16.mxu0 0
    %5264 = vmatmul.mubr.bf16.gmra.mrb[0].mxu0 %v5173
    %v5265 = vpop.f32.mrb[0].mxu0
    %v5266 = vadd.f32 0.0, %v5265
    %v5267 = vpop.f32.mrb[0].mxu0
    %v5268 = vpop.f32.mrb[0].mxu0
    %v5269 = vadd.f32 0.0, %v5268
    %v5270 = vpop.f32.mrb[0].mxu0
    %5271 = vdwg.mxu0
    %v5272 = vadd.f32 %v5057, %v5210
    %v5273 = vadd.f32 %v5060, %v5213
    %v5274 = vadd.f32 %v5065, %v5218
    %v5275 = vadd.f32 %v5068, %v5221
    %v5276 = vadd.f32 %v5073, %v5226
    %v5277 = vadd.f32 %v5076, %v5229
    %v5278 = vadd.f32 %v5081, %v5234
    %v5279 = vadd.f32 %v5084, %v5237
    %v5280 = vadd.f32 %v5089, %v5242
    %v5281 = vadd.f32 %v5092, %v5245
    %v5282 = vadd.f32 %v5097, %v5250
    %v5283 = vadd.f32 %v5100, %v5253
    %v5284 = vadd.f32 %v5105, %v5258
    %v5285 = vadd.f32 %v5108, %v5261
    %v5286 = vadd.f32 %v5113, %v5266
    %v5287 = vadd.f32 %v5116, %v5269
    %v5288 = vxor.u32 %v5272, 2147483648
    %v5289 = vxor.u32 %v5273, 2147483648
    %v5290 = vxor.u32 %v5274, 2147483648
    %v5291 = vxor.u32 %v5275, 2147483648
    %v5292 = vxor.u32 %v5276, 2147483648
    %v5293 = vxor.u32 %v5277, 2147483648
    %v5294 = vxor.u32 %v5278, 2147483648
    %v5295 = vxor.u32 %v5279, 2147483648
    %v5296 = vxor.u32 %v5280, 2147483648
    %v5297 = vxor.u32 %v5281, 2147483648
    %v5298 = vxor.u32 %v5282, 2147483648
    %v5299 = vxor.u32 %v5283, 2147483648
    %v5300 = vxor.u32 %v5284, 2147483648
    %v5301 = vxor.u32 %v5285, 2147483648
    %v5302 = vxor.u32 %v5286, 2147483648
    %v5303 = vxor.u32 %v5287, 2147483648
    %v5304 = vmul.f32 %v5288, 1.442695
    %v5305 = vpow.pop %v5304
    %v5306 = vmul.f32 %v5289, 1.442695
    %v5307 = vpow.pop %v5306
    %v5308 = vmul.f32 %v5290, 1.442695
    %v5309 = vpow.pop %v5308
    %v5310 = vmul.f32 %v5291, 1.442695
    %v5311 = vpow.pop %v5310
    %v5312 = vmul.f32 %v5292, 1.442695
    %v5313 = vpow.pop %v5312
    %v5314 = vmul.f32 %v5293, 1.442695
    %v5315 = vpow.pop %v5314
    %v5316 = vmul.f32 %v5294, 1.442695
    %v5317 = vpow.pop %v5316
    %v5318 = vmul.f32 %v5295, 1.442695
    %v5319 = vpow.pop %v5318
    %v5320 = vmul.f32 %v5296, 1.442695
    %v5321 = vpow.pop %v5320
    %v5322 = vmul.f32 %v5297, 1.442695
    %v5323 = vpow.pop %v5322
    %v5324 = vmul.f32 %v5298, 1.442695
    %v5325 = vpow.pop %v5324
    %v5326 = vmul.f32 %v5299, 1.442695
    %v5327 = vpow.pop %v5326
    %v5328 = vmul.f32 %v5300, 1.442695
    %v5329 = vpow.pop %v5328
    %v5330 = vmul.f32 %v5301, 1.442695
    %v5331 = vpow.pop %v5330
    %v5332 = vmul.f32 %v5302, 1.442695
    %v5333 = vpow.pop %v5332
    %v5334 = vmul.f32 %v5303, 1.442695
    %v5335 = vpow.pop %v5334
    %v5336 = vadd.f32 %v5305, 1.0
    %v5337 = vadd.f32 %v5307, 1.0
    %v5338 = vadd.f32 %v5309, 1.0
    %v5339 = vadd.f32 %v5311, 1.0
    %v5340 = vadd.f32 %v5313, 1.0
    %v5341 = vadd.f32 %v5315, 1.0
    %v5342 = vadd.f32 %v5317, 1.0
    %v5343 = vadd.f32 %v5319, 1.0
    %v5344 = vadd.f32 %v5321, 1.0
    %v5345 = vadd.f32 %v5323, 1.0
    %v5346 = vadd.f32 %v5325, 1.0
    %v5347 = vadd.f32 %v5327, 1.0
    %v5348 = vadd.f32 %v5329, 1.0
    %v5349 = vadd.f32 %v5331, 1.0
    %v5350 = vadd.f32 %v5333, 1.0
    %v5351 = vadd.f32 %v5335, 1.0
    %v5352 = vrcp.pop %v5336
    %v5353 = vmul.f32 1.0, %v5352
    %v5354 = vrcp.pop %v5337
    %v5355 = vmul.f32 1.0, %v5354
    %v5356 = vrcp.pop %v5338
    %v5357 = vmul.f32 1.0, %v5356
    %v5358 = vrcp.pop %v5339
    %v5359 = vmul.f32 1.0, %v5358
    %v5360 = vrcp.pop %v5340
    %v5361 = vmul.f32 1.0, %v5360
    %v5362 = vrcp.pop %v5341
    %v5363 = vmul.f32 1.0, %v5362
    %v5364 = vrcp.pop %v5342
    %v5365 = vmul.f32 1.0, %v5364
    %v5366 = vrcp.pop %v5343
    %v5367 = vmul.f32 1.0, %v5366
    %v5368 = vrcp.pop %v5344
    %v5369 = vmul.f32 1.0, %v5368
    %v5370 = vrcp.pop %v5345
    %v5371 = vmul.f32 1.0, %v5370
    %v5372 = vrcp.pop %v5346
    %v5373 = vmul.f32 1.0, %v5372
    %v5374 = vrcp.pop %v5347
    %v5375 = vmul.f32 1.0, %v5374
    %v5376 = vrcp.pop %v5348
    %v5377 = vmul.f32 1.0, %v5376
    %v5378 = vrcp.pop %v5349
    %v5379 = vmul.f32 1.0, %v5378
    %v5380 = vrcp.pop %v5350
    %v5381 = vmul.f32 1.0, %v5380
    %v5382 = vrcp.pop %v5351
    %v5383 = vmul.f32 1.0, %v5382
    %v5384 = vadd.f32 %v5210, %v1332
    %v5385 = vadd.f32 %v5213, %v1332
    %v5386 = vadd.f32 %v5218, %v1332
    %v5387 = vadd.f32 %v5221, %v1332
    %v5388 = vadd.f32 %v5226, %v1332
    %v5389 = vadd.f32 %v5229, %v1332
    %v5390 = vadd.f32 %v5234, %v1332
    %v5391 = vadd.f32 %v5237, %v1332
    %v5392 = vadd.f32 %v5242, %v1332
    %v5393 = vadd.f32 %v5245, %v1332
    %v5394 = vadd.f32 %v5250, %v1332
    %v5395 = vadd.f32 %v5253, %v1332
    %v5396 = vadd.f32 %v5258, %v1332
    %v5397 = vadd.f32 %v5261, %v1332
    %v5398 = vadd.f32 %v5266, %v1332
    %v5399 = vadd.f32 %v5269, %v1332
    %5416 = vrot.lane.b32.xlu0 %v5384, 64
    %v5417 = vpop.permute.xlu0 %5416
    %5418 = vrot.lane.b32.xlu0 %v5385, 64
    %v5419 = vpop.permute.xlu0 %5418
    %5420 = vrot.lane.b32.xlu0 %v5386, 64
    %v5421 = vpop.permute.xlu0 %5420
    %5422 = vrot.lane.b32.xlu0 %v5387, 64
    %v5423 = vpop.permute.xlu0 %5422
    %5424 = vrot.lane.b32.xlu0 %v5388, 64
    %v5425 = vpop.permute.xlu0 %5424
    %5426 = vrot.lane.b32.xlu0 %v5389, 64
    %v5427 = vpop.permute.xlu0 %5426
    %5428 = vrot.lane.b32.xlu0 %v5390, 64
    %v5429 = vpop.permute.xlu0 %5428
    %5430 = vrot.lane.b32.xlu0 %v5391, 64
    %v5431 = vpop.permute.xlu0 %5430
    %5432 = vrot.lane.b32.xlu0 %v5392, 64
    %v5433 = vpop.permute.xlu0 %5432
    %5434 = vrot.lane.b32.xlu0 %v5393, 64
    %v5435 = vpop.permute.xlu0 %5434
    %5436 = vrot.lane.b32.xlu0 %v5394, 64
    %v5437 = vpop.permute.xlu0 %5436
    %5438 = vrot.lane.b32.xlu0 %v5395, 64
    %v5439 = vpop.permute.xlu0 %5438
    %5440 = vrot.lane.b32.xlu0 %v5396, 64
    %v5441 = vpop.permute.xlu0 %5440
    %5442 = vrot.lane.b32.xlu0 %v5397, 64
    %v5443 = vpop.permute.xlu0 %5442
    %5444 = vrot.lane.b32.xlu0 %v5398, 64
    %v5445 = vpop.permute.xlu0 %5444
    %5446 = vrot.lane.b32.xlu0 %v5399, 64
    %v5447 = vpop.permute.xlu0 %5446
    %v5464 = vmul.f32 %v5353, %v5417
    %v5465 = vmul.f32 %v5355, %v5419
    %v5466 = vmul.f32 %v5357, %v5421
    %v5467 = vmul.f32 %v5359, %v5423
    %v5468 = vmul.f32 %v5361, %v5425
    %v5469 = vmul.f32 %v5363, %v5427
    %v5470 = vmul.f32 %v5365, %v5429
    %v5471 = vmul.f32 %v5367, %v5431
    %v5472 = vmul.f32 %v5369, %v5433
    %v5473 = vmul.f32 %v5371, %v5435
    %v5474 = vmul.f32 %v5373, %v5437
    %v5475 = vmul.f32 %v5375, %v5439
    %v5476 = vmul.f32 %v5377, %v5441
    %v5477 = vmul.f32 %v5379, %v5443
    %v5478 = vmul.f32 %v5381, %v5445
    %v5479 = vmul.f32 %v5383, %v5447
    %5496 = vrot.lane.b32.xlu0 %v5464, 64
    %v5497 = vpop.permute.xlu0 %5496
    %5498 = vrot.lane.b32.xlu0 %v5465, 64
    %v5499 = vpop.permute.xlu0 %5498
    %5500 = vrot.lane.b32.xlu0 %v5466, 64
    %v5501 = vpop.permute.xlu0 %5500
    %5502 = vrot.lane.b32.xlu0 %v5467, 64
    %v5503 = vpop.permute.xlu0 %5502
    %5504 = vrot.lane.b32.xlu0 %v5468, 64
    %v5505 = vpop.permute.xlu0 %5504
    %5506 = vrot.lane.b32.xlu0 %v5469, 64
    %v5507 = vpop.permute.xlu0 %5506
    %5508 = vrot.lane.b32.xlu0 %v5470, 64
    %v5509 = vpop.permute.xlu0 %5508
    %5510 = vrot.lane.b32.xlu0 %v5471, 64
    %v5511 = vpop.permute.xlu0 %5510
    %5512 = vrot.lane.b32.xlu0 %v5472, 64
    %v5513 = vpop.permute.xlu0 %5512
    %5514 = vrot.lane.b32.xlu0 %v5473, 64
    %v5515 = vpop.permute.xlu0 %5514
    %5516 = vrot.lane.b32.xlu0 %v5474, 64
    %v5517 = vpop.permute.xlu0 %5516
    %5518 = vrot.lane.b32.xlu0 %v5475, 64
    %v5519 = vpop.permute.xlu0 %5518
    %5520 = vrot.lane.b32.xlu0 %v5476, 64
    %v5521 = vpop.permute.xlu0 %5520
    %5522 = vrot.lane.b32.xlu0 %v5477, 64
    %v5523 = vpop.permute.xlu0 %5522
    %5524 = vrot.lane.b32.xlu0 %v5478, 64
    %v5525 = vpop.permute.xlu0 %5524
    %5526 = vrot.lane.b32.xlu0 %v5479, 64
    %v5527 = vpop.permute.xlu0 %5526
    %v5544 = vadd.f32 %v5057, %v5497
    %v5545 = vadd.f32 %v5060, %v5499
    %v5546 = vadd.f32 %v5065, %v5501
    %v5547 = vadd.f32 %v5068, %v5503
    %v5548 = vadd.f32 %v5073, %v5505
    %v5549 = vadd.f32 %v5076, %v5507
    %v5550 = vadd.f32 %v5081, %v5509
    %v5551 = vadd.f32 %v5084, %v5511
    %v5552 = vadd.f32 %v5089, %v5513
    %v5553 = vadd.f32 %v5092, %v5515
    %v5554 = vadd.f32 %v5097, %v5517
    %v5555 = vadd.f32 %v5100, %v5519
    %v5556 = vadd.f32 %v5105, %v5521
    %v5557 = vadd.f32 %v5108, %v5523
    %v5558 = vadd.f32 %v5113, %v5525
    %v5559 = vadd.f32 %v5116, %v5527
    %v5560 = vtanh.pop %v5544
    %v5561 = vtanh.pop %v5545
    %v5562 = vtanh.pop %v5546
    %v5563 = vtanh.pop %v5547
    %v5564 = vtanh.pop %v5548
    %v5565 = vtanh.pop %v5549
    %v5566 = vtanh.pop %v5550
    %v5567 = vtanh.pop %v5551
    %v5568 = vtanh.pop %v5552
    %v5569 = vtanh.pop %v5553
    %v5570 = vtanh.pop %v5554
    %v5571 = vtanh.pop %v5555
    %v5572 = vtanh.pop %v5556
    %v5573 = vtanh.pop %v5557
    %v5574 = vtanh.pop %v5558
    %v5575 = vtanh.pop %v5559
    %v5576 = vsub.f32 1.0, %v5353
    %v5577 = vsub.f32 1.0, %v5355
    %v5578 = vsub.f32 1.0, %v5357
    %v5579 = vsub.f32 1.0, %v5359
    %v5580 = vsub.f32 1.0, %v5361
    %v5581 = vsub.f32 1.0, %v5363
    %v5582 = vsub.f32 1.0, %v5365
    %v5583 = vsub.f32 1.0, %v5367
    %v5584 = vsub.f32 1.0, %v5369
    %v5585 = vsub.f32 1.0, %v5371
    %v5586 = vsub.f32 1.0, %v5373
    %v5587 = vsub.f32 1.0, %v5375
    %v5588 = vsub.f32 1.0, %v5377
    %v5589 = vsub.f32 1.0, %v5379
    %v5590 = vsub.f32 1.0, %v5381
    %v5591 = vsub.f32 1.0, %v5383
    %5608 = vrot.lane.b32.xlu0 %v5560, 96
    %v5609 = vpop.permute.xlu0 %5608
    %5610 = vrot.lane.b32.xlu0 %v5561, 96
    %v5611 = vpop.permute.xlu0 %5610
    %5612 = vrot.lane.b32.xlu0 %v5562, 96
    %v5613 = vpop.permute.xlu0 %5612
    %5614 = vrot.lane.b32.xlu0 %v5563, 96
    %v5615 = vpop.permute.xlu0 %5614
    %5616 = vrot.lane.b32.xlu0 %v5564, 96
    %v5617 = vpop.permute.xlu0 %5616
    %5618 = vrot.lane.b32.xlu0 %v5565, 96
    %v5619 = vpop.permute.xlu0 %5618
    %5620 = vrot.lane.b32.xlu0 %v5566, 96
    %v5621 = vpop.permute.xlu0 %5620
    %5622 = vrot.lane.b32.xlu0 %v5567, 96
    %v5623 = vpop.permute.xlu0 %5622
    %5624 = vrot.lane.b32.xlu0 %v5568, 96
    %v5625 = vpop.permute.xlu0 %5624
    %5626 = vrot.lane.b32.xlu0 %v5569, 96
    %v5627 = vpop.permute.xlu0 %5626
    %5628 = vrot.lane.b32.xlu0 %v5570, 96
    %v5629 = vpop.permute.xlu0 %5628
    %5630 = vrot.lane.b32.xlu0 %v5571, 96
    %v5631 = vpop.permute.xlu0 %5630
    %5632 = vrot.lane.b32.xlu0 %v5572, 96
    %v5633 = vpop.permute.xlu0 %5632
    %5634 = vrot.lane.b32.xlu0 %v5573, 96
    %v5635 = vpop.permute.xlu0 %5634
    %5636 = vrot.lane.b32.xlu0 %v5574, 96
    %v5637 = vpop.permute.xlu0 %5636
    %5638 = vrot.lane.b32.xlu0 %v5575, 96
    %v5639 = vpop.permute.xlu0 %5638
    %v5656 = vmul.f32 %v5576, %v5609
    %v5657 = vmul.f32 %v5577, %v5611
    %v5658 = vmul.f32 %v5578, %v5613
    %v5659 = vmul.f32 %v5579, %v5615
    %v5660 = vmul.f32 %v5580, %v5617
    %v5661 = vmul.f32 %v5581, %v5619
    %v5662 = vmul.f32 %v5582, %v5621
    %v5663 = vmul.f32 %v5583, %v5623
    %v5664 = vmul.f32 %v5584, %v5625
    %v5665 = vmul.f32 %v5585, %v5627
    %v5666 = vmul.f32 %v5586, %v5629
    %v5667 = vmul.f32 %v5587, %v5631
    %v5668 = vmul.f32 %v5588, %v5633
    %v5669 = vmul.f32 %v5589, %v5635
    %v5670 = vmul.f32 %v5590, %v5637
    %v5671 = vmul.f32 %v5591, %v5639
    %v5672 = vmul.f32 %v5353, %v4878
    %v5673 = vmul.f32 %v5355, %v4879
    %v5674 = vmul.f32 %v5357, %v4880
    %v5675 = vmul.f32 %v5359, %v4881
    %v5676 = vmul.f32 %v5361, %v4882
    %v5677 = vmul.f32 %v5363, %v4883
    %v5678 = vmul.f32 %v5365, %v4884
    %v5679 = vmul.f32 %v5367, %v4885
    %v5680 = vmul.f32 %v5369, %v4886
    %v5681 = vmul.f32 %v5371, %v4887
    %v5682 = vmul.f32 %v5373, %v4888
    %v5683 = vmul.f32 %v5375, %v4889
    %v5684 = vmul.f32 %v5377, %v4890
    %v5685 = vmul.f32 %v5379, %v4891
    %v5686 = vmul.f32 %v5381, %v4892
    %v5687 = vmul.f32 %v5383, %v4893
    %v5688 = vadd.f32 %v5656, %v5672
    %v5689 = vadd.f32 %v5657, %v5673
    %v5690 = vadd.f32 %v5658, %v5674
    %v5691 = vadd.f32 %v5659, %v5675
    %v5692 = vadd.f32 %v5660, %v5676
    %v5693 = vadd.f32 %v5661, %v5677
    %v5694 = vadd.f32 %v5662, %v5678
    %v5695 = vadd.f32 %v5663, %v5679
    %v5696 = vadd.f32 %v5664, %v5680
    %v5697 = vadd.f32 %v5665, %v5681
    %v5698 = vadd.f32 %v5666, %v5682
    %v5699 = vadd.f32 %v5667, %v5683
    %v5700 = vadd.f32 %v5668, %v5684
    %v5701 = vadd.f32 %v5669, %v5685
    %v5702 = vadd.f32 %v5670, %v5686
    %v5703 = vadd.f32 %v5671, %v5687
    %5704 = vmatprep.subr.bf16.mxu0 0
    %5705 = vmatpush1.bf16.msra.mxu0 %v401
    %5706 = vmatprep.subr.bf16.mxu0 0
    %5707 = vmatpush1.bf16.msra.mxu0 0
    %5708 = vmatprep.subr.bf16.mxu0 0
    %5709 = vmatpush1.bf16.msra.mxu0 0
    %5710 = vmatprep.subr.bf16.mxu0 0
    %5711 = vmatpush1.bf16.msra.mxu0 0
    %5712 = vmatprep.subr.bf16.mxu0 0
    %5713 = vmatpush1.bf16.msra.mxu0 0
    %5714 = vmatprep.subr.bf16.mxu0 0
    %5715 = vmatpush1.bf16.msra.mxu0 0
    %5716 = vmatprep.subr.bf16.mxu0 0
    %5717 = vmatpush1.bf16.msra.mxu0 0
    %5718 = vmatprep.subr.bf16.mxu0 0
    %5719 = vmatpush1.bf16.msra.mxu0 0
    %5720 = vmatprep.subr.bf16.mxu0 0
    %5721 = vmatpush1.bf16.msra.mxu0 0
    %5722 = vmatprep.subr.bf16.mxu0 0
    %5723 = vmatpush1.bf16.msra.mxu0 0
    %5724 = vmatprep.subr.bf16.mxu0 0
    %5725 = vmatpush1.bf16.msra.mxu0 0
    %5726 = vmatprep.subr.bf16.mxu0 0
    %5727 = vmatpush1.bf16.msra.mxu0 0
    %5728 = vmatprep.subr.bf16.mxu0 0
    %5729 = vmatpush1.bf16.msra.mxu0 0
    %5730 = vmatprep.subr.bf16.mxu0 0
    %5731 = vmatpush1.bf16.msra.mxu0 0
    %5732 = vmatprep.subr.bf16.mxu0 0
    %5733 = vmatpush1.bf16.msra.mxu0 0
    %5734 = vmatprep.subr.bf16.mxu0 0
    %5735 = vmatpush1.bf16.msra.mxu0 0
    %5736 = vmatprep.mubr.bf16.mxu0 0
    %5737 = vmatmul.mubr.bf16.gmra.mrb[0].mxu0 %v173
    %v5738 = vpop.f32.mrb[0].mxu0
    %v5739 = vadd.f32 0.0, %v5738
    %v5740 = vpop.f32.mrb[0].mxu0
    %v5741 = vpop.f32.mrb[0].mxu0
    %v5742 = vadd.f32 0.0, %v5741
    %v5743 = vpop.f32.mrb[0].mxu0
    %5744 = vmatprep.mubr.bf16.mxu0 0
    %5745 = vmatmul.mubr.bf16.gmra.mrb[0].mxu0 %v176
    %v5746 = vpop.f32.mrb[0].mxu0
    %v5747 = vadd.f32 0.0, %v5746
    %v5748 = vpop.f32.mrb[0].mxu0
    %v5749 = vpop.f32.mrb[0].mxu0
    %v5750 = vadd.f32 0.0, %v5749
    %v5751 = vpop.f32.mrb[0].mxu0
    %5752 = vmatprep.mubr.bf16.mxu0 0
    %5753 = vmatmul.mubr.bf16.gmra.mrb[0].mxu0 %v179
    %v5754 = vpop.f32.mrb[0].mxu0
    %v5755 = vadd.f32 0.0, %v5754
    %v5756 = vpop.f32.mrb[0].mxu0
    %v5757 = vpop.f32.mrb[0].mxu0
    %v5758 = vadd.f32 0.0, %v5757
    %v5759 = vpop.f32.mrb[0].mxu0
    %5760 = vmatprep.mubr.bf16.mxu0 0
    %5761 = vmatmul.mubr.bf16.gmra.mrb[0].mxu0 %v182
    %v5762 = vpop.f32.mrb[0].mxu0
    %v5763 = vadd.f32 0.0, %v5762
    %v5764 = vpop.f32.mrb[0].mxu0
    %v5765 = vpop.f32.mrb[0].mxu0
    %v5766 = vadd.f32 0.0, %v5765
    %v5767 = vpop.f32.mrb[0].mxu0
    %5768 = vmatprep.mubr.bf16.mxu0 0
    %5769 = vmatmul.mubr.bf16.gmra.mrb[0].mxu0 %v185
    %v5770 = vpop.f32.mrb[0].mxu0
    %v5771 = vadd.f32 0.0, %v5770
    %v5772 = vpop.f32.mrb[0].mxu0
    %v5773 = vpop.f32.mrb[0].mxu0
    %v5774 = vadd.f32 0.0, %v5773
    %v5775 = vpop.f32.mrb[0].mxu0
    %5776 = vmatprep.mubr.bf16.mxu0 0
    %5777 = vmatmul.mubr.bf16.gmra.mrb[0].mxu0 %v188
    %v5778 = vpop.f32.mrb[0].mxu0
    %v5779 = vadd.f32 0.0, %v5778
    %v5780 = vpop.f32.mrb[0].mxu0
    %v5781 = vpop.f32.mrb[0].mxu0
    %v5782 = vadd.f32 0.0, %v5781
    %v5783 = vpop.f32.mrb[0].mxu0
    %5784 = vmatprep.mubr.bf16.mxu0 0
    %5785 = vmatmul.mubr.bf16.gmra.mrb[0].mxu0 %v191
    %v5786 = vpop.f32.mrb[0].mxu0
    %v5787 = vadd.f32 0.0, %v5786
    %v5788 = vpop.f32.mrb[0].mxu0
    %v5789 = vpop.f32.mrb[0].mxu0
    %v5790 = vadd.f32 0.0, %v5789
    %v5791 = vpop.f32.mrb[0].mxu0
    %5792 = vmatprep.mubr.bf16.mxu0 0
    %5793 = vmatmul.mubr.bf16.gmra.mrb[0].mxu0 %v194
    %v5794 = vpop.f32.mrb[0].mxu0
    %v5795 = vadd.f32 0.0, %v5794
    %v5796 = vpop.f32.mrb[0].mxu0
    %v5797 = vpop.f32.mrb[0].mxu0
    %v5798 = vadd.f32 0.0, %v5797
    %v5799 = vpop.f32.mrb[0].mxu0
    %5800 = vdwg.mxu0
    %v5801 = vpack.c.bf16 %v5689, %v5688
    %v5802 = vpack.c.bf16 %v5691, %v5690
    %v5803 = vpack.c.bf16 %v5693, %v5692
    %v5804 = vpack.c.bf16 %v5695, %v5694
    %v5805 = vpack.c.bf16 %v5697, %v5696
    %v5806 = vpack.c.bf16 %v5699, %v5698
    %v5807 = vpack.c.bf16 %v5701, %v5700
    %v5808 = vpack.c.bf16 %v5703, %v5702
    %5817 = vrot.lane.b32.xlu0 %v5801, 96
    %v5818 = vpop.permute.xlu0 %5817
    %5819 = vrot.lane.b32.xlu0 %v5802, 96
    %v5820 = vpop.permute.xlu0 %5819
    %5821 = vrot.lane.b32.xlu0 %v5803, 96
    %v5822 = vpop.permute.xlu0 %5821
    %5823 = vrot.lane.b32.xlu0 %v5804, 96
    %v5824 = vpop.permute.xlu0 %5823
    %5825 = vrot.lane.b32.xlu0 %v5805, 96
    %v5826 = vpop.permute.xlu0 %5825
    %5827 = vrot.lane.b32.xlu0 %v5806, 96
    %v5828 = vpop.permute.xlu0 %5827
    %5829 = vrot.lane.b32.xlu0 %v5807, 96
    %v5830 = vpop.permute.xlu0 %5829
    %5831 = vrot.lane.b32.xlu0 %v5808, 96
    %v5832 = vpop.permute.xlu0 %5831
    %v5834 = vsel %vm1097, %v5818, 0
    %v5837 = vsel %vm1097, %v5820, 0
    %v5840 = vsel %vm1097, %v5822, 0
    %v5843 = vsel %vm1097, %v5824, 0
    %v5846 = vsel %vm1097, %v5826, 0
    %v5849 = vsel %vm1097, %v5828, 0
    %v5852 = vsel %vm1097, %v5830, 0
    %v5855 = vsel %vm1097, %v5832, 0
    %5857 = vmatprep.subr.bf16.mxu0 0
    %5858 = vmatpush1.bf16.msra.mxu0 %v1093
    %5859 = vmatprep.subr.bf16.mxu0 0
    %5860 = vmatpush1.bf16.msra.mxu0 %v1094
    %5861 = vmatprep.subr.bf16.mxu0 0
    %5862 = vmatpush1.bf16.msra.mxu0 0
    %5863 = vmatprep.subr.bf16.mxu0 0
    %5864 = vmatpush1.bf16.msra.mxu0 0
    %5865 = vmatprep.subr.bf16.mxu0 0
    %5866 = vmatpush1.bf16.msra.mxu0 0
    %5867 = vmatprep.subr.bf16.mxu0 0
    %5868 = vmatpush1.bf16.msra.mxu0 0
    %5869 = vmatprep.subr.bf16.mxu0 0
    %5870 = vmatpush1.bf16.msra.mxu0 0
    %5871 = vmatprep.subr.bf16.mxu0 0
    %5872 = vmatpush1.bf16.msra.mxu0 0
    %5873 = vmatprep.subr.bf16.mxu0 0
    %5874 = vmatpush1.bf16.msra.mxu0 0
    %5875 = vmatprep.subr.bf16.mxu0 0
    %5876 = vmatpush1.bf16.msra.mxu0 0
    %5877 = vmatprep.subr.bf16.mxu0 0
    %5878 = vmatpush1.bf16.msra.mxu0 0
    %5879 = vmatprep.subr.bf16.mxu0 0
    %5880 = vmatpush1.bf16.msra.mxu0 0
    %5881 = vmatprep.subr.bf16.mxu0 0
    %5882 = vmatpush1.bf16.msra.mxu0 0
    %5883 = vmatprep.subr.bf16.mxu0 0
    %5884 = vmatpush1.bf16.msra.mxu0 0
    %5885 = vmatprep.subr.bf16.mxu0 0
    %5886 = vmatpush1.bf16.msra.mxu0 0
    %5887 = vmatprep.subr.bf16.mxu0 0
    %5888 = vmatpush1.bf16.msra.mxu0 0
    %5889 = vmatprep.mubr.bf16.mxu0 0
    %5890 = vmatmul.mubr.bf16.gmra.mrb[0].mxu0 %v5834
    %v5891 = vpop.f32.mrb[0].mxu0
    %v5892 = vadd.f32 0.0, %v5891
    %v5893 = vpop.f32.mrb[0].mxu0
    %v5894 = vpop.f32.mrb[0].mxu0
    %v5895 = vadd.f32 0.0, %v5894
    %v5896 = vpop.f32.mrb[0].mxu0
    %5897 = vmatprep.mubr.bf16.mxu0 0
    %5898 = vmatmul.mubr.bf16.gmra.mrb[0].mxu0 %v5837
    %v5899 = vpop.f32.mrb[0].mxu0
    %v5900 = vadd.f32 0.0, %v5899
    %v5901 = vpop.f32.mrb[0].mxu0
    %v5902 = vpop.f32.mrb[0].mxu0
    %v5903 = vadd.f32 0.0, %v5902
    %v5904 = vpop.f32.mrb[0].mxu0
    %5905 = vmatprep.mubr.bf16.mxu0 0
    %5906 = vmatmul.mubr.bf16.gmra.mrb[0].mxu0 %v5840
    %v5907 = vpop.f32.mrb[0].mxu0
    %v5908 = vadd.f32 0.0, %v5907
    %v5909 = vpop.f32.mrb[0].mxu0
    %v5910 = vpop.f32.mrb[0].mxu0
    %v5911 = vadd.f32 0.0, %v5910
    %v5912 = vpop.f32.mrb[0].mxu0
    %5913 = vmatprep.mubr.bf16.mxu0 0
    %5914 = vmatmul.mubr.bf16.gmra.mrb[0].mxu0 %v5843
    %v5915 = vpop.f32.mrb[0].mxu0
    %v5916 = vadd.f32 0.0, %v5915
    %v5917 = vpop.f32.mrb[0].mxu0
    %v5918 = vpop.f32.mrb[0].mxu0
    %v5919 = vadd.f32 0.0, %v5918
    %v5920 = vpop.f32.mrb[0].mxu0
    %5921 = vmatprep.mubr.bf16.mxu0 0
    %5922 = vmatmul.mubr.bf16.gmra.mrb[0].mxu0 %v5846
    %v5923 = vpop.f32.mrb[0].mxu0
    %v5924 = vadd.f32 0.0, %v5923
    %v5925 = vpop.f32.mrb[0].mxu0
    %v5926 = vpop.f32.mrb[0].mxu0
    %v5927 = vadd.f32 0.0, %v5926
    %v5928 = vpop.f32.mrb[0].mxu0
    %5929 = vmatprep.mubr.bf16.mxu0 0
    %5930 = vmatmul.mubr.bf16.gmra.mrb[0].mxu0 %v5849
    %v5931 = vpop.f32.mrb[0].mxu0
    %v5932 = vadd.f32 0.0, %v5931
    %v5933 = vpop.f32.mrb[0].mxu0
    %v5934 = vpop.f32.mrb[0].mxu0
    %v5935 = vadd.f32 0.0, %v5934
    %v5936 = vpop.f32.mrb[0].mxu0
    %5937 = vmatprep.mubr.bf16.mxu0 0
    %5938 = vmatmul.mubr.bf16.gmra.mrb[0].mxu0 %v5852
    %v5939 = vpop.f32.mrb[0].mxu0
    %v5940 = vadd.f32 0.0, %v5939
    %v5941 = vpop.f32.mrb[0].mxu0
    %v5942 = vpop.f32.mrb[0].mxu0
    %v5943 = vadd.f32 0.0, %v5942
    %v5944 = vpop.f32.mrb[0].mxu0
    %5945 = vmatprep.mubr.bf16.mxu0 0
    %5946 = vmatmul.mubr.bf16.gmra.mrb[0].mxu0 %v5855
    %v5947 = vpop.f32.mrb[0].mxu0
    %v5948 = vadd.f32 0.0, %v5947
    %v5949 = vpop.f32.mrb[0].mxu0
    %v5950 = vpop.f32.mrb[0].mxu0
    %v5951 = vadd.f32 0.0, %v5950
    %v5952 = vpop.f32.mrb[0].mxu0
    %5953 = vdwg.mxu0
    %v5954 = vadd.f32 %v5739, %v5892
    %v5955 = vadd.f32 %v5742, %v5895
    %v5956 = vadd.f32 %v5747, %v5900
    %v5957 = vadd.f32 %v5750, %v5903
    %v5958 = vadd.f32 %v5755, %v5908
    %v5959 = vadd.f32 %v5758, %v5911
    %v5960 = vadd.f32 %v5763, %v5916
    %v5961 = vadd.f32 %v5766, %v5919
    %v5962 = vadd.f32 %v5771, %v5924
    %v5963 = vadd.f32 %v5774, %v5927
    %v5964 = vadd.f32 %v5779, %v5932
    %v5965 = vadd.f32 %v5782, %v5935
    %v5966 = vadd.f32 %v5787, %v5940
    %v5967 = vadd.f32 %v5790, %v5943
    %v5968 = vadd.f32 %v5795, %v5948
    %v5969 = vadd.f32 %v5798, %v5951
    %v5970 = vxor.u32 %v5954, 2147483648
    %v5971 = vxor.u32 %v5955, 2147483648
    %v5972 = vxor.u32 %v5956, 2147483648
    %v5973 = vxor.u32 %v5957, 2147483648
    %v5974 = vxor.u32 %v5958, 2147483648
    %v5975 = vxor.u32 %v5959, 2147483648
    %v5976 = vxor.u32 %v5960, 2147483648
    %v5977 = vxor.u32 %v5961, 2147483648
    %v5978 = vxor.u32 %v5962, 2147483648
    %v5979 = vxor.u32 %v5963, 2147483648
    %v5980 = vxor.u32 %v5964, 2147483648
    %v5981 = vxor.u32 %v5965, 2147483648
    %v5982 = vxor.u32 %v5966, 2147483648
    %v5983 = vxor.u32 %v5967, 2147483648
    %v5984 = vxor.u32 %v5968, 2147483648
    %v5985 = vxor.u32 %v5969, 2147483648
    %v5986 = vmul.f32 %v5970, 1.442695
    %v5987 = vpow.pop %v5986
    %v5988 = vmul.f32 %v5971, 1.442695
    %v5989 = vpow.pop %v5988
    %v5990 = vmul.f32 %v5972, 1.442695
    %v5991 = vpow.pop %v5990
    %v5992 = vmul.f32 %v5973, 1.442695
    %v5993 = vpow.pop %v5992
    %v5994 = vmul.f32 %v5974, 1.442695
    %v5995 = vpow.pop %v5994
    %v5996 = vmul.f32 %v5975, 1.442695
    %v5997 = vpow.pop %v5996
    %v5998 = vmul.f32 %v5976, 1.442695
    %v5999 = vpow.pop %v5998
    %v6000 = vmul.f32 %v5977, 1.442695
    %v6001 = vpow.pop %v6000
    %v6002 = vmul.f32 %v5978, 1.442695
    %v6003 = vpow.pop %v6002
    %v6004 = vmul.f32 %v5979, 1.442695
    %v6005 = vpow.pop %v6004
    %v6006 = vmul.f32 %v5980, 1.442695
    %v6007 = vpow.pop %v6006
    %v6008 = vmul.f32 %v5981, 1.442695
    %v6009 = vpow.pop %v6008
    %v6010 = vmul.f32 %v5982, 1.442695
    %v6011 = vpow.pop %v6010
    %v6012 = vmul.f32 %v5983, 1.442695
    %v6013 = vpow.pop %v6012
    %v6014 = vmul.f32 %v5984, 1.442695
    %v6015 = vpow.pop %v6014
    %v6016 = vmul.f32 %v5985, 1.442695
    %v6017 = vpow.pop %v6016
    %v6018 = vadd.f32 %v5987, 1.0
    %v6019 = vadd.f32 %v5989, 1.0
    %v6020 = vadd.f32 %v5991, 1.0
    %v6021 = vadd.f32 %v5993, 1.0
    %v6022 = vadd.f32 %v5995, 1.0
    %v6023 = vadd.f32 %v5997, 1.0
    %v6024 = vadd.f32 %v5999, 1.0
    %v6025 = vadd.f32 %v6001, 1.0
    %v6026 = vadd.f32 %v6003, 1.0
    %v6027 = vadd.f32 %v6005, 1.0
    %v6028 = vadd.f32 %v6007, 1.0
    %v6029 = vadd.f32 %v6009, 1.0
    %v6030 = vadd.f32 %v6011, 1.0
    %v6031 = vadd.f32 %v6013, 1.0
    %v6032 = vadd.f32 %v6015, 1.0
    %v6033 = vadd.f32 %v6017, 1.0
    %v6034 = vrcp.pop %v6018
    %v6035 = vmul.f32 1.0, %v6034
    %v6036 = vrcp.pop %v6019
    %v6037 = vmul.f32 1.0, %v6036
    %v6038 = vrcp.pop %v6020
    %v6039 = vmul.f32 1.0, %v6038
    %v6040 = vrcp.pop %v6021
    %v6041 = vmul.f32 1.0, %v6040
    %v6042 = vrcp.pop %v6022
    %v6043 = vmul.f32 1.0, %v6042
    %v6044 = vrcp.pop %v6023
    %v6045 = vmul.f32 1.0, %v6044
    %v6046 = vrcp.pop %v6024
    %v6047 = vmul.f32 1.0, %v6046
    %v6048 = vrcp.pop %v6025
    %v6049 = vmul.f32 1.0, %v6048
    %v6050 = vrcp.pop %v6026
    %v6051 = vmul.f32 1.0, %v6050
    %v6052 = vrcp.pop %v6027
    %v6053 = vmul.f32 1.0, %v6052
    %v6054 = vrcp.pop %v6028
    %v6055 = vmul.f32 1.0, %v6054
    %v6056 = vrcp.pop %v6029
    %v6057 = vmul.f32 1.0, %v6056
    %v6058 = vrcp.pop %v6030
    %v6059 = vmul.f32 1.0, %v6058
    %v6060 = vrcp.pop %v6031
    %v6061 = vmul.f32 1.0, %v6060
    %v6062 = vrcp.pop %v6032
    %v6063 = vmul.f32 1.0, %v6062
    %v6064 = vrcp.pop %v6033
    %v6065 = vmul.f32 1.0, %v6064
    %v6066 = vadd.f32 %v5892, %v1332
    %v6067 = vadd.f32 %v5895, %v1332
    %v6068 = vadd.f32 %v5900, %v1332
    %v6069 = vadd.f32 %v5903, %v1332
    %v6070 = vadd.f32 %v5908, %v1332
    %v6071 = vadd.f32 %v5911, %v1332
    %v6072 = vadd.f32 %v5916, %v1332
    %v6073 = vadd.f32 %v5919, %v1332
    %v6074 = vadd.f32 %v5924, %v1332
    %v6075 = vadd.f32 %v5927, %v1332
    %v6076 = vadd.f32 %v5932, %v1332
    %v6077 = vadd.f32 %v5935, %v1332
    %v6078 = vadd.f32 %v5940, %v1332
    %v6079 = vadd.f32 %v5943, %v1332
    %v6080 = vadd.f32 %v5948, %v1332
    %v6081 = vadd.f32 %v5951, %v1332
    %6098 = vrot.lane.b32.xlu0 %v6066, 64
    %v6099 = vpop.permute.xlu0 %6098
    %6100 = vrot.lane.b32.xlu0 %v6067, 64
    %v6101 = vpop.permute.xlu0 %6100
    %6102 = vrot.lane.b32.xlu0 %v6068, 64
    %v6103 = vpop.permute.xlu0 %6102
    %6104 = vrot.lane.b32.xlu0 %v6069, 64
    %v6105 = vpop.permute.xlu0 %6104
    %6106 = vrot.lane.b32.xlu0 %v6070, 64
    %v6107 = vpop.permute.xlu0 %6106
    %6108 = vrot.lane.b32.xlu0 %v6071, 64
    %v6109 = vpop.permute.xlu0 %6108
    %6110 = vrot.lane.b32.xlu0 %v6072, 64
    %v6111 = vpop.permute.xlu0 %6110
    %6112 = vrot.lane.b32.xlu0 %v6073, 64
    %v6113 = vpop.permute.xlu0 %6112
    %6114 = vrot.lane.b32.xlu0 %v6074, 64
    %v6115 = vpop.permute.xlu0 %6114
    %6116 = vrot.lane.b32.xlu0 %v6075, 64
    %v6117 = vpop.permute.xlu0 %6116
    %6118 = vrot.lane.b32.xlu0 %v6076, 64
    %v6119 = vpop.permute.xlu0 %6118
    %6120 = vrot.lane.b32.xlu0 %v6077, 64
    %v6121 = vpop.permute.xlu0 %6120
    %6122 = vrot.lane.b32.xlu0 %v6078, 64
    %v6123 = vpop.permute.xlu0 %6122
    %6124 = vrot.lane.b32.xlu0 %v6079, 64
    %v6125 = vpop.permute.xlu0 %6124
    %6126 = vrot.lane.b32.xlu0 %v6080, 64
    %v6127 = vpop.permute.xlu0 %6126
    %6128 = vrot.lane.b32.xlu0 %v6081, 64
    %v6129 = vpop.permute.xlu0 %6128
    %v6146 = vmul.f32 %v6035, %v6099
    %v6147 = vmul.f32 %v6037, %v6101
    %v6148 = vmul.f32 %v6039, %v6103
    %v6149 = vmul.f32 %v6041, %v6105
    %v6150 = vmul.f32 %v6043, %v6107
    %v6151 = vmul.f32 %v6045, %v6109
    %v6152 = vmul.f32 %v6047, %v6111
    %v6153 = vmul.f32 %v6049, %v6113
    %v6154 = vmul.f32 %v6051, %v6115
    %v6155 = vmul.f32 %v6053, %v6117
    %v6156 = vmul.f32 %v6055, %v6119
    %v6157 = vmul.f32 %v6057, %v6121
    %v6158 = vmul.f32 %v6059, %v6123
    %v6159 = vmul.f32 %v6061, %v6125
    %v6160 = vmul.f32 %v6063, %v6127
    %v6161 = vmul.f32 %v6065, %v6129
    %6178 = vrot.lane.b32.xlu0 %v6146, 64
    %v6179 = vpop.permute.xlu0 %6178
    %6180 = vrot.lane.b32.xlu0 %v6147, 64
    %v6181 = vpop.permute.xlu0 %6180
    %6182 = vrot.lane.b32.xlu0 %v6148, 64
    %v6183 = vpop.permute.xlu0 %6182
    %6184 = vrot.lane.b32.xlu0 %v6149, 64
    %v6185 = vpop.permute.xlu0 %6184
    %6186 = vrot.lane.b32.xlu0 %v6150, 64
    %v6187 = vpop.permute.xlu0 %6186
    %6188 = vrot.lane.b32.xlu0 %v6151, 64
    %v6189 = vpop.permute.xlu0 %6188
    %6190 = vrot.lane.b32.xlu0 %v6152, 64
    %v6191 = vpop.permute.xlu0 %6190
    %6192 = vrot.lane.b32.xlu0 %v6153, 64
    %v6193 = vpop.permute.xlu0 %6192
    %6194 = vrot.lane.b32.xlu0 %v6154, 64
    %v6195 = vpop.permute.xlu0 %6194
    %6196 = vrot.lane.b32.xlu0 %v6155, 64
    %v6197 = vpop.permute.xlu0 %6196
    %6198 = vrot.lane.b32.xlu0 %v6156, 64
    %v6199 = vpop.permute.xlu0 %6198
    %6200 = vrot.lane.b32.xlu0 %v6157, 64
    %v6201 = vpop.permute.xlu0 %6200
    %6202 = vrot.lane.b32.xlu0 %v6158, 64
    %v6203 = vpop.permute.xlu0 %6202
    %6204 = vrot.lane.b32.xlu0 %v6159, 64
    %v6205 = vpop.permute.xlu0 %6204
    %6206 = vrot.lane.b32.xlu0 %v6160, 64
    %v6207 = vpop.permute.xlu0 %6206
    %6208 = vrot.lane.b32.xlu0 %v6161, 64
    %v6209 = vpop.permute.xlu0 %6208
    %v6226 = vadd.f32 %v5739, %v6179
    %v6227 = vadd.f32 %v5742, %v6181
    %v6228 = vadd.f32 %v5747, %v6183
    %v6229 = vadd.f32 %v5750, %v6185
    %v6230 = vadd.f32 %v5755, %v6187
    %v6231 = vadd.f32 %v5758, %v6189
    %v6232 = vadd.f32 %v5763, %v6191
    %v6233 = vadd.f32 %v5766, %v6193
    %v6234 = vadd.f32 %v5771, %v6195
    %v6235 = vadd.f32 %v5774, %v6197
    %v6236 = vadd.f32 %v5779, %v6199
    %v6237 = vadd.f32 %v5782, %v6201
    %v6238 = vadd.f32 %v5787, %v6203
    %v6239 = vadd.f32 %v5790, %v6205
    %v6240 = vadd.f32 %v5795, %v6207
    %v6241 = vadd.f32 %v5798, %v6209
    %v6242 = vtanh.pop %v6226
    %v6243 = vtanh.pop %v6227
    %v6244 = vtanh.pop %v6228
    %v6245 = vtanh.pop %v6229
    %v6246 = vtanh.pop %v6230
    %v6247 = vtanh.pop %v6231
    %v6248 = vtanh.pop %v6232
    %v6249 = vtanh.pop %v6233
    %v6250 = vtanh.pop %v6234
    %v6251 = vtanh.pop %v6235
    %v6252 = vtanh.pop %v6236
    %v6253 = vtanh.pop %v6237
    %v6254 = vtanh.pop %v6238
    %v6255 = vtanh.pop %v6239
    %v6256 = vtanh.pop %v6240
    %v6257 = vtanh.pop %v6241
    %v6258 = vsub.f32 1.0, %v6035
    %v6259 = vsub.f32 1.0, %v6037
    %v6260 = vsub.f32 1.0, %v6039
    %v6261 = vsub.f32 1.0, %v6041
    %v6262 = vsub.f32 1.0, %v6043
    %v6263 = vsub.f32 1.0, %v6045
    %v6264 = vsub.f32 1.0, %v6047
    %v6265 = vsub.f32 1.0, %v6049
    %v6266 = vsub.f32 1.0, %v6051
    %v6267 = vsub.f32 1.0, %v6053
    %v6268 = vsub.f32 1.0, %v6055
    %v6269 = vsub.f32 1.0, %v6057
    %v6270 = vsub.f32 1.0, %v6059
    %v6271 = vsub.f32 1.0, %v6061
    %v6272 = vsub.f32 1.0, %v6063
    %v6273 = vsub.f32 1.0, %v6065
    %6290 = vrot.lane.b32.xlu0 %v6242, 96
    %v6291 = vpop.permute.xlu0 %6290
    %6292 = vrot.lane.b32.xlu0 %v6243, 96
    %v6293 = vpop.permute.xlu0 %6292
    %6294 = vrot.lane.b32.xlu0 %v6244, 96
    %v6295 = vpop.permute.xlu0 %6294
    %6296 = vrot.lane.b32.xlu0 %v6245, 96
    %v6297 = vpop.permute.xlu0 %6296
    %6298 = vrot.lane.b32.xlu0 %v6246, 96
    %v6299 = vpop.permute.xlu0 %6298
    %6300 = vrot.lane.b32.xlu0 %v6247, 96
    %v6301 = vpop.permute.xlu0 %6300
    %6302 = vrot.lane.b32.xlu0 %v6248, 96
    %v6303 = vpop.permute.xlu0 %6302
    %6304 = vrot.lane.b32.xlu0 %v6249, 96
    %v6305 = vpop.permute.xlu0 %6304
    %6306 = vrot.lane.b32.xlu0 %v6250, 96
    %v6307 = vpop.permute.xlu0 %6306
    %6308 = vrot.lane.b32.xlu0 %v6251, 96
    %v6309 = vpop.permute.xlu0 %6308
    %6310 = vrot.lane.b32.xlu0 %v6252, 96
    %v6311 = vpop.permute.xlu0 %6310
    %6312 = vrot.lane.b32.xlu0 %v6253, 96
    %v6313 = vpop.permute.xlu0 %6312
    %6314 = vrot.lane.b32.xlu0 %v6254, 96
    %v6315 = vpop.permute.xlu0 %6314
    %6316 = vrot.lane.b32.xlu0 %v6255, 96
    %v6317 = vpop.permute.xlu0 %6316
    %6318 = vrot.lane.b32.xlu0 %v6256, 96
    %v6319 = vpop.permute.xlu0 %6318
    %6320 = vrot.lane.b32.xlu0 %v6257, 96
    %v6321 = vpop.permute.xlu0 %6320
    %v6338 = vmul.f32 %v6258, %v6291
    %v6339 = vmul.f32 %v6259, %v6293
    %v6340 = vmul.f32 %v6260, %v6295
    %v6341 = vmul.f32 %v6261, %v6297
    %v6342 = vmul.f32 %v6262, %v6299
    %v6343 = vmul.f32 %v6263, %v6301
    %v6344 = vmul.f32 %v6264, %v6303
    %v6345 = vmul.f32 %v6265, %v6305
    %v6346 = vmul.f32 %v6266, %v6307
    %v6347 = vmul.f32 %v6267, %v6309
    %v6348 = vmul.f32 %v6268, %v6311
    %v6349 = vmul.f32 %v6269, %v6313
    %v6350 = vmul.f32 %v6270, %v6315
    %v6351 = vmul.f32 %v6271, %v6317
    %v6352 = vmul.f32 %v6272, %v6319
    %v6353 = vmul.f32 %v6273, %v6321
    %v6354 = vmul.f32 %v6035, %v5688
    %v6355 = vmul.f32 %v6037, %v5689
    %v6356 = vmul.f32 %v6039, %v5690
    %v6357 = vmul.f32 %v6041, %v5691
    %v6358 = vmul.f32 %v6043, %v5692
    %v6359 = vmul.f32 %v6045, %v5693
    %v6360 = vmul.f32 %v6047, %v5694
    %v6361 = vmul.f32 %v6049, %v5695
    %v6362 = vmul.f32 %v6051, %v5696
    %v6363 = vmul.f32 %v6053, %v5697
    %v6364 = vmul.f32 %v6055, %v5698
    %v6365 = vmul.f32 %v6057, %v5699
    %v6366 = vmul.f32 %v6059, %v5700
    %v6367 = vmul.f32 %v6061, %v5701
    %v6368 = vmul.f32 %v6063, %v5702
    %v6369 = vmul.f32 %v6065, %v5703
    %v6370 = vadd.f32 %v6338, %v6354
    %v6371 = vadd.f32 %v6339, %v6355
    %v6372 = vadd.f32 %v6340, %v6356
    %v6373 = vadd.f32 %v6341, %v6357
    %v6374 = vadd.f32 %v6342, %v6358
    %v6375 = vadd.f32 %v6343, %v6359
    %v6376 = vadd.f32 %v6344, %v6360
    %v6377 = vadd.f32 %v6345, %v6361
    %v6378 = vadd.f32 %v6346, %v6362
    %v6379 = vadd.f32 %v6347, %v6363
    %v6380 = vadd.f32 %v6348, %v6364
    %v6381 = vadd.f32 %v6349, %v6365
    %v6382 = vadd.f32 %v6350, %v6366
    %v6383 = vadd.f32 %v6351, %v6367
    %v6384 = vadd.f32 %v6352, %v6368
    %v6385 = vadd.f32 %v6353, %v6369
    %6402 = vrot.lane.b32.xlu0 %v231, 32
    %v6403 = vpop.permute.xlu0 %6402
    %6404 = vrot.lane.b32.xlu0 %v234, 32
    %v6405 = vpop.permute.xlu0 %6404
    %6406 = vrot.lane.b32.xlu0 %v239, 32
    %v6407 = vpop.permute.xlu0 %6406
    %6408 = vrot.lane.b32.xlu0 %v242, 32
    %v6409 = vpop.permute.xlu0 %6408
    %6410 = vrot.lane.b32.xlu0 %v247, 32
    %v6411 = vpop.permute.xlu0 %6410
    %6412 = vrot.lane.b32.xlu0 %v250, 32
    %v6413 = vpop.permute.xlu0 %6412
    %6414 = vrot.lane.b32.xlu0 %v255, 32
    %v6415 = vpop.permute.xlu0 %6414
    %6416 = vrot.lane.b32.xlu0 %v258, 32
    %v6417 = vpop.permute.xlu0 %6416
    %6418 = vrot.lane.b32.xlu0 %v263, 32
    %v6419 = vpop.permute.xlu0 %6418
    %6420 = vrot.lane.b32.xlu0 %v266, 32
    %v6421 = vpop.permute.xlu0 %6420
    %6422 = vrot.lane.b32.xlu0 %v271, 32
    %v6423 = vpop.permute.xlu0 %6422
    %6424 = vrot.lane.b32.xlu0 %v274, 32
    %v6425 = vpop.permute.xlu0 %6424
    %6426 = vrot.lane.b32.xlu0 %v279, 32
    %v6427 = vpop.permute.xlu0 %6426
    %6428 = vrot.lane.b32.xlu0 %v282, 32
    %v6429 = vpop.permute.xlu0 %6428
    %6430 = vrot.lane.b32.xlu0 %v287, 32
    %v6431 = vpop.permute.xlu0 %6430
    %6432 = vrot.lane.b32.xlu0 %v290, 32
    %v6433 = vpop.permute.xlu0 %6432
    %v6450 = vadd.f32 %v6370, %v6403
    %v6451 = vadd.f32 %v6371, %v6405
    %v6452 = vadd.f32 %v6372, %v6407
    %v6453 = vadd.f32 %v6373, %v6409
    %v6454 = vadd.f32 %v6374, %v6411
    %v6455 = vadd.f32 %v6375, %v6413
    %v6456 = vadd.f32 %v6376, %v6415
    %v6457 = vadd.f32 %v6377, %v6417
    %v6458 = vadd.f32 %v6378, %v6419
    %v6459 = vadd.f32 %v6379, %v6421
    %v6460 = vadd.f32 %v6380, %v6423
    %v6461 = vadd.f32 %v6381, %v6425
    %v6462 = vadd.f32 %v6382, %v6427
    %v6463 = vadd.f32 %v6383, %v6429
    %v6464 = vadd.f32 %v6384, %v6431
    %v6465 = vadd.f32 %v6385, %v6433
    %v6466 = vpack.c.bf16 %v6451, %v6450
    %v6467 = vpack.c.bf16 %v6453, %v6452
    %v6468 = vpack.c.bf16 %v6455, %v6454
    %v6469 = vpack.c.bf16 %v6457, %v6456
    %v6470 = vpack.c.bf16 %v6459, %v6458
    %v6471 = vpack.c.bf16 %v6461, %v6460
    %v6472 = vpack.c.bf16 %v6463, %v6462
    %v6473 = vpack.c.bf16 %v6465, %v6464
    %v6474 = vld [vmem:[%s5] sm:$0xf]
    %v6475 = vld [vmem:[%s5 + $0x4] sm:$0xf]
    %v6476 = vld [vmem:[%s5 + $0x8] sm:$0xf]
    %v6477 = vld [vmem:[%s5 + $0xc] sm:$0xf]
    %v6478 = vld [vmem:[%s6] sm:$0x1]
    %v6480 = vlaneseq
    %v6481 = vshrl.u32 %v6480, 7
    %v6482 = vsub.s32 0, %v6481
    %v6483 = vrot.slane %v6478, %v6482
    %6493 = vrot.lane.b32.xlu0 %v6466, 96
    %v6494 = vpop.permute.xlu0 %6493
    %6495 = vrot.lane.b32.xlu0 %v6467, 96
    %v6496 = vpop.permute.xlu0 %6495
    %6497 = vrot.lane.b32.xlu0 %v6468, 96
    %v6498 = vpop.permute.xlu0 %6497
    %6499 = vrot.lane.b32.xlu0 %v6469, 96
    %v6500 = vpop.permute.xlu0 %6499
    %6501 = vrot.lane.b32.xlu0 %v6470, 96
    %v6502 = vpop.permute.xlu0 %6501
    %6503 = vrot.lane.b32.xlu0 %v6471, 96
    %v6504 = vpop.permute.xlu0 %6503
    %6505 = vrot.lane.b32.xlu0 %v6472, 96
    %v6506 = vpop.permute.xlu0 %6505
    %6507 = vrot.lane.b32.xlu0 %v6473, 96
    %v6508 = vpop.permute.xlu0 %6507
    %v6513 = vunpack.c.l.b16 %v6474
    %v6514 = vunpack.c.l.b16 %v6475
    %v6515 = vunpack.c.l.b16 %v6476
    %v6516 = vunpack.c.l.b16 %v6477
    %v6517 = vpack.c.b16 %v6514, %v6513
    %v6518 = vpack.c.b16 %v6516, %v6515
    %v6522 = vsel %vm1097, %v6494, 0
    %v6525 = vsel %vm1097, %v6496, 0
    %v6528 = vsel %vm1097, %v6498, 0
    %v6531 = vsel %vm1097, %v6500, 0
    %v6534 = vsel %vm1097, %v6502, 0
    %v6537 = vsel %vm1097, %v6504, 0
    %v6540 = vsel %vm1097, %v6506, 0
    %v6543 = vsel %vm1097, %v6508, 0
    %6545 = vmatprep.subr.bf16.mxu0 0
    %6546 = vmatpush1.bf16.msra.mxu0 %v6517
    %6547 = vmatprep.subr.bf16.mxu0 0
    %6548 = vmatpush1.bf16.msra.mxu0 %v6518
    %6549 = vmatprep.subr.bf16.mxu0 0
    %6550 = vmatpush1.bf16.msra.mxu0 0
    %6551 = vmatprep.subr.bf16.mxu0 0
    %6552 = vmatpush1.bf16.msra.mxu0 0
    %6553 = vmatprep.subr.bf16.mxu0 0
    %6554 = vmatpush1.bf16.msra.mxu0 0
    %6555 = vmatprep.subr.bf16.mxu0 0
    %6556 = vmatpush1.bf16.msra.mxu0 0
    %6557 = vmatprep.subr.bf16.mxu0 0
    %6558 = vmatpush1.bf16.msra.mxu0 0
    %6559 = vmatprep.subr.bf16.mxu0 0
    %6560 = vmatpush1.bf16.msra.mxu0 0
    %6561 = vmatprep.subr.bf16.mxu0 0
    %6562 = vmatpush1.bf16.msra.mxu0 0
    %6563 = vmatprep.subr.bf16.mxu0 0
    %6564 = vmatpush1.bf16.msra.mxu0 0
    %6565 = vmatprep.subr.bf16.mxu0 0
    %6566 = vmatpush1.bf16.msra.mxu0 0
    %6567 = vmatprep.subr.bf16.mxu0 0
    %6568 = vmatpush1.bf16.msra.mxu0 0
    %6569 = vmatprep.subr.bf16.mxu0 0
    %6570 = vmatpush1.bf16.msra.mxu0 0
    %6571 = vmatprep.subr.bf16.mxu0 0
    %6572 = vmatpush1.bf16.msra.mxu0 0
    %6573 = vmatprep.subr.bf16.mxu0 0
    %6574 = vmatpush1.bf16.msra.mxu0 0
    %6575 = vmatprep.subr.bf16.mxu0 0
    %6576 = vmatpush1.bf16.msra.mxu0 0
    %6577 = vmatprep.mubr.bf16.mxu0 0
    %6578 = vmatmul.mubr.bf16.gmra.mrb[0].mxu0 %v6522
    %v6579 = vpop.f32.mrb[0].mxu0
    %v6580 = vadd.f32 %v6483, %v6579
    %v6581 = vpop.f32.mrb[0].mxu0
    %v6582 = vpop.f32.mrb[0].mxu0
    %v6583 = vadd.f32 %v6483, %v6582
    %v6584 = vpop.f32.mrb[0].mxu0
    %6585 = vmatprep.mubr.bf16.mxu0 0
    %6586 = vmatmul.mubr.bf16.gmra.mrb[0].mxu0 %v6525
    %v6587 = vpop.f32.mrb[0].mxu0
    %v6588 = vadd.f32 %v6483, %v6587
    %v6589 = vpop.f32.mrb[0].mxu0
    %v6590 = vpop.f32.mrb[0].mxu0
    %v6591 = vadd.f32 %v6483, %v6590
    %v6592 = vpop.f32.mrb[0].mxu0
    %6593 = vmatprep.mubr.bf16.mxu0 0
    %6594 = vmatmul.mubr.bf16.gmra.mrb[0].mxu0 %v6528
    %v6595 = vpop.f32.mrb[0].mxu0
    %v6596 = vadd.f32 %v6483, %v6595
    %v6597 = vpop.f32.mrb[0].mxu0
    %v6598 = vpop.f32.mrb[0].mxu0
    %v6599 = vadd.f32 %v6483, %v6598
    %v6600 = vpop.f32.mrb[0].mxu0
    %6601 = vmatprep.mubr.bf16.mxu0 0
    %6602 = vmatmul.mubr.bf16.gmra.mrb[0].mxu0 %v6531
    %v6603 = vpop.f32.mrb[0].mxu0
    %v6604 = vadd.f32 %v6483, %v6603
    %v6605 = vpop.f32.mrb[0].mxu0
    %v6606 = vpop.f32.mrb[0].mxu0
    %v6607 = vadd.f32 %v6483, %v6606
    %v6608 = vpop.f32.mrb[0].mxu0
    %6609 = vmatprep.mubr.bf16.mxu0 0
    %6610 = vmatmul.mubr.bf16.gmra.mrb[0].mxu0 %v6534
    %v6611 = vpop.f32.mrb[0].mxu0
    %v6612 = vadd.f32 %v6483, %v6611
    %v6613 = vpop.f32.mrb[0].mxu0
    %v6614 = vpop.f32.mrb[0].mxu0
    %v6615 = vadd.f32 %v6483, %v6614
    %v6616 = vpop.f32.mrb[0].mxu0
    %6617 = vmatprep.mubr.bf16.mxu0 0
    %6618 = vmatmul.mubr.bf16.gmra.mrb[0].mxu0 %v6537
    %v6619 = vpop.f32.mrb[0].mxu0
    %v6620 = vadd.f32 %v6483, %v6619
    %v6621 = vpop.f32.mrb[0].mxu0
    %v6622 = vpop.f32.mrb[0].mxu0
    %v6623 = vadd.f32 %v6483, %v6622
    %v6624 = vpop.f32.mrb[0].mxu0
    %6625 = vmatprep.mubr.bf16.mxu0 0
    %6626 = vmatmul.mubr.bf16.gmra.mrb[0].mxu0 %v6540
    %v6627 = vpop.f32.mrb[0].mxu0
    %v6628 = vadd.f32 %v6483, %v6627
    %v6629 = vpop.f32.mrb[0].mxu0
    %v6630 = vpop.f32.mrb[0].mxu0
    %v6631 = vadd.f32 %v6483, %v6630
    %v6632 = vpop.f32.mrb[0].mxu0
    %6633 = vmatprep.mubr.bf16.mxu0 0
    %6634 = vmatmul.mubr.bf16.gmra.mrb[0].mxu0 %v6543
    %v6635 = vpop.f32.mrb[0].mxu0
    %v6636 = vadd.f32 %v6483, %v6635
    %v6637 = vpop.f32.mrb[0].mxu0
    %v6638 = vpop.f32.mrb[0].mxu0
    %v6639 = vadd.f32 %v6483, %v6638
    %v6640 = vpop.f32.mrb[0].mxu0
    %6641 = vdwg.mxu0
    %6642 = vst [vmem:[#allocation2] sm:$0xff] %v6580
    %6643 = vst [vmem:[#allocation2 + $0x8] sm:$0xff] %v6583
    %6644 = vst [vmem:[#allocation2 + $0x10] sm:$0xff] %v6588
    %6645 = vst [vmem:[#allocation2 + $0x18] sm:$0xff] %v6591
    %6646 = vst [vmem:[#allocation2 + $0x20] sm:$0xff] %v6596
    %6647 = vst [vmem:[#allocation2 + $0x28] sm:$0xff] %v6599
    %6648 = vst [vmem:[#allocation2 + $0x30] sm:$0xff] %v6604
    %6649 = vst [vmem:[#allocation2 + $0x38] sm:$0xff] %v6607
    %6650 = vst [vmem:[#allocation2 + $0x40] sm:$0xff] %v6612
    %6651 = vst [vmem:[#allocation2 + $0x48] sm:$0xff] %v6615
    %6652 = vst [vmem:[#allocation2 + $0x50] sm:$0xff] %v6620
    %6653 = vst [vmem:[#allocation2 + $0x58] sm:$0xff] %v6623
    %6654 = vst [vmem:[#allocation2 + $0x60] sm:$0xff] %v6628
    %6655 = vst [vmem:[#allocation2 + $0x68] sm:$0xff] %v6631
    %6656 = vst [vmem:[#allocation2 + $0x70] sm:$0xff] %v6636
    %6657 = vst [vmem:[#allocation2 + $0x78] sm:$0xff] %v6639
    // Predicated region
    $region30: #{tpu_custom_call.1} parent=1 // pred_check
      _
    $region31: #{tpu_custom_call.1} parent=1 // pred_check_branch
      %6659 = sbr.rel (0) target = $region33
    $region32: #{tpu_custom_call.1} parent=1 // pred_region
      %s6661 = ssub.s32 2048, 2048
      %6662 = vsyncadd [#allocation3], %s6661
      %s6663 = sshll.u32 [#allocation2], 4
      %s6664 = int_to_ptr.vmem [resolvable:$true] %s6663
      %6669 = dma.vmem_to_hbm [thread:$0]  %s6664, 2048, %s7, [#allocation3], 128, 128, 8
    $region33: #{tpu_custom_call.1} parent=1 // pred_fallthru
      _
    // Predicated region
    $region34: #{tpu_custom_call.1} parent=1 // pred_check
      _
    $region35: #{tpu_custom_call.1} parent=1 // pred_check_branch
      %6671 = sbr.rel (0) target = $region37
    $region36: #{tpu_custom_call.1} parent=1 // pred_region
      %6672 = dma.done [#allocation3], 2048
    $region37: #{tpu_custom_call.1} parent=1 // pred_fallthru
      _
    %6673 = vsyncpa [#allocation3], 1

</llo_original>
